<compile_context>
chip_gen: v5e
topology: v5e:2x2
jax: 0.10.0
libtpu: 0.0.40
codegen_flags: <defaults>
</compile_context>

<pallas_src>
import functools

import jax
import jax.numpy as jnp
from jax.experimental import pallas as pl
from jax.experimental.pallas import tpu as pltpu


# -----------------------------------------------------------------------------
# Fused whole-network kernel
# -----------------------------------------------------------------------------
def _fused_graphsage3_kernel(a_ref, inv_deg_ref, x_ref,
                             w1l_ref, w1r_ref, b1_ref,
                             w2l_ref, w2r_ref, b2_ref,
                             w3l_ref, w3r_ref, b3_ref,
                             wc_ref, bc_ref,
                             o_ref, *, inv_n):
    a = a_ref[...]                 # (N, N)  bf16, exact integer edge counts
    inv_deg = inv_deg_ref[...]     # (N, 1)  f32, exact 1/max(deg_in, 1)

    def sage_relu(h, wl_ref, wr_ref, b_ref):
        # Neighbor mean: (1/deg_i) * sum_j A[i, j] * h[j]  (f32 MXU accumulation,
        # exact f32 inverse-degree scaling on the VPU).
        agg = jnp.dot(a, h, preferred_element_type=jnp.float32) * inv_deg
        # Two separate dots (no lane-axis concatenate): agg @ W_l + h @ W_r + b.
        out = jnp.dot(agg.astype(jnp.bfloat16), wl_ref[...],
                      preferred_element_type=jnp.float32)
        out = out + jnp.dot(h, wr_ref[...], preferred_element_type=jnp.float32)
        out = out + b_ref[...].astype(jnp.float32)       # lin_l bias only (PyG)
        return jnp.maximum(out, 0.0).astype(jnp.bfloat16)  # fused ReLU + cast

    h1 = sage_relu(x_ref[...], w1l_ref, w1r_ref, b1_ref)   # (N, 512)
    h2 = sage_relu(h1, w2l_ref, w2r_ref, b2_ref)           # (N, 128)
    h3 = sage_relu(h2, w3l_ref, w3r_ref, b3_ref)           # (N, 128)

    # global_mean_pool (single graph) + Linear + Sigmoid, lane-dense (1, 128).
    pooled = (jnp.sum(h3.astype(jnp.float32), axis=0, keepdims=True)
              * inv_n).astype(jnp.bfloat16)
    logits = jnp.dot(pooled, wc_ref[...], preferred_element_type=jnp.float32)
    logits = logits + bc_ref[...].astype(jnp.float32)
    o_ref[...] = jax.nn.sigmoid(logits)


# -----------------------------------------------------------------------------
# JAX glue
# -----------------------------------------------------------------------------
def build_adjacency(edge_index, num_nodes):
    """A[i, j] = #edges j -> i (exact small ints), plus exact f32 1/deg_in."""
    src, dst = edge_index[0], edge_index[1]
    counts = jnp.zeros((num_nodes, num_nodes), jnp.float32).at[dst, src].add(1.0)
    deg = jnp.sum(counts, axis=1, keepdims=True)
    inv_deg = 1.0 / jnp.maximum(deg, 1.0)      # isolated nodes -> agg row = 0 (PyG)
    return counts.astype(jnp.bfloat16), inv_deg


def graphsage3_forward(params, x, edge_index, n_classes):
    n = x.shape[0]
    a, inv_deg = build_adjacency(edge_index, n)
    kern = functools.partial(_fused_graphsage3_kernel, inv_n=1.0 / float(n))

    inputs = (
        a, inv_deg, x.astype(jnp.bfloat16),
        params["l1"]["w_l"], params["l1"]["w_r"], params["l1"]["b"],
        params["l2"]["w_l"], params["l2"]["w_r"], params["l2"]["b"],
        params["l3"]["w_l"], params["l3"]["w_r"], params["l3"]["b"],
        params["cls"]["w_pad"], params["cls"]["b_pad"],
    )
    c_pad = params["cls"]["w_pad"].shape[1]

    out = pl.pallas_call(
        kern,
        out_shape=jax.ShapeDtypeStruct((1, c_pad), jnp.float32),
        grid_spec=pltpu.PrefetchScalarGridSpec(
            num_scalar_prefetch=0,
            grid=(1,),   # everything is VMEM-resident at this size
            in_specs=[pl.BlockSpec(arr.shape, lambda i: (0, 0)) for arr in inputs],
            out_specs=pl.BlockSpec((1, c_pad), lambda i: (0, 0)),
        ),
        compiler_params=pltpu.CompilerParams(
            dimension_semantics=("arbitrary",),
            vmem_limit_bytes=32 * 1024 * 1024,   # well under v7x's 64 MiB physical
        ),
    )(*inputs)
    return out[:, :n_classes]


def reference_forward(ref_params, x, edge_index, n_classes):
    """Pure-JAX f32 reference of the GraphSAGE3 eval forward."""
    n = x.shape[0]
    src, dst = edge_index[0], edge_index[1]
    a = jnp.zeros((n, n), jnp.float32).at[dst, src].add(1.0)
    deg = jnp.sum(a, axis=1, keepdims=True)
    a_norm = a / jnp.maximum(deg, 1.0)
    h = x
    for name in ("l1", "l2", "l3"):
        p = ref_params[name]
        agg = a_norm @ h
        h = jnp.maximum(agg @ p["w_l"] + h @ p["w_r"] + p["b"], 0.0)
    pooled = jnp.mean(h, axis=0, keepdims=True)
    logits = pooled @ ref_params["cls"]["w"] + ref_params["cls"]["b"]
    return jax.nn.sigmoid(logits)[:, :n_classes]


def init_params(key, vocab, n_classes):
    dims = (("l1", vocab, 512), ("l2", 512, 128), ("l3", 128, 128))
    keys = jax.random.split(key, len(dims) + 1)

    kernel_params, ref_params = {}, {}
    for lk, (name, fi, fo) in zip(keys[:-1], dims):
        k1, k2, k3 = jax.random.split(lk, 3)
        scale = 1.0 / (fi ** 0.5)
        w_l = (jax.random.normal(k1, (fi, fo), jnp.float32) * scale).astype(jnp.bfloat16)
        w_r = (jax.random.normal(k2, (fi, fo), jnp.float32) * scale).astype(jnp.bfloat16)
        b = (jax.random.normal(k3, (1, fo), jnp.float32) * 0.1).astype(jnp.bfloat16)
        kernel_params[name] = {"w_l": w_l, "w_r": w_r, "b": b}
        ref_params[name] = {"w_l": w_l.astype(jnp.float32),
                            "w_r": w_r.astype(jnp.float32),
                            "b": b.astype(jnp.float32)}

    kc1, kc2 = jax.random.split(keys[-1], 2)
    w_c = (jax.random.normal(kc1, (128, n_classes), jnp.float32) / (128.0 ** 0.5)
           ).astype(jnp.bfloat16)
    b_c = (jax.random.normal(kc2, (1, n_classes), jnp.float32) * 0.1).astype(jnp.bfloat16)
    # Lane-dense padding of the class dim to 128 (avoids masked partial stores).
    w_pad = jnp.zeros((128, 128), jnp.bfloat16).at[:, :n_classes].set(w_c)
    b_pad = jnp.zeros((1, 128), jnp.bfloat16).at[:, :n_classes].set(b_c)
    kernel_params["cls"] = {"w_pad": w_pad, "b_pad": b_pad}
    ref_params["cls"] = {
        "w": jnp.zeros((128, 128), jnp.float32).at[:, :n_classes].set(
            w_c.astype(jnp.float32)),
        "b": jnp.zeros((1, 128), jnp.float32).at[:, :n_classes].set(
            b_c.astype(jnp.float32)),
    }
    return kernel_params, ref_params


if __name__ == "__main__":
    N, E, VOCAB, N_CLASSES = 256, 1024, 128, 4

    key = jax.random.PRNGKey(0)
    k_x, k_e1, k_e2, k_p = jax.random.split(key, 4)
    x = jax.random.normal(k_x, (N, VOCAB), jnp.float32)
    src = jax.random.randint(k_e1, (E,), 0, N, dtype=jnp.int32)
    dst = jax.random.randint(k_e2, (E,), 0, N, dtype=jnp.int32)
    edge_index = jnp.stack([src, dst])          # (2, E), src -> dst

    kernel_params, ref_params = init_params(k_p, VOCAB, N_CLASSES)

    forward = jax.jit(functools.partial(graphsage3_forward, n_classes=N_CLASSES))
    out = forward(kernel_params, x, edge_index)
    out = jax.block_until_ready(out)

    # Correctness check against a pure-JAX f32 reference (same bf16-rounded
    # weights/inputs; residual diffs come only from bf16 activation casts).
    x_ref = x.astype(jnp.bfloat16).astype(jnp.float32)
    ref = reference_forward(ref_params, x_ref, edge_index, N_CLASSES)
    err = float(jnp.max(jnp.abs(out.astype(jnp.float32) - ref)))
    assert out.shape == (1, N_CLASSES), out.shape
    if err > 5e-2:
        raise AssertionError(f"kernel/reference mismatch: max abs err = {err}")

    print("KERNEL_OK")
</pallas_src>

<mosaic_0001>
module attributes {stable_mosaic.version = 11 : i64} {
  func.func @_fused_graphsage3_kernel(%arg0: i32, %arg1: memref<256x256xbf16, #tpu.memory_space<vmem>>, %arg2: memref<256x1xf32, #tpu.memory_space<vmem>>, %arg3: memref<256x128xbf16, #tpu.memory_space<vmem>>, %arg4: memref<128x512xbf16, #tpu.memory_space<vmem>>, %arg5: memref<128x512xbf16, #tpu.memory_space<vmem>>, %arg6: memref<1x512xbf16, #tpu.memory_space<vmem>>, %arg7: memref<512x128xbf16, #tpu.memory_space<vmem>>, %arg8: memref<512x128xbf16, #tpu.memory_space<vmem>>, %arg9: memref<1x128xbf16, #tpu.memory_space<vmem>>, %arg10: memref<128x128xbf16, #tpu.memory_space<vmem>>, %arg11: memref<128x128xbf16, #tpu.memory_space<vmem>>, %arg12: memref<1x128xbf16, #tpu.memory_space<vmem>>, %arg13: memref<128x128xbf16, #tpu.memory_space<vmem>>, %arg14: memref<1x128xbf16, #tpu.memory_space<vmem>>, %arg15: memref<1x128xf32, #tpu.memory_space<vmem>>) attributes {dimension_semantics = [#tpu.dimension_semantics<arbitrary>], iteration_bounds = array<i64: 1>, scalar_prefetch = 0 : i64, scratch_operands = 0 : i64, tpu.core_type = #tpu.core_type<tc>, window_params = [{pipeline_mode = #tpu.pipeline_mode<synchronous>, transform_indices = @transform_0, window_bounds = array<i64: 256, 256>}, {pipeline_mode = #tpu.pipeline_mode<synchronous>, transform_indices = @transform_1, window_bounds = array<i64: 256, 1>}, {pipeline_mode = #tpu.pipeline_mode<synchronous>, transform_indices = @transform_2, window_bounds = array<i64: 256, 128>}, {pipeline_mode = #tpu.pipeline_mode<synchronous>, transform_indices = @transform_3, window_bounds = array<i64: 128, 512>}, {pipeline_mode = #tpu.pipeline_mode<synchronous>, transform_indices = @transform_4, window_bounds = array<i64: 128, 512>}, {pipeline_mode = #tpu.pipeline_mode<synchronous>, transform_indices = @transform_5, window_bounds = array<i64: 1, 512>}, {pipeline_mode = #tpu.pipeline_mode<synchronous>, transform_indices = @transform_6, window_bounds = array<i64: 512, 128>}, {pipeline_mode = #tpu.pipeline_mode<synchronous>, transform_indices = @transform_7, window_bounds = array<i64: 512, 128>}, {pipeline_mode = #tpu.pipeline_mode<synchronous>, transform_indices = @transform_8, window_bounds = array<i64: 1, 128>}, {pipeline_mode = #tpu.pipeline_mode<synchronous>, transform_indices = @transform_9, window_bounds = array<i64: 128, 128>}, {pipeline_mode = #tpu.pipeline_mode<synchronous>, transform_indices = @transform_10, window_bounds = array<i64: 128, 128>}, {pipeline_mode = #tpu.pipeline_mode<synchronous>, transform_indices = @transform_11, window_bounds = array<i64: 1, 128>}, {pipeline_mode = #tpu.pipeline_mode<synchronous>, transform_indices = @transform_12, window_bounds = array<i64: 128, 128>}, {pipeline_mode = #tpu.pipeline_mode<synchronous>, transform_indices = @transform_13, window_bounds = array<i64: 1, 128>}, {pipeline_mode = #tpu.pipeline_mode<synchronous>, transform_indices = @transform_14, window_bounds = array<i64: 1, 128>}]} {
    %c0 = arith.constant 0 : index
    %c0_0 = arith.constant 0 : index
    %0 = vector.load %arg1[%c0, %c0_0] : memref<256x256xbf16, #tpu.memory_space<vmem>>, vector<256x256xbf16>
    %c0_1 = arith.constant 0 : index
    %c0_2 = arith.constant 0 : index
    %1 = vector.load %arg2[%c0_1, %c0_2] : memref<256x1xf32, #tpu.memory_space<vmem>>, vector<256x1xf32>
    %c0_3 = arith.constant 0 : index
    %c0_4 = arith.constant 0 : index
    %2 = vector.load %arg3[%c0_3, %c0_4] : memref<256x128xbf16, #tpu.memory_space<vmem>>, vector<256x128xbf16>
    %cst = arith.constant dense<0.000000e+00> : vector<256x128xf32>
    %3 = tpu.matmul %0, %2, %cst {dimension_numbers = #tpu.dot_dimension_numbers<[1], [0], [0], [1], [0, 0, 1, 1], [], []>} : vector<256x256xbf16>, vector<256x128xbf16>, vector<256x128xf32> -> vector<256x128xf32>
    %4 = vector.broadcast %1 : vector<256x1xf32> to vector<256x128xf32>
    %5 = arith.mulf %3, %4 : vector<256x128xf32>
    %6 = arith.truncf %5 : vector<256x128xf32> to vector<256x128xbf16>
    %c0_5 = arith.constant 0 : index
    %c0_6 = arith.constant 0 : index
    %7 = vector.load %arg4[%c0_5, %c0_6] : memref<128x512xbf16, #tpu.memory_space<vmem>>, vector<128x512xbf16>
    %cst_7 = arith.constant dense<0.000000e+00> : vector<256x512xf32>
    %8 = tpu.matmul %6, %7, %cst_7 {dimension_numbers = #tpu.dot_dimension_numbers<[1], [0], [0], [1], [0, 0, 1, 1], [], []>} : vector<256x128xbf16>, vector<128x512xbf16>, vector<256x512xf32> -> vector<256x512xf32>
    %c0_8 = arith.constant 0 : index
    %c0_9 = arith.constant 0 : index
    %9 = vector.load %arg5[%c0_8, %c0_9] : memref<128x512xbf16, #tpu.memory_space<vmem>>, vector<128x512xbf16>
    %cst_10 = arith.constant dense<0.000000e+00> : vector<256x512xf32>
    %10 = tpu.matmul %2, %9, %cst_10 {dimension_numbers = #tpu.dot_dimension_numbers<[1], [0], [0], [1], [0, 0, 1, 1], [], []>} : vector<256x128xbf16>, vector<128x512xbf16>, vector<256x512xf32> -> vector<256x512xf32>
    %11 = arith.addf %8, %10 : vector<256x512xf32>
    %c0_11 = arith.constant 0 : index
    %c0_12 = arith.constant 0 : index
    %12 = vector.load %arg6[%c0_11, %c0_12] : memref<1x512xbf16, #tpu.memory_space<vmem>>, vector<1x512xbf16>
    %13 = arith.extf %12 : vector<1x512xbf16> to vector<1x512xf32>
    %14 = vector.broadcast %13 : vector<1x512xf32> to vector<256x512xf32>
    %15 = arith.addf %11, %14 : vector<256x512xf32>
    %cst_13 = arith.constant 0.000000e+00 : f32
    %16 = vector.broadcast %cst_13 : f32 to vector<256x512xf32>
    %17 = arith.maximumf %15, %16 : vector<256x512xf32>
    %18 = arith.truncf %17 : vector<256x512xf32> to vector<256x512xbf16>
    %cst_14 = arith.constant dense<0.000000e+00> : vector<256x512xf32>
    %19 = tpu.matmul %0, %18, %cst_14 {dimension_numbers = #tpu.dot_dimension_numbers<[1], [0], [0], [1], [0, 0, 1, 1], [], []>} : vector<256x256xbf16>, vector<256x512xbf16>, vector<256x512xf32> -> vector<256x512xf32>
    %20 = vector.broadcast %1 : vector<256x1xf32> to vector<256x512xf32>
    %21 = arith.mulf %19, %20 : vector<256x512xf32>
    %22 = arith.truncf %21 : vector<256x512xf32> to vector<256x512xbf16>
    %c0_15 = arith.constant 0 : index
    %c0_16 = arith.constant 0 : index
    %23 = vector.load %arg7[%c0_15, %c0_16] : memref<512x128xbf16, #tpu.memory_space<vmem>>, vector<512x128xbf16>
    %cst_17 = arith.constant dense<0.000000e+00> : vector<256x128xf32>
    %24 = tpu.matmul %22, %23, %cst_17 {dimension_numbers = #tpu.dot_dimension_numbers<[1], [0], [0], [1], [0, 0, 1, 1], [], []>} : vector<256x512xbf16>, vector<512x128xbf16>, vector<256x128xf32> -> vector<256x128xf32>
    %c0_18 = arith.constant 0 : index
    %c0_19 = arith.constant 0 : index
    %25 = vector.load %arg8[%c0_18, %c0_19] : memref<512x128xbf16, #tpu.memory_space<vmem>>, vector<512x128xbf16>
    %cst_20 = arith.constant dense<0.000000e+00> : vector<256x128xf32>
    %26 = tpu.matmul %18, %25, %cst_20 {dimension_numbers = #tpu.dot_dimension_numbers<[1], [0], [0], [1], [0, 0, 1, 1], [], []>} : vector<256x512xbf16>, vector<512x128xbf16>, vector<256x128xf32> -> vector<256x128xf32>
    %27 = arith.addf %24, %26 : vector<256x128xf32>
    %c0_21 = arith.constant 0 : index
    %c0_22 = arith.constant 0 : index
    %28 = vector.load %arg9[%c0_21, %c0_22] : memref<1x128xbf16, #tpu.memory_space<vmem>>, vector<1x128xbf16>
    %29 = arith.extf %28 : vector<1x128xbf16> to vector<1x128xf32>
    %30 = vector.broadcast %29 : vector<1x128xf32> to vector<256x128xf32>
    %31 = arith.addf %27, %30 : vector<256x128xf32>
    %cst_23 = arith.constant 0.000000e+00 : f32
    %32 = vector.broadcast %cst_23 : f32 to vector<256x128xf32>
    %33 = arith.maximumf %31, %32 : vector<256x128xf32>
    %34 = arith.truncf %33 : vector<256x128xf32> to vector<256x128xbf16>
    %cst_24 = arith.constant dense<0.000000e+00> : vector<256x128xf32>
    %35 = tpu.matmul %0, %34, %cst_24 {dimension_numbers = #tpu.dot_dimension_numbers<[1], [0], [0], [1], [0, 0, 1, 1], [], []>} : vector<256x256xbf16>, vector<256x128xbf16>, vector<256x128xf32> -> vector<256x128xf32>
    %36 = vector.broadcast %1 : vector<256x1xf32> to vector<256x128xf32>
    %37 = arith.mulf %35, %36 : vector<256x128xf32>
    %38 = arith.truncf %37 : vector<256x128xf32> to vector<256x128xbf16>
    %c0_25 = arith.constant 0 : index
    %c0_26 = arith.constant 0 : index
    %39 = vector.load %arg10[%c0_25, %c0_26] : memref<128x128xbf16, #tpu.memory_space<vmem>>, vector<128x128xbf16>
    %cst_27 = arith.constant dense<0.000000e+00> : vector<256x128xf32>
    %40 = tpu.matmul %38, %39, %cst_27 {dimension_numbers = #tpu.dot_dimension_numbers<[1], [0], [0], [1], [0, 0, 1, 1], [], []>} : vector<256x128xbf16>, vector<128x128xbf16>, vector<256x128xf32> -> vector<256x128xf32>
    %c0_28 = arith.constant 0 : index
    %c0_29 = arith.constant 0 : index
    %41 = vector.load %arg11[%c0_28, %c0_29] : memref<128x128xbf16, #tpu.memory_space<vmem>>, vector<128x128xbf16>
    %cst_30 = arith.constant dense<0.000000e+00> : vector<256x128xf32>
    %42 = tpu.matmul %34, %41, %cst_30 {dimension_numbers = #tpu.dot_dimension_numbers<[1], [0], [0], [1], [0, 0, 1, 1], [], []>} : vector<256x128xbf16>, vector<128x128xbf16>, vector<256x128xf32> -> vector<256x128xf32>
    %43 = arith.addf %40, %42 : vector<256x128xf32>
    %c0_31 = arith.constant 0 : index
    %c0_32 = arith.constant 0 : index
    %44 = vector.load %arg12[%c0_31, %c0_32] : memref<1x128xbf16, #tpu.memory_space<vmem>>, vector<1x128xbf16>
    %45 = arith.extf %44 : vector<1x128xbf16> to vector<1x128xf32>
    %46 = vector.broadcast %45 : vector<1x128xf32> to vector<256x128xf32>
    %47 = arith.addf %43, %46 : vector<256x128xf32>
    %cst_33 = arith.constant 0.000000e+00 : f32
    %48 = vector.broadcast %cst_33 : f32 to vector<256x128xf32>
    %49 = arith.maximumf %47, %48 : vector<256x128xf32>
    %50 = arith.truncf %49 : vector<256x128xf32> to vector<256x128xbf16>
    %51 = arith.extf %50 : vector<256x128xbf16> to vector<256x128xf32>
    %cst_34 = arith.constant dense<0.000000e+00> : vector<128xf32>
    %52 = vector.multi_reduction <add>, %51, %cst_34 [0] : vector<256x128xf32> to vector<128xf32>
    %53 = vector.shape_cast %52 : vector<128xf32> to vector<1x128xf32>
    %cst_35 = arith.constant 3.906250e-03 : f32
    %54 = vector.broadcast %cst_35 : f32 to vector<1x128xf32>
    %55 = arith.mulf %53, %54 : vector<1x128xf32>
    %56 = arith.truncf %55 : vector<1x128xf32> to vector<1x128xbf16>
    %c0_36 = arith.constant 0 : index
    %c0_37 = arith.constant 0 : index
    %57 = vector.load %arg13[%c0_36, %c0_37] : memref<128x128xbf16, #tpu.memory_space<vmem>>, vector<128x128xbf16>
    %cst_38 = arith.constant dense<0.000000e+00> : vector<1x128xf32>
    %58 = tpu.matmul %56, %57, %cst_38 {dimension_numbers = #tpu.dot_dimension_numbers<[1], [0], [0], [1], [0, 0, 1, 1], [], []>} : vector<1x128xbf16>, vector<128x128xbf16>, vector<1x128xf32> -> vector<1x128xf32>
    %c0_39 = arith.constant 0 : index
    %c0_40 = arith.constant 0 : index
    %59 = vector.load %arg14[%c0_39, %c0_40] : memref<1x128xbf16, #tpu.memory_space<vmem>>, vector<1x128xbf16>
    %60 = arith.extf %59 : vector<1x128xbf16> to vector<1x128xf32>
    %61 = arith.addf %58, %60 : vector<1x128xf32>
    %62 = arith.negf %61 : vector<1x128xf32>
    %63 = math.exp %62 : vector<1x128xf32>
    %cst_41 = arith.constant 1.000000e+00 : f32
    %64 = vector.broadcast %cst_41 : f32 to vector<1x128xf32>
    %65 = arith.addf %64, %63 : vector<1x128xf32>
    %66 = arith.divf %64, %65 : vector<1x128xf32>
    %c0_42 = arith.constant 0 : index
    %c0_43 = arith.constant 0 : index
    %67 = vector.load %arg15[%c0_42, %c0_43] : memref<1x128xf32, #tpu.memory_space<vmem>>, vector<1x128xf32>
    tpu.vector_store %arg15[%c0_42, %c0_43], %66 {strides = array<i32>} : memref<1x128xf32, #tpu.memory_space<vmem>>, vector<1x128xf32>,
    return
  }
  func.func @transform_0(%arg0: i32) -> (i32, i32) {
    %c0_i32 = arith.constant 0 : i32
    %c0_i32_0 = arith.constant 0 : i32
    %c0_i32_1 = arith.constant 0 : i32
    return %c0_i32, %c0_i32_0 : i32, i32
  }
  func.func @transform_1(%arg0: i32) -> (i32, i32) {
    %c0_i32 = arith.constant 0 : i32
    %c0_i32_0 = arith.constant 0 : i32
    %c0_i32_1 = arith.constant 0 : i32
    return %c0_i32, %c0_i32_0 : i32, i32
  }
  func.func @transform_2(%arg0: i32) -> (i32, i32) {
    %c0_i32 = arith.constant 0 : i32
    %c0_i32_0 = arith.constant 0 : i32
    %c0_i32_1 = arith.constant 0 : i32
    return %c0_i32, %c0_i32_0 : i32, i32
  }
  func.func @transform_3(%arg0: i32) -> (i32, i32) {
    %c0_i32 = arith.constant 0 : i32
    %c0_i32_0 = arith.constant 0 : i32
    %c0_i32_1 = arith.constant 0 : i32
    return %c0_i32, %c0_i32_0 : i32, i32
  }
  func.func @transform_4(%arg0: i32) -> (i32, i32) {
    %c0_i32 = arith.constant 0 : i32
    %c0_i32_0 = arith.constant 0 : i32
    %c0_i32_1 = arith.constant 0 : i32
    return %c0_i32, %c0_i32_0 : i32, i32
  }
  func.func @transform_5(%arg0: i32) -> (i32, i32) {
    %c0_i32 = arith.constant 0 : i32
    %c0_i32_0 = arith.constant 0 : i32
    %c0_i32_1 = arith.constant 0 : i32
    return %c0_i32, %c0_i32_0 : i32, i32
  }
  func.func @transform_6(%arg0: i32) -> (i32, i32) {
    %c0_i32 = arith.constant 0 : i32
    %c0_i32_0 = arith.constant 0 : i32
    %c0_i32_1 = arith.constant 0 : i32
    return %c0_i32, %c0_i32_0 : i32, i32
  }
  func.func @transform_7(%arg0: i32) -> (i32, i32) {
    %c0_i32 = arith.constant 0 : i32
    %c0_i32_0 = arith.constant 0 : i32
    %c0_i32_1 = arith.constant 0 : i32
    return %c0_i32, %c0_i32_0 : i32, i32
  }
  func.func @transform_8(%arg0: i32) -> (i32, i32) {
    %c0_i32 = arith.constant 0 : i32
    %c0_i32_0 = arith.constant 0 : i32
    %c0_i32_1 = arith.constant 0 : i32
    return %c0_i32, %c0_i32_0 : i32, i32
  }
  func.func @transform_9(%arg0: i32) -> (i32, i32) {
    %c0_i32 = arith.constant 0 : i32
    %c0_i32_0 = arith.constant 0 : i32
    %c0_i32_1 = arith.constant 0 : i32
    return %c0_i32, %c0_i32_0 : i32, i32
  }
  func.func @transform_10(%arg0: i32) -> (i32, i32) {
    %c0_i32 = arith.constant 0 : i32
    %c0_i32_0 = arith.constant 0 : i32
    %c0_i32_1 = arith.constant 0 : i32
    return %c0_i32, %c0_i32_0 : i32, i32
  }
  func.func @transform_11(%arg0: i32) -> (i32, i32) {
    %c0_i32 = arith.constant 0 : i32
    %c0_i32_0 = arith.constant 0 : i32
    %c0_i32_1 = arith.constant 0 : i32
    return %c0_i32, %c0_i32_0 : i32, i32
  }
  func.func @transform_12(%arg0: i32) -> (i32, i32) {
    %c0_i32 = arith.constant 0 : i32
    %c0_i32_0 = arith.constant 0 : i32
    %c0_i32_1 = arith.constant 0 : i32
    return %c0_i32, %c0_i32_0 : i32, i32
  }
  func.func @transform_13(%arg0: i32) -> (i32, i32) {
    %c0_i32 = arith.constant 0 : i32
    %c0_i32_0 = arith.constant 0 : i32
    %c0_i32_1 = arith.constant 0 : i32
    return %c0_i32, %c0_i32_0 : i32, i32
  }
  func.func @transform_14(%arg0: i32) -> (i32, i32) {
    %c0_i32 = arith.constant 0 : i32
    %c0_i32_0 = arith.constant 0 : i32
    %c0_i32_1 = arith.constant 0 : i32
    return %c0_i32, %c0_i32_0 : i32, i32
  }
}

</mosaic_0001>

<llo_original>
// kernel: graphsage3_forward.1
$region0: #{graphsage3_forward.1}
  #allocation0 [shape = 'u32[]', space=smem, size = 0x4, offset = 0x4, fixed_abs, tag = 'smem constant byte address 0x4 - core index']
  #allocation1 [shape = 'u32[72,128]{1,0:T(1,128)}', space=vmem, size = 0x9000, scoped, tag = 'internal scratch']
  %s0 = inlined_call_operand.vmem [shape: bf16[256,256], index: 0, kind: input, shape index: {}]
  %s1 = inlined_call_operand.vmem [shape: f32[256,1], index: 1, kind: input, shape index: {}]
  %s2 = inlined_call_operand.vmem [shape: bf16[256,128], index: 2, kind: input, shape index: {}]
  %s3 = inlined_call_operand.vmem [shape: bf16[128,512], index: 3, kind: input, shape index: {}]
  %s4 = inlined_call_operand.vmem [shape: bf16[128,512], index: 4, kind: input, shape index: {}]
  %s5 = inlined_call_operand.vmem [shape: bf16[1,512], index: 5, kind: input, shape index: {}]
  %s6 = inlined_call_operand.vmem [shape: bf16[512,128], index: 6, kind: input, shape index: {}]
  %s7 = inlined_call_operand.vmem [shape: bf16[512,128], index: 7, kind: input, shape index: {}]
  %s8 = inlined_call_operand.vmem [shape: bf16[1,128], index: 8, kind: input, shape index: {}]
  %s9 = inlined_call_operand.vmem [shape: bf16[128,128], index: 9, kind: input, shape index: {}]
  %s10 = inlined_call_operand.vmem [shape: bf16[128,128], index: 10, kind: input, shape index: {}]
  %s11 = inlined_call_operand.vmem [shape: bf16[1,128], index: 11, kind: input, shape index: {}]
  %s12 = inlined_call_operand.vmem [shape: bf16[128,128], index: 12, kind: input, shape index: {}]
  %s13 = inlined_call_operand.vmem [shape: bf16[1,128], index: 13, kind: input, shape index: {}]
  %s14 = inlined_call_operand.hbm [shape: f32[1,128], index: 14, kind: output, shape index: {}]
  %s15 = sld [smem:[#allocation0]]
  $region66: #{graphsage3_forward.1} parent=0
    _
  %s17 = ssub.s32 1, %s15
  %s18 = scalar_select 0, %s17, %s15
  $region1: #{graphsage3_forward.1} parent=0
    #allocation2 [shape = 'u8[512]{0}', space=vmem, size = 0x400, scoped, tag = 'output window, operand 0, single buffered']
    #allocation3 [shape = 's32[1]{0}', space=sflag, size = 0x4, scoped, tag = 'scoped memory for graphsage3_forward.1']
    %19 = vsyncpa [#allocation3], 0
    // Predicated region
    $region2: #{graphsage3_forward.1} parent=1 // pred_check
      _
    $region3: #{graphsage3_forward.1} parent=1 // pred_check_branch
      %21 = sbr.rel (0) target = $region5
    $region4: #{graphsage3_forward.1} parent=1 // pred_region
      _
    $region5: #{graphsage3_forward.1} parent=1 // pred_fallthru
      _
    // Predicated region
    $region6: #{graphsage3_forward.1} parent=1 // pred_check
      _
    $region7: #{graphsage3_forward.1} parent=1 // pred_check_branch
      %23 = sbr.rel (0) target = $region9
    $region8: #{graphsage3_forward.1} parent=1 // pred_region
      _
    $region9: #{graphsage3_forward.1} parent=1 // pred_fallthru
      _
    // Predicated region
    $region10: #{graphsage3_forward.1} parent=1 // pred_check
      _
    $region11: #{graphsage3_forward.1} parent=1 // pred_check_branch
      %25 = sbr.rel (0) target = $region13
    $region12: #{graphsage3_forward.1} parent=1 // pred_region
      _
    $region13: #{graphsage3_forward.1} parent=1 // pred_fallthru
      _
    // Predicated region
    $region14: #{graphsage3_forward.1} parent=1 // pred_check
      _
    $region15: #{graphsage3_forward.1} parent=1 // pred_check_branch
      %27 = sbr.rel (0) target = $region17
    $region16: #{graphsage3_forward.1} parent=1 // pred_region
      _
    $region17: #{graphsage3_forward.1} parent=1 // pred_fallthru
      _
    // Predicated region
    $region18: #{graphsage3_forward.1} parent=1 // pred_check
      _
    $region19: #{graphsage3_forward.1} parent=1 // pred_check_branch
      %29 = sbr.rel (0) target = $region21
    $region20: #{graphsage3_forward.1} parent=1 // pred_region
      _
    $region21: #{graphsage3_forward.1} parent=1 // pred_fallthru
      _
    // Predicated region
    $region22: #{graphsage3_forward.1} parent=1 // pred_check
      _
    $region23: #{graphsage3_forward.1} parent=1 // pred_check_branch
      %31 = sbr.rel (0) target = $region25
    $region24: #{graphsage3_forward.1} parent=1 // pred_region
      _
    $region25: #{graphsage3_forward.1} parent=1 // pred_fallthru
      _
    // Predicated region
    $region26: #{graphsage3_forward.1} parent=1 // pred_check
      _
    $region27: #{graphsage3_forward.1} parent=1 // pred_check_branch
      %33 = sbr.rel (0) target = $region29
    $region28: #{graphsage3_forward.1} parent=1 // pred_region
      _
    $region29: #{graphsage3_forward.1} parent=1 // pred_fallthru
      _
    // Predicated region
    $region30: #{graphsage3_forward.1} parent=1 // pred_check
      _
    $region31: #{graphsage3_forward.1} parent=1 // pred_check_branch
      %35 = sbr.rel (0) target = $region33
    $region32: #{graphsage3_forward.1} parent=1 // pred_region
      _
    $region33: #{graphsage3_forward.1} parent=1 // pred_fallthru
      _
    // Predicated region
    $region34: #{graphsage3_forward.1} parent=1 // pred_check
      _
    $region35: #{graphsage3_forward.1} parent=1 // pred_check_branch
      %37 = sbr.rel (0) target = $region37
    $region36: #{graphsage3_forward.1} parent=1 // pred_region
      _
    $region37: #{graphsage3_forward.1} parent=1 // pred_fallthru
      _
    // Predicated region
    $region38: #{graphsage3_forward.1} parent=1 // pred_check
      _
    $region39: #{graphsage3_forward.1} parent=1 // pred_check_branch
      %39 = sbr.rel (0) target = $region41
    $region40: #{graphsage3_forward.1} parent=1 // pred_region
      _
    $region41: #{graphsage3_forward.1} parent=1 // pred_fallthru
      _
    // Predicated region
    $region42: #{graphsage3_forward.1} parent=1 // pred_check
      _
    $region43: #{graphsage3_forward.1} parent=1 // pred_check_branch
      %41 = sbr.rel (0) target = $region45
    $region44: #{graphsage3_forward.1} parent=1 // pred_region
      _
    $region45: #{graphsage3_forward.1} parent=1 // pred_fallthru
      _
    // Predicated region
    $region46: #{graphsage3_forward.1} parent=1 // pred_check
      _
    $region47: #{graphsage3_forward.1} parent=1 // pred_check_branch
      %43 = sbr.rel (0) target = $region49
    $region48: #{graphsage3_forward.1} parent=1 // pred_region
      _
    $region49: #{graphsage3_forward.1} parent=1 // pred_fallthru
      _
    // Predicated region
    $region50: #{graphsage3_forward.1} parent=1 // pred_check
      _
    $region51: #{graphsage3_forward.1} parent=1 // pred_check_branch
      %45 = sbr.rel (0) target = $region53
    $region52: #{graphsage3_forward.1} parent=1 // pred_region
      _
    $region53: #{graphsage3_forward.1} parent=1 // pred_fallthru
      _
    // Predicated region
    $region54: #{graphsage3_forward.1} parent=1 // pred_check
      _
    $region55: #{graphsage3_forward.1} parent=1 // pred_check_branch
      %47 = sbr.rel (0) target = $region57
    $region56: #{graphsage3_forward.1} parent=1 // pred_region
      _
    $region57: #{graphsage3_forward.1} parent=1 // pred_fallthru
      _
    %v48 = vld [vmem:[%s0] sm:$0xff]
    %v49 = vld [vmem:[%s0 + $0x8] sm:$0xff]
    %v50 = vld [vmem:[%s0 + $0x10] sm:$0xff]
    %v51 = vld [vmem:[%s0 + $0x18] sm:$0xff]
    %v52 = vld [vmem:[%s0 + $0x20] sm:$0xff]
    %v53 = vld [vmem:[%s0 + $0x28] sm:$0xff]
    %v54 = vld [vmem:[%s0 + $0x30] sm:$0xff]
    %v55 = vld [vmem:[%s0 + $0x38] sm:$0xff]
    %v56 = vld [vmem:[%s0 + $0x40] sm:$0xff]
    %v57 = vld [vmem:[%s0 + $0x48] sm:$0xff]
    %v58 = vld [vmem:[%s0 + $0x50] sm:$0xff]
    %v59 = vld [vmem:[%s0 + $0x58] sm:$0xff]
    %v60 = vld [vmem:[%s0 + $0x60] sm:$0xff]
    %v61 = vld [vmem:[%s0 + $0x68] sm:$0xff]
    %v62 = vld [vmem:[%s0 + $0x70] sm:$0xff]
    %v63 = vld [vmem:[%s0 + $0x78] sm:$0xff]
    %v64 = vld [vmem:[%s0 + $0x80] sm:$0xff]
    %v65 = vld [vmem:[%s0 + $0x88] sm:$0xff]
    %v66 = vld [vmem:[%s0 + $0x90] sm:$0xff]
    %v67 = vld [vmem:[%s0 + $0x98] sm:$0xff]
    %v68 = vld [vmem:[%s0 + $0xa0] sm:$0xff]
    %v69 = vld [vmem:[%s0 + $0xa8] sm:$0xff]
    %v70 = vld [vmem:[%s0 + $0xb0] sm:$0xff]
    %v71 = vld [vmem:[%s0 + $0xb8] sm:$0xff]
    %v72 = vld [vmem:[%s0 + $0xc0] sm:$0xff]
    %v73 = vld [vmem:[%s0 + $0xc8] sm:$0xff]
    %v74 = vld [vmem:[%s0 + $0xd0] sm:$0xff]
    %v75 = vld [vmem:[%s0 + $0xd8] sm:$0xff]
    %v76 = vld [vmem:[%s0 + $0xe0] sm:$0xff]
    %v77 = vld [vmem:[%s0 + $0xe8] sm:$0xff]
    %v78 = vld [vmem:[%s0 + $0xf0] sm:$0xff]
    %v79 = vld [vmem:[%s0 + $0xf8] sm:$0xff]
    %v80 = vld [vmem:[%s1] sm:$0xff]
    %v81 = vld [vmem:[%s1 + $0x8] sm:$0xff]
    %v82 = vld [vmem:[%s1 + $0x10] sm:$0xff]
    %v83 = vld [vmem:[%s1 + $0x18] sm:$0xff]
    %v84 = vld [vmem:[%s1 + $0x20] sm:$0xff]
    %v85 = vld [vmem:[%s1 + $0x28] sm:$0xff]
    %v86 = vld [vmem:[%s1 + $0x30] sm:$0xff]
    %v87 = vld [vmem:[%s1 + $0x38] sm:$0xff]
    %v88 = vld [vmem:[%s1 + $0x40] sm:$0xff]
    %v89 = vld [vmem:[%s1 + $0x48] sm:$0xff]
    %v90 = vld [vmem:[%s1 + $0x50] sm:$0xff]
    %v91 = vld [vmem:[%s1 + $0x58] sm:$0xff]
    %v92 = vld [vmem:[%s1 + $0x60] sm:$0xff]
    %v93 = vld [vmem:[%s1 + $0x68] sm:$0xff]
    %v94 = vld [vmem:[%s1 + $0x70] sm:$0xff]
    %v95 = vld [vmem:[%s1 + $0x78] sm:$0xff]
    %v96 = vld [vmem:[%s1 + $0x80] sm:$0xff]
    %v97 = vld [vmem:[%s1 + $0x88] sm:$0xff]
    %v98 = vld [vmem:[%s1 + $0x90] sm:$0xff]
    %v99 = vld [vmem:[%s1 + $0x98] sm:$0xff]
    %v100 = vld [vmem:[%s1 + $0xa0] sm:$0xff]
    %v101 = vld [vmem:[%s1 + $0xa8] sm:$0xff]
    %v102 = vld [vmem:[%s1 + $0xb0] sm:$0xff]
    %v103 = vld [vmem:[%s1 + $0xb8] sm:$0xff]
    %v104 = vld [vmem:[%s1 + $0xc0] sm:$0xff]
    %v105 = vld [vmem:[%s1 + $0xc8] sm:$0xff]
    %v106 = vld [vmem:[%s1 + $0xd0] sm:$0xff]
    %v107 = vld [vmem:[%s1 + $0xd8] sm:$0xff]
    %v108 = vld [vmem:[%s1 + $0xe0] sm:$0xff]
    %v109 = vld [vmem:[%s1 + $0xe8] sm:$0xff]
    %v110 = vld [vmem:[%s1 + $0xf0] sm:$0xff]
    %v111 = vld [vmem:[%s1 + $0xf8] sm:$0xff]
    %v112 = vld [vmem:[%s2] sm:$0xf]
    %v113 = vld [vmem:[%s2 + $0x4] sm:$0xf]
    %v114 = vld [vmem:[%s2 + $0x8] sm:$0xf]
    %v115 = vld [vmem:[%s2 + $0xc] sm:$0xf]
    %v116 = vld [vmem:[%s2 + $0x10] sm:$0xf]
    %v117 = vld [vmem:[%s2 + $0x14] sm:$0xf]
    %v118 = vld [vmem:[%s2 + $0x18] sm:$0xf]
    %v119 = vld [vmem:[%s2 + $0x1c] sm:$0xf]
    %v120 = vld [vmem:[%s2 + $0x20] sm:$0xf]
    %v121 = vld [vmem:[%s2 + $0x24] sm:$0xf]
    %v122 = vld [vmem:[%s2 + $0x28] sm:$0xf]
    %v123 = vld [vmem:[%s2 + $0x2c] sm:$0xf]
    %v124 = vld [vmem:[%s2 + $0x30] sm:$0xf]
    %v125 = vld [vmem:[%s2 + $0x34] sm:$0xf]
    %v126 = vld [vmem:[%s2 + $0x38] sm:$0xf]
    %v127 = vld [vmem:[%s2 + $0x3c] sm:$0xf]
    %v128 = vld [vmem:[%s2 + $0x40] sm:$0xf]
    %v129 = vld [vmem:[%s2 + $0x44] sm:$0xf]
    %v130 = vld [vmem:[%s2 + $0x48] sm:$0xf]
    %v131 = vld [vmem:[%s2 + $0x4c] sm:$0xf]
    %v132 = vld [vmem:[%s2 + $0x50] sm:$0xf]
    %v133 = vld [vmem:[%s2 + $0x54] sm:$0xf]
    %v134 = vld [vmem:[%s2 + $0x58] sm:$0xf]
    %v135 = vld [vmem:[%s2 + $0x5c] sm:$0xf]
    %v136 = vld [vmem:[%s2 + $0x60] sm:$0xf]
    %v137 = vld [vmem:[%s2 + $0x64] sm:$0xf]
    %v138 = vld [vmem:[%s2 + $0x68] sm:$0xf]
    %v139 = vld [vmem:[%s2 + $0x6c] sm:$0xf]
    %v140 = vld [vmem:[%s2 + $0x70] sm:$0xf]
    %v141 = vld [vmem:[%s2 + $0x74] sm:$0xf]
    %v142 = vld [vmem:[%s2 + $0x78] sm:$0xf]
    %v143 = vld [vmem:[%s2 + $0x7c] sm:$0xf]
    %v176 = vunpack.c.l.b16 %v48
    %v177 = vunpack.c.h.b16 %v48
    %v178 = vunpack.c.l.b16 %v49
    %v179 = vunpack.c.h.b16 %v49
    %v180 = vunpack.c.l.b16 %v50
    %v181 = vunpack.c.h.b16 %v50
    %v182 = vunpack.c.l.b16 %v51
    %v183 = vunpack.c.h.b16 %v51
    %v184 = vunpack.c.l.b16 %v52
    %v185 = vunpack.c.h.b16 %v52
    %v186 = vunpack.c.l.b16 %v53
    %v187 = vunpack.c.h.b16 %v53
    %v188 = vunpack.c.l.b16 %v54
    %v189 = vunpack.c.h.b16 %v54
    %v190 = vunpack.c.l.b16 %v55
    %v191 = vunpack.c.h.b16 %v55
    %v192 = vunpack.c.l.b16 %v56
    %v193 = vunpack.c.h.b16 %v56
    %v194 = vunpack.c.l.b16 %v57
    %v195 = vunpack.c.h.b16 %v57
    %v196 = vunpack.c.l.b16 %v58
    %v197 = vunpack.c.h.b16 %v58
    %v198 = vunpack.c.l.b16 %v59
    %v199 = vunpack.c.h.b16 %v59
    %v200 = vunpack.c.l.b16 %v60
    %v201 = vunpack.c.h.b16 %v60
    %v202 = vunpack.c.l.b16 %v61
    %v203 = vunpack.c.h.b16 %v61
    %v204 = vunpack.c.l.b16 %v62
    %v205 = vunpack.c.h.b16 %v62
    %v206 = vunpack.c.l.b16 %v63
    %v207 = vunpack.c.h.b16 %v63
    %v208 = vunpack.c.l.b16 %v64
    %v209 = vunpack.c.h.b16 %v64
    %v210 = vunpack.c.l.b16 %v65
    %v211 = vunpack.c.h.b16 %v65
    %v212 = vunpack.c.l.b16 %v66
    %v213 = vunpack.c.h.b16 %v66
    %v214 = vunpack.c.l.b16 %v67
    %v215 = vunpack.c.h.b16 %v67
    %v216 = vunpack.c.l.b16 %v68
    %v217 = vunpack.c.h.b16 %v68
    %v218 = vunpack.c.l.b16 %v69
    %v219 = vunpack.c.h.b16 %v69
    %v220 = vunpack.c.l.b16 %v70
    %v221 = vunpack.c.h.b16 %v70
    %v222 = vunpack.c.l.b16 %v71
    %v223 = vunpack.c.h.b16 %v71
    %v224 = vunpack.c.l.b16 %v72
    %v225 = vunpack.c.h.b16 %v72
    %v226 = vunpack.c.l.b16 %v73
    %v227 = vunpack.c.h.b16 %v73
    %v228 = vunpack.c.l.b16 %v74
    %v229 = vunpack.c.h.b16 %v74
    %v230 = vunpack.c.l.b16 %v75
    %v231 = vunpack.c.h.b16 %v75
    %v232 = vunpack.c.l.b16 %v76
    %v233 = vunpack.c.h.b16 %v76
    %v234 = vunpack.c.l.b16 %v77
    %v235 = vunpack.c.h.b16 %v77
    %v236 = vunpack.c.l.b16 %v78
    %v237 = vunpack.c.h.b16 %v78
    %v238 = vunpack.c.l.b16 %v79
    %v239 = vunpack.c.h.b16 %v79
    %v240 = vpack.c.b16 %v178, %v176
    %v241 = vpack.c.b16 %v179, %v177
    %v242 = vpack.c.b16 %v182, %v180
    %v243 = vpack.c.b16 %v183, %v181
    %v244 = vpack.c.b16 %v186, %v184
    %v245 = vpack.c.b16 %v187, %v185
    %v246 = vpack.c.b16 %v190, %v188
    %v247 = vpack.c.b16 %v191, %v189
    %v248 = vpack.c.b16 %v194, %v192
    %v249 = vpack.c.b16 %v195, %v193
    %v250 = vpack.c.b16 %v198, %v196
    %v251 = vpack.c.b16 %v199, %v197
    %v252 = vpack.c.b16 %v202, %v200
    %v253 = vpack.c.b16 %v203, %v201
    %v254 = vpack.c.b16 %v206, %v204
    %v255 = vpack.c.b16 %v207, %v205
    %v256 = vpack.c.b16 %v210, %v208
    %v257 = vpack.c.b16 %v211, %v209
    %v258 = vpack.c.b16 %v214, %v212
    %v259 = vpack.c.b16 %v215, %v213
    %v260 = vpack.c.b16 %v218, %v216
    %v261 = vpack.c.b16 %v219, %v217
    %v262 = vpack.c.b16 %v222, %v220
    %v263 = vpack.c.b16 %v223, %v221
    %v264 = vpack.c.b16 %v226, %v224
    %v265 = vpack.c.b16 %v227, %v225
    %v266 = vpack.c.b16 %v230, %v228
    %v267 = vpack.c.b16 %v231, %v229
    %v268 = vpack.c.b16 %v234, %v232
    %v269 = vpack.c.b16 %v235, %v233
    %v270 = vpack.c.b16 %v238, %v236
    %v271 = vpack.c.b16 %v239, %v237
    %v336 = vunpack.c.l.b16 %v112
    %v337 = vunpack.c.l.b16 %v113
    %v338 = vunpack.c.l.b16 %v114
    %v339 = vunpack.c.l.b16 %v115
    %v340 = vunpack.c.l.b16 %v116
    %v341 = vunpack.c.l.b16 %v117
    %v342 = vunpack.c.l.b16 %v118
    %v343 = vunpack.c.l.b16 %v119
    %v344 = vunpack.c.l.b16 %v120
    %v345 = vunpack.c.l.b16 %v121
    %v346 = vunpack.c.l.b16 %v122
    %v347 = vunpack.c.l.b16 %v123
    %v348 = vunpack.c.l.b16 %v124
    %v349 = vunpack.c.l.b16 %v125
    %v350 = vunpack.c.l.b16 %v126
    %v351 = vunpack.c.l.b16 %v127
    %v352 = vunpack.c.l.b16 %v128
    %v353 = vunpack.c.l.b16 %v129
    %v354 = vunpack.c.l.b16 %v130
    %v355 = vunpack.c.l.b16 %v131
    %v356 = vunpack.c.l.b16 %v132
    %v357 = vunpack.c.l.b16 %v133
    %v358 = vunpack.c.l.b16 %v134
    %v359 = vunpack.c.l.b16 %v135
    %v360 = vunpack.c.l.b16 %v136
    %v361 = vunpack.c.l.b16 %v137
    %v362 = vunpack.c.l.b16 %v138
    %v363 = vunpack.c.l.b16 %v139
    %v364 = vunpack.c.l.b16 %v140
    %v365 = vunpack.c.l.b16 %v141
    %v366 = vunpack.c.l.b16 %v142
    %v367 = vunpack.c.l.b16 %v143
    %v368 = vpack.c.b16 %v337, %v336
    %v369 = vpack.c.b16 %v339, %v338
    %v370 = vpack.c.b16 %v341, %v340
    %v371 = vpack.c.b16 %v343, %v342
    %v372 = vpack.c.b16 %v345, %v344
    %v373 = vpack.c.b16 %v347, %v346
    %v374 = vpack.c.b16 %v349, %v348
    %v375 = vpack.c.b16 %v351, %v350
    %v376 = vpack.c.b16 %v353, %v352
    %v377 = vpack.c.b16 %v355, %v354
    %v378 = vpack.c.b16 %v357, %v356
    %v379 = vpack.c.b16 %v359, %v358
    %v380 = vpack.c.b16 %v361, %v360
    %v381 = vpack.c.b16 %v363, %v362
    %v382 = vpack.c.b16 %v365, %v364
    %v383 = vpack.c.b16 %v367, %v366
    %400 = vmatpush.bf16.msra.mxu0 %v375
    %401 = vmatpush.bf16.msra.mxu0 %v374
    %402 = vmatpush.bf16.msra.mxu0 %v373
    %403 = vmatpush.bf16.msra.mxu0 %v372
    %404 = vmatpush.bf16.msra.mxu0 %v371
    %405 = vmatpush.bf16.msra.mxu0 %v370
    %406 = vmatpush.bf16.msra.mxu0 %v369
    %407 = vmatpush.bf16.msra.mxu0 %v368
    %408 = vmatmul.bf16.gmra.mxu0 %v240
    %v409 = vpop.f32.mrf.mxu0
    %v410 = vadd.f32 0.0, %v409
    %v411 = vpop.f32.mrf.mxu0
    %v412 = vadd.f32 0.0, %v411
    %413 = vmatmul.bf16.gmra.mxu0 %v242
    %v414 = vpop.f32.mrf.mxu0
    %v415 = vadd.f32 0.0, %v414
    %v416 = vpop.f32.mrf.mxu0
    %v417 = vadd.f32 0.0, %v416
    %418 = vmatmul.bf16.gmra.mxu0 %v244
    %v419 = vpop.f32.mrf.mxu0
    %v420 = vadd.f32 0.0, %v419
    %v421 = vpop.f32.mrf.mxu0
    %v422 = vadd.f32 0.0, %v421
    %423 = vmatmul.bf16.gmra.mxu0 %v246
    %v424 = vpop.f32.mrf.mxu0
    %v425 = vadd.f32 0.0, %v424
    %v426 = vpop.f32.mrf.mxu0
    %v427 = vadd.f32 0.0, %v426
    %428 = vmatmul.bf16.gmra.mxu0 %v248
    %v429 = vpop.f32.mrf.mxu0
    %v430 = vadd.f32 0.0, %v429
    %v431 = vpop.f32.mrf.mxu0
    %v432 = vadd.f32 0.0, %v431
    %433 = vmatmul.bf16.gmra.mxu0 %v250
    %v434 = vpop.f32.mrf.mxu0
    %v435 = vadd.f32 0.0, %v434
    %v436 = vpop.f32.mrf.mxu0
    %v437 = vadd.f32 0.0, %v436
    %438 = vmatmul.bf16.gmra.mxu0 %v252
    %v439 = vpop.f32.mrf.mxu0
    %v440 = vadd.f32 0.0, %v439
    %v441 = vpop.f32.mrf.mxu0
    %v442 = vadd.f32 0.0, %v441
    %443 = vmatmul.bf16.gmra.mxu0 %v254
    %v444 = vpop.f32.mrf.mxu0
    %v445 = vadd.f32 0.0, %v444
    %v446 = vpop.f32.mrf.mxu0
    %v447 = vadd.f32 0.0, %v446
    %448 = vmatmul.bf16.gmra.mxu0 %v256
    %v449 = vpop.f32.mrf.mxu0
    %v450 = vadd.f32 0.0, %v449
    %v451 = vpop.f32.mrf.mxu0
    %v452 = vadd.f32 0.0, %v451
    %453 = vmatmul.bf16.gmra.mxu0 %v258
    %v454 = vpop.f32.mrf.mxu0
    %v455 = vadd.f32 0.0, %v454
    %v456 = vpop.f32.mrf.mxu0
    %v457 = vadd.f32 0.0, %v456
    %458 = vmatmul.bf16.gmra.mxu0 %v260
    %v459 = vpop.f32.mrf.mxu0
    %v460 = vadd.f32 0.0, %v459
    %v461 = vpop.f32.mrf.mxu0
    %v462 = vadd.f32 0.0, %v461
    %463 = vmatmul.bf16.gmra.mxu0 %v262
    %v464 = vpop.f32.mrf.mxu0
    %v465 = vadd.f32 0.0, %v464
    %v466 = vpop.f32.mrf.mxu0
    %v467 = vadd.f32 0.0, %v466
    %468 = vmatmul.bf16.gmra.mxu0 %v264
    %v469 = vpop.f32.mrf.mxu0
    %v470 = vadd.f32 0.0, %v469
    %v471 = vpop.f32.mrf.mxu0
    %v472 = vadd.f32 0.0, %v471
    %473 = vmatmul.bf16.gmra.mxu0 %v266
    %v474 = vpop.f32.mrf.mxu0
    %v475 = vadd.f32 0.0, %v474
    %v476 = vpop.f32.mrf.mxu0
    %v477 = vadd.f32 0.0, %v476
    %478 = vmatmul.bf16.gmra.mxu0 %v268
    %v479 = vpop.f32.mrf.mxu0
    %v480 = vadd.f32 0.0, %v479
    %v481 = vpop.f32.mrf.mxu0
    %v482 = vadd.f32 0.0, %v481
    %483 = vmatmul.bf16.gmra.mxu0 %v270
    %v484 = vpop.f32.mrf.mxu0
    %v485 = vadd.f32 0.0, %v484
    %v486 = vpop.f32.mrf.mxu0
    %v487 = vadd.f32 0.0, %v486
    %488 = vdwg.mxu0
    %489 = vmatpush.bf16.msra.mxu0 %v383
    %490 = vmatpush.bf16.msra.mxu0 %v382
    %491 = vmatpush.bf16.msra.mxu0 %v381
    %492 = vmatpush.bf16.msra.mxu0 %v380
    %493 = vmatpush.bf16.msra.mxu0 %v379
    %494 = vmatpush.bf16.msra.mxu0 %v378
    %495 = vmatpush.bf16.msra.mxu0 %v377
    %496 = vmatpush.bf16.msra.mxu0 %v376
    %497 = vmatmul.bf16.gmra.mxu0 %v241
    %v498 = vpop.f32.mrf.mxu0
    %v499 = vadd.f32 %v410, %v498
    %v500 = vpop.f32.mrf.mxu0
    %v501 = vadd.f32 %v412, %v500
    %502 = vmatmul.bf16.gmra.mxu0 %v243
    %v503 = vpop.f32.mrf.mxu0
    %v504 = vadd.f32 %v415, %v503
    %v505 = vpop.f32.mrf.mxu0
    %v506 = vadd.f32 %v417, %v505
    %507 = vmatmul.bf16.gmra.mxu0 %v245
    %v508 = vpop.f32.mrf.mxu0
    %v509 = vadd.f32 %v420, %v508
    %v510 = vpop.f32.mrf.mxu0
    %v511 = vadd.f32 %v422, %v510
    %512 = vmatmul.bf16.gmra.mxu0 %v247
    %v513 = vpop.f32.mrf.mxu0
    %v514 = vadd.f32 %v425, %v513
    %v515 = vpop.f32.mrf.mxu0
    %v516 = vadd.f32 %v427, %v515
    %517 = vmatmul.bf16.gmra.mxu0 %v249
    %v518 = vpop.f32.mrf.mxu0
    %v519 = vadd.f32 %v430, %v518
    %v520 = vpop.f32.mrf.mxu0
    %v521 = vadd.f32 %v432, %v520
    %522 = vmatmul.bf16.gmra.mxu0 %v251
    %v523 = vpop.f32.mrf.mxu0
    %v524 = vadd.f32 %v435, %v523
    %v525 = vpop.f32.mrf.mxu0
    %v526 = vadd.f32 %v437, %v525
    %527 = vmatmul.bf16.gmra.mxu0 %v253
    %v528 = vpop.f32.mrf.mxu0
    %v529 = vadd.f32 %v440, %v528
    %v530 = vpop.f32.mrf.mxu0
    %v531 = vadd.f32 %v442, %v530
    %532 = vmatmul.bf16.gmra.mxu0 %v255
    %v533 = vpop.f32.mrf.mxu0
    %v534 = vadd.f32 %v445, %v533
    %v535 = vpop.f32.mrf.mxu0
    %v536 = vadd.f32 %v447, %v535
    %537 = vmatmul.bf16.gmra.mxu0 %v257
    %v538 = vpop.f32.mrf.mxu0
    %v539 = vadd.f32 %v450, %v538
    %v540 = vpop.f32.mrf.mxu0
    %v541 = vadd.f32 %v452, %v540
    %542 = vmatmul.bf16.gmra.mxu0 %v259
    %v543 = vpop.f32.mrf.mxu0
    %v544 = vadd.f32 %v455, %v543
    %v545 = vpop.f32.mrf.mxu0
    %v546 = vadd.f32 %v457, %v545
    %547 = vmatmul.bf16.gmra.mxu0 %v261
    %v548 = vpop.f32.mrf.mxu0
    %v549 = vadd.f32 %v460, %v548
    %v550 = vpop.f32.mrf.mxu0
    %v551 = vadd.f32 %v462, %v550
    %552 = vmatmul.bf16.gmra.mxu0 %v263
    %v553 = vpop.f32.mrf.mxu0
    %v554 = vadd.f32 %v465, %v553
    %v555 = vpop.f32.mrf.mxu0
    %v556 = vadd.f32 %v467, %v555
    %557 = vmatmul.bf16.gmra.mxu0 %v265
    %v558 = vpop.f32.mrf.mxu0
    %v559 = vadd.f32 %v470, %v558
    %v560 = vpop.f32.mrf.mxu0
    %v561 = vadd.f32 %v472, %v560
    %562 = vmatmul.bf16.gmra.mxu0 %v267
    %v563 = vpop.f32.mrf.mxu0
    %v564 = vadd.f32 %v475, %v563
    %v565 = vpop.f32.mrf.mxu0
    %v566 = vadd.f32 %v477, %v565
    %567 = vmatmul.bf16.gmra.mxu0 %v269
    %v568 = vpop.f32.mrf.mxu0
    %v569 = vadd.f32 %v480, %v568
    %v570 = vpop.f32.mrf.mxu0
    %v571 = vadd.f32 %v482, %v570
    %572 = vmatmul.bf16.gmra.mxu0 %v271
    %v573 = vpop.f32.mrf.mxu0
    %v574 = vadd.f32 %v485, %v573
    %v575 = vpop.f32.mrf.mxu0
    %v576 = vadd.f32 %v487, %v575
    %577 = vdwg.mxu0
    %579 = vset.pattern.permute.xlu0 0
    %580 = vperm.xlu0 %579, %v80
    %v581 = vpop.permute.xlu0 %580
    %584 = vset.pattern.permute.xlu0 0
    %585 = vperm.xlu0 %584, %v81
    %v586 = vpop.permute.xlu0 %585
    %589 = vset.pattern.permute.xlu0 0
    %590 = vperm.xlu0 %589, %v82
    %v591 = vpop.permute.xlu0 %590
    %594 = vset.pattern.permute.xlu0 0
    %595 = vperm.xlu0 %594, %v83
    %v596 = vpop.permute.xlu0 %595
    %599 = vset.pattern.permute.xlu0 0
    %600 = vperm.xlu0 %599, %v84
    %v601 = vpop.permute.xlu0 %600
    %604 = vset.pattern.permute.xlu0 0
    %605 = vperm.xlu0 %604, %v85
    %v606 = vpop.permute.xlu0 %605
    %609 = vset.pattern.permute.xlu0 0
    %610 = vperm.xlu0 %609, %v86
    %v611 = vpop.permute.xlu0 %610
    %614 = vset.pattern.permute.xlu0 0
    %615 = vperm.xlu0 %614, %v87
    %v616 = vpop.permute.xlu0 %615
    %619 = vset.pattern.permute.xlu0 0
    %620 = vperm.xlu0 %619, %v88
    %v621 = vpop.permute.xlu0 %620
    %624 = vset.pattern.permute.xlu0 0
    %625 = vperm.xlu0 %624, %v89
    %v626 = vpop.permute.xlu0 %625
    %629 = vset.pattern.permute.xlu0 0
    %630 = vperm.xlu0 %629, %v90
    %v631 = vpop.permute.xlu0 %630
    %634 = vset.pattern.permute.xlu0 0
    %635 = vperm.xlu0 %634, %v91
    %v636 = vpop.permute.xlu0 %635
    %639 = vset.pattern.permute.xlu0 0
    %640 = vperm.xlu0 %639, %v92
    %v641 = vpop.permute.xlu0 %640
    %644 = vset.pattern.permute.xlu0 0
    %645 = vperm.xlu0 %644, %v93
    %v646 = vpop.permute.xlu0 %645
    %649 = vset.pattern.permute.xlu0 0
    %650 = vperm.xlu0 %649, %v94
    %v651 = vpop.permute.xlu0 %650
    %654 = vset.pattern.permute.xlu0 0
    %655 = vperm.xlu0 %654, %v95
    %v656 = vpop.permute.xlu0 %655
    %659 = vset.pattern.permute.xlu0 0
    %660 = vperm.xlu0 %659, %v96
    %v661 = vpop.permute.xlu0 %660
    %664 = vset.pattern.permute.xlu0 0
    %665 = vperm.xlu0 %664, %v97
    %v666 = vpop.permute.xlu0 %665
    %669 = vset.pattern.permute.xlu0 0
    %670 = vperm.xlu0 %669, %v98
    %v671 = vpop.permute.xlu0 %670
    %674 = vset.pattern.permute.xlu0 0
    %675 = vperm.xlu0 %674, %v99
    %v676 = vpop.permute.xlu0 %675
    %679 = vset.pattern.permute.xlu0 0
    %680 = vperm.xlu0 %679, %v100
    %v681 = vpop.permute.xlu0 %680
    %684 = vset.pattern.permute.xlu0 0
    %685 = vperm.xlu0 %684, %v101
    %v686 = vpop.permute.xlu0 %685
    %689 = vset.pattern.permute.xlu0 0
    %690 = vperm.xlu0 %689, %v102
    %v691 = vpop.permute.xlu0 %690
    %694 = vset.pattern.permute.xlu0 0
    %695 = vperm.xlu0 %694, %v103
    %v696 = vpop.permute.xlu0 %695
    %699 = vset.pattern.permute.xlu0 0
    %700 = vperm.xlu0 %699, %v104
    %v701 = vpop.permute.xlu0 %700
    %704 = vset.pattern.permute.xlu0 0
    %705 = vperm.xlu0 %704, %v105
    %v706 = vpop.permute.xlu0 %705
    %709 = vset.pattern.permute.xlu0 0
    %710 = vperm.xlu0 %709, %v106
    %v711 = vpop.permute.xlu0 %710
    %714 = vset.pattern.permute.xlu0 0
    %715 = vperm.xlu0 %714, %v107
    %v716 = vpop.permute.xlu0 %715
    %719 = vset.pattern.permute.xlu0 0
    %720 = vperm.xlu0 %719, %v108
    %v721 = vpop.permute.xlu0 %720
    %724 = vset.pattern.permute.xlu0 0
    %725 = vperm.xlu0 %724, %v109
    %v726 = vpop.permute.xlu0 %725
    %729 = vset.pattern.permute.xlu0 0
    %730 = vperm.xlu0 %729, %v110
    %v731 = vpop.permute.xlu0 %730
    %734 = vset.pattern.permute.xlu0 0
    %735 = vperm.xlu0 %734, %v111
    %v736 = vpop.permute.xlu0 %735
    %v738 = vmul.f32 %v499, %v581
    %v739 = vmul.f32 %v501, %v586
    %v740 = vmul.f32 %v504, %v591
    %v741 = vmul.f32 %v506, %v596
    %v742 = vmul.f32 %v509, %v601
    %v743 = vmul.f32 %v511, %v606
    %v744 = vmul.f32 %v514, %v611
    %v745 = vmul.f32 %v516, %v616
    %v746 = vmul.f32 %v519, %v621
    %v747 = vmul.f32 %v521, %v626
    %v748 = vmul.f32 %v524, %v631
    %v749 = vmul.f32 %v526, %v636
    %v750 = vmul.f32 %v529, %v641
    %v751 = vmul.f32 %v531, %v646
    %v752 = vmul.f32 %v534, %v651
    %v753 = vmul.f32 %v536, %v656
    %v754 = vmul.f32 %v539, %v661
    %v755 = vmul.f32 %v541, %v666
    %v756 = vmul.f32 %v544, %v671
    %v757 = vmul.f32 %v546, %v676
    %v758 = vmul.f32 %v549, %v681
    %v759 = vmul.f32 %v551, %v686
    %v760 = vmul.f32 %v554, %v691
    %v761 = vmul.f32 %v556, %v696
    %v762 = vmul.f32 %v559, %v701
    %v763 = vmul.f32 %v561, %v706
    %v764 = vmul.f32 %v564, %v711
    %v765 = vmul.f32 %v566, %v716
    %v766 = vmul.f32 %v569, %v721
    %v767 = vmul.f32 %v571, %v726
    %v768 = vmul.f32 %v574, %v731
    %v769 = vmul.f32 %v576, %v736
    %v770 = vpack.c.bf16 %v739, %v738
    %v771 = vpack.c.bf16 %v741, %v740
    %v772 = vpack.c.bf16 %v743, %v742
    %v773 = vpack.c.bf16 %v745, %v744
    %v774 = vpack.c.bf16 %v747, %v746
    %v775 = vpack.c.bf16 %v749, %v748
    %v776 = vpack.c.bf16 %v751, %v750
    %v777 = vpack.c.bf16 %v753, %v752
    %v778 = vpack.c.bf16 %v755, %v754
    %v779 = vpack.c.bf16 %v757, %v756
    %v780 = vpack.c.bf16 %v759, %v758
    %v781 = vpack.c.bf16 %v761, %v760
    %v782 = vpack.c.bf16 %v763, %v762
    %v783 = vpack.c.bf16 %v765, %v764
    %v784 = vpack.c.bf16 %v767, %v766
    %v785 = vpack.c.bf16 %v769, %v768
    %v786 = vld [vmem:[%s3] sm:$0xff]
    %v787 = vld [vmem:[%s3 + $0x8] sm:$0xff]
    %v788 = vld [vmem:[%s3 + $0x10] sm:$0xff]
    %v789 = vld [vmem:[%s3 + $0x18] sm:$0xff]
    %v790 = vld [vmem:[%s3 + $0x20] sm:$0xff]
    %v791 = vld [vmem:[%s3 + $0x28] sm:$0xff]
    %v792 = vld [vmem:[%s3 + $0x30] sm:$0xff]
    %v793 = vld [vmem:[%s3 + $0x38] sm:$0xff]
    %v794 = vld [vmem:[%s3 + $0x40] sm:$0xff]
    %v795 = vld [vmem:[%s3 + $0x48] sm:$0xff]
    %v796 = vld [vmem:[%s3 + $0x50] sm:$0xff]
    %v797 = vld [vmem:[%s3 + $0x58] sm:$0xff]
    %v798 = vld [vmem:[%s3 + $0x60] sm:$0xff]
    %v799 = vld [vmem:[%s3 + $0x68] sm:$0xff]
    %v800 = vld [vmem:[%s3 + $0x70] sm:$0xff]
    %v801 = vld [vmem:[%s3 + $0x78] sm:$0xff]
    %v802 = vld [vmem:[%s3 + $0x80] sm:$0xff]
    %v803 = vld [vmem:[%s3 + $0x88] sm:$0xff]
    %v804 = vld [vmem:[%s3 + $0x90] sm:$0xff]
    %v805 = vld [vmem:[%s3 + $0x98] sm:$0xff]
    %v806 = vld [vmem:[%s3 + $0xa0] sm:$0xff]
    %v807 = vld [vmem:[%s3 + $0xa8] sm:$0xff]
    %v808 = vld [vmem:[%s3 + $0xb0] sm:$0xff]
    %v809 = vld [vmem:[%s3 + $0xb8] sm:$0xff]
    %v810 = vld [vmem:[%s3 + $0xc0] sm:$0xff]
    %v811 = vld [vmem:[%s3 + $0xc8] sm:$0xff]
    %v812 = vld [vmem:[%s3 + $0xd0] sm:$0xff]
    %v813 = vld [vmem:[%s3 + $0xd8] sm:$0xff]
    %v814 = vld [vmem:[%s3 + $0xe0] sm:$0xff]
    %v815 = vld [vmem:[%s3 + $0xe8] sm:$0xff]
    %v816 = vld [vmem:[%s3 + $0xf0] sm:$0xff]
    %v817 = vld [vmem:[%s3 + $0xf8] sm:$0xff]
    %v818 = vld [vmem:[%s4] sm:$0xff]
    %v819 = vld [vmem:[%s4 + $0x8] sm:$0xff]
    %v820 = vld [vmem:[%s4 + $0x10] sm:$0xff]
    %v821 = vld [vmem:[%s4 + $0x18] sm:$0xff]
    %v822 = vld [vmem:[%s4 + $0x20] sm:$0xff]
    %v823 = vld [vmem:[%s4 + $0x28] sm:$0xff]
    %v824 = vld [vmem:[%s4 + $0x30] sm:$0xff]
    %v825 = vld [vmem:[%s4 + $0x38] sm:$0xff]
    %v826 = vld [vmem:[%s4 + $0x40] sm:$0xff]
    %v827 = vld [vmem:[%s4 + $0x48] sm:$0xff]
    %v828 = vld [vmem:[%s4 + $0x50] sm:$0xff]
    %v829 = vld [vmem:[%s4 + $0x58] sm:$0xff]
    %v830 = vld [vmem:[%s4 + $0x60] sm:$0xff]
    %v831 = vld [vmem:[%s4 + $0x68] sm:$0xff]
    %v832 = vld [vmem:[%s4 + $0x70] sm:$0xff]
    %v833 = vld [vmem:[%s4 + $0x78] sm:$0xff]
    %v834 = vld [vmem:[%s4 + $0x80] sm:$0xff]
    %v835 = vld [vmem:[%s4 + $0x88] sm:$0xff]
    %v836 = vld [vmem:[%s4 + $0x90] sm:$0xff]
    %v837 = vld [vmem:[%s4 + $0x98] sm:$0xff]
    %v838 = vld [vmem:[%s4 + $0xa0] sm:$0xff]
    %v839 = vld [vmem:[%s4 + $0xa8] sm:$0xff]
    %v840 = vld [vmem:[%s4 + $0xb0] sm:$0xff]
    %v841 = vld [vmem:[%s4 + $0xb8] sm:$0xff]
    %v842 = vld [vmem:[%s4 + $0xc0] sm:$0xff]
    %v843 = vld [vmem:[%s4 + $0xc8] sm:$0xff]
    %v844 = vld [vmem:[%s4 + $0xd0] sm:$0xff]
    %v845 = vld [vmem:[%s4 + $0xd8] sm:$0xff]
    %v846 = vld [vmem:[%s4 + $0xe0] sm:$0xff]
    %v847 = vld [vmem:[%s4 + $0xe8] sm:$0xff]
    %v848 = vld [vmem:[%s4 + $0xf0] sm:$0xff]
    %v849 = vld [vmem:[%s4 + $0xf8] sm:$0xff]
    %v882 = vunpack.c.l.b16 %v818
    %v883 = vunpack.c.h.b16 %v818
    %v884 = vunpack.c.l.b16 %v819
    %v885 = vunpack.c.h.b16 %v819
    %v886 = vunpack.c.l.b16 %v820
    %v887 = vunpack.c.h.b16 %v820
    %v888 = vunpack.c.l.b16 %v821
    %v889 = vunpack.c.h.b16 %v821
    %v890 = vunpack.c.l.b16 %v822
    %v891 = vunpack.c.h.b16 %v822
    %v892 = vunpack.c.l.b16 %v823
    %v893 = vunpack.c.h.b16 %v823
    %v894 = vunpack.c.l.b16 %v824
    %v895 = vunpack.c.h.b16 %v824
    %v896 = vunpack.c.l.b16 %v825
    %v897 = vunpack.c.h.b16 %v825
    %v898 = vunpack.c.l.b16 %v826
    %v899 = vunpack.c.h.b16 %v826
    %v900 = vunpack.c.l.b16 %v827
    %v901 = vunpack.c.h.b16 %v827
    %v902 = vunpack.c.l.b16 %v828
    %v903 = vunpack.c.h.b16 %v828
    %v904 = vunpack.c.l.b16 %v829
    %v905 = vunpack.c.h.b16 %v829
    %v906 = vunpack.c.l.b16 %v830
    %v907 = vunpack.c.h.b16 %v830
    %v908 = vunpack.c.l.b16 %v831
    %v909 = vunpack.c.h.b16 %v831
    %v910 = vunpack.c.l.b16 %v832
    %v911 = vunpack.c.h.b16 %v832
    %v912 = vunpack.c.l.b16 %v833
    %v913 = vunpack.c.h.b16 %v833
    %v914 = vunpack.c.l.b16 %v834
    %v915 = vunpack.c.h.b16 %v834
    %v916 = vunpack.c.l.b16 %v835
    %v917 = vunpack.c.h.b16 %v835
    %v918 = vunpack.c.l.b16 %v836
    %v919 = vunpack.c.h.b16 %v836
    %v920 = vunpack.c.l.b16 %v837
    %v921 = vunpack.c.h.b16 %v837
    %v922 = vunpack.c.l.b16 %v838
    %v923 = vunpack.c.h.b16 %v838
    %v924 = vunpack.c.l.b16 %v839
    %v925 = vunpack.c.h.b16 %v839
    %v926 = vunpack.c.l.b16 %v840
    %v927 = vunpack.c.h.b16 %v840
    %v928 = vunpack.c.l.b16 %v841
    %v929 = vunpack.c.h.b16 %v841
    %v930 = vunpack.c.l.b16 %v842
    %v931 = vunpack.c.h.b16 %v842
    %v932 = vunpack.c.l.b16 %v843
    %v933 = vunpack.c.h.b16 %v843
    %v934 = vunpack.c.l.b16 %v844
    %v935 = vunpack.c.h.b16 %v844
    %v936 = vunpack.c.l.b16 %v845
    %v937 = vunpack.c.h.b16 %v845
    %v938 = vunpack.c.l.b16 %v846
    %v939 = vunpack.c.h.b16 %v846
    %v940 = vunpack.c.l.b16 %v847
    %v941 = vunpack.c.h.b16 %v847
    %v942 = vunpack.c.l.b16 %v848
    %v943 = vunpack.c.h.b16 %v848
    %v944 = vunpack.c.l.b16 %v849
    %v945 = vunpack.c.h.b16 %v849
    %v946 = vpack.c.b16 %v886, %v882
    %v947 = vpack.c.b16 %v887, %v883
    %v948 = vpack.c.b16 %v888, %v884
    %v949 = vpack.c.b16 %v889, %v885
    %v950 = vpack.c.b16 %v894, %v890
    %v951 = vpack.c.b16 %v895, %v891
    %v952 = vpack.c.b16 %v896, %v892
    %v953 = vpack.c.b16 %v897, %v893
    %v954 = vpack.c.b16 %v902, %v898
    %v955 = vpack.c.b16 %v903, %v899
    %v956 = vpack.c.b16 %v904, %v900
    %v957 = vpack.c.b16 %v905, %v901
    %v958 = vpack.c.b16 %v910, %v906
    %v959 = vpack.c.b16 %v911, %v907
    %v960 = vpack.c.b16 %v912, %v908
    %v961 = vpack.c.b16 %v913, %v909
    %v962 = vpack.c.b16 %v918, %v914
    %v963 = vpack.c.b16 %v919, %v915
    %v964 = vpack.c.b16 %v920, %v916
    %v965 = vpack.c.b16 %v921, %v917
    %v966 = vpack.c.b16 %v926, %v922
    %v967 = vpack.c.b16 %v927, %v923
    %v968 = vpack.c.b16 %v928, %v924
    %v969 = vpack.c.b16 %v929, %v925
    %v970 = vpack.c.b16 %v934, %v930
    %v971 = vpack.c.b16 %v935, %v931
    %v972 = vpack.c.b16 %v936, %v932
    %v973 = vpack.c.b16 %v937, %v933
    %v974 = vpack.c.b16 %v942, %v938
    %v975 = vpack.c.b16 %v943, %v939
    %v976 = vpack.c.b16 %v944, %v940
    %v977 = vpack.c.b16 %v945, %v941
    %1010 = vmatpush.bf16.msra.mxu0 %v974
    %1011 = vmatpush.bf16.msra.mxu0 %v970
    %1012 = vmatpush.bf16.msra.mxu0 %v966
    %1013 = vmatpush.bf16.msra.mxu0 %v962
    %1014 = vmatpush.bf16.msra.mxu0 %v958
    %1015 = vmatpush.bf16.msra.mxu0 %v954
    %1016 = vmatpush.bf16.msra.mxu0 %v950
    %1017 = vmatpush.bf16.msra.mxu0 %v946
    %1018 = vmatmul.bf16.gmra.mxu0 %v368
    %v1019 = vpop.f32.mrf.mxu0
    %v1020 = vadd.f32 0.0, %v1019
    %v1021 = vpop.f32.mrf.mxu0
    %v1022 = vadd.f32 0.0, %v1021
    %1023 = vmatmul.bf16.gmra.mxu0 %v369
    %v1024 = vpop.f32.mrf.mxu0
    %v1025 = vadd.f32 0.0, %v1024
    %v1026 = vpop.f32.mrf.mxu0
    %v1027 = vadd.f32 0.0, %v1026
    %1028 = vmatmul.bf16.gmra.mxu0 %v370
    %v1029 = vpop.f32.mrf.mxu0
    %v1030 = vadd.f32 0.0, %v1029
    %v1031 = vpop.f32.mrf.mxu0
    %v1032 = vadd.f32 0.0, %v1031
    %1033 = vmatmul.bf16.gmra.mxu0 %v371
    %v1034 = vpop.f32.mrf.mxu0
    %v1035 = vadd.f32 0.0, %v1034
    %v1036 = vpop.f32.mrf.mxu0
    %v1037 = vadd.f32 0.0, %v1036
    %1038 = vmatmul.bf16.gmra.mxu0 %v372
    %v1039 = vpop.f32.mrf.mxu0
    %v1040 = vadd.f32 0.0, %v1039
    %v1041 = vpop.f32.mrf.mxu0
    %v1042 = vadd.f32 0.0, %v1041
    %1043 = vmatmul.bf16.gmra.mxu0 %v373
    %v1044 = vpop.f32.mrf.mxu0
    %v1045 = vadd.f32 0.0, %v1044
    %v1046 = vpop.f32.mrf.mxu0
    %v1047 = vadd.f32 0.0, %v1046
    %1048 = vmatmul.bf16.gmra.mxu0 %v374
    %v1049 = vpop.f32.mrf.mxu0
    %v1050 = vadd.f32 0.0, %v1049
    %v1051 = vpop.f32.mrf.mxu0
    %v1052 = vadd.f32 0.0, %v1051
    %1053 = vmatmul.bf16.gmra.mxu0 %v375
    %v1054 = vpop.f32.mrf.mxu0
    %v1055 = vadd.f32 0.0, %v1054
    %v1056 = vpop.f32.mrf.mxu0
    %v1057 = vadd.f32 0.0, %v1056
    %1058 = vmatmul.bf16.gmra.mxu0 %v376
    %v1059 = vpop.f32.mrf.mxu0
    %v1060 = vadd.f32 0.0, %v1059
    %v1061 = vpop.f32.mrf.mxu0
    %v1062 = vadd.f32 0.0, %v1061
    %1063 = vmatmul.bf16.gmra.mxu0 %v377
    %v1064 = vpop.f32.mrf.mxu0
    %v1065 = vadd.f32 0.0, %v1064
    %v1066 = vpop.f32.mrf.mxu0
    %v1067 = vadd.f32 0.0, %v1066
    %1068 = vmatmul.bf16.gmra.mxu0 %v378
    %v1069 = vpop.f32.mrf.mxu0
    %v1070 = vadd.f32 0.0, %v1069
    %v1071 = vpop.f32.mrf.mxu0
    %v1072 = vadd.f32 0.0, %v1071
    %1073 = vmatmul.bf16.gmra.mxu0 %v379
    %v1074 = vpop.f32.mrf.mxu0
    %v1075 = vadd.f32 0.0, %v1074
    %v1076 = vpop.f32.mrf.mxu0
    %v1077 = vadd.f32 0.0, %v1076
    %1078 = vmatmul.bf16.gmra.mxu0 %v380
    %v1079 = vpop.f32.mrf.mxu0
    %v1080 = vadd.f32 0.0, %v1079
    %v1081 = vpop.f32.mrf.mxu0
    %v1082 = vadd.f32 0.0, %v1081
    %1083 = vmatmul.bf16.gmra.mxu0 %v381
    %v1084 = vpop.f32.mrf.mxu0
    %v1085 = vadd.f32 0.0, %v1084
    %v1086 = vpop.f32.mrf.mxu0
    %v1087 = vadd.f32 0.0, %v1086
    %1088 = vmatmul.bf16.gmra.mxu0 %v382
    %v1089 = vpop.f32.mrf.mxu0
    %v1090 = vadd.f32 0.0, %v1089
    %v1091 = vpop.f32.mrf.mxu0
    %v1092 = vadd.f32 0.0, %v1091
    %1093 = vmatmul.bf16.gmra.mxu0 %v383
    %v1094 = vpop.f32.mrf.mxu0
    %v1095 = vadd.f32 0.0, %v1094
    %v1096 = vpop.f32.mrf.mxu0
    %v1097 = vadd.f32 0.0, %v1096
    %1098 = vdwg.mxu0
    %1099 = vmatpush.bf16.msra.mxu0 %v975
    %1100 = vmatpush.bf16.msra.mxu0 %v971
    %1101 = vmatpush.bf16.msra.mxu0 %v967
    %1102 = vmatpush.bf16.msra.mxu0 %v963
    %1103 = vmatpush.bf16.msra.mxu0 %v959
    %1104 = vmatpush.bf16.msra.mxu0 %v955
    %1105 = vmatpush.bf16.msra.mxu0 %v951
    %1106 = vmatpush.bf16.msra.mxu0 %v947
    %1107 = vmatmul.bf16.gmra.mxu0 %v368
    %v1108 = vpop.f32.mrf.mxu0
    %v1109 = vadd.f32 0.0, %v1108
    %v1110 = vpop.f32.mrf.mxu0
    %v1111 = vadd.f32 0.0, %v1110
    %1112 = vmatmul.bf16.gmra.mxu0 %v369
    %v1113 = vpop.f32.mrf.mxu0
    %v1114 = vadd.f32 0.0, %v1113
    %v1115 = vpop.f32.mrf.mxu0
    %v1116 = vadd.f32 0.0, %v1115
    %1117 = vmatmul.bf16.gmra.mxu0 %v370
    %v1118 = vpop.f32.mrf.mxu0
    %v1119 = vadd.f32 0.0, %v1118
    %v1120 = vpop.f32.mrf.mxu0
    %v1121 = vadd.f32 0.0, %v1120
    %1122 = vmatmul.bf16.gmra.mxu0 %v371
    %v1123 = vpop.f32.mrf.mxu0
    %v1124 = vadd.f32 0.0, %v1123
    %v1125 = vpop.f32.mrf.mxu0
    %v1126 = vadd.f32 0.0, %v1125
    %1127 = vmatmul.bf16.gmra.mxu0 %v372
    %v1128 = vpop.f32.mrf.mxu0
    %v1129 = vadd.f32 0.0, %v1128
    %v1130 = vpop.f32.mrf.mxu0
    %v1131 = vadd.f32 0.0, %v1130
    %1132 = vmatmul.bf16.gmra.mxu0 %v373
    %v1133 = vpop.f32.mrf.mxu0
    %v1134 = vadd.f32 0.0, %v1133
    %v1135 = vpop.f32.mrf.mxu0
    %v1136 = vadd.f32 0.0, %v1135
    %1137 = vmatmul.bf16.gmra.mxu0 %v374
    %v1138 = vpop.f32.mrf.mxu0
    %v1139 = vadd.f32 0.0, %v1138
    %v1140 = vpop.f32.mrf.mxu0
    %v1141 = vadd.f32 0.0, %v1140
    %1142 = vmatmul.bf16.gmra.mxu0 %v375
    %v1143 = vpop.f32.mrf.mxu0
    %v1144 = vadd.f32 0.0, %v1143
    %v1145 = vpop.f32.mrf.mxu0
    %v1146 = vadd.f32 0.0, %v1145
    %1147 = vmatmul.bf16.gmra.mxu0 %v376
    %v1148 = vpop.f32.mrf.mxu0
    %v1149 = vadd.f32 0.0, %v1148
    %v1150 = vpop.f32.mrf.mxu0
    %v1151 = vadd.f32 0.0, %v1150
    %1152 = vmatmul.bf16.gmra.mxu0 %v377
    %v1153 = vpop.f32.mrf.mxu0
    %v1154 = vadd.f32 0.0, %v1153
    %v1155 = vpop.f32.mrf.mxu0
    %v1156 = vadd.f32 0.0, %v1155
    %1157 = vmatmul.bf16.gmra.mxu0 %v378
    %v1158 = vpop.f32.mrf.mxu0
    %v1159 = vadd.f32 0.0, %v1158
    %v1160 = vpop.f32.mrf.mxu0
    %v1161 = vadd.f32 0.0, %v1160
    %1162 = vmatmul.bf16.gmra.mxu0 %v379
    %v1163 = vpop.f32.mrf.mxu0
    %v1164 = vadd.f32 0.0, %v1163
    %v1165 = vpop.f32.mrf.mxu0
    %v1166 = vadd.f32 0.0, %v1165
    %1167 = vmatmul.bf16.gmra.mxu0 %v380
    %v1168 = vpop.f32.mrf.mxu0
    %v1169 = vadd.f32 0.0, %v1168
    %v1170 = vpop.f32.mrf.mxu0
    %v1171 = vadd.f32 0.0, %v1170
    %1172 = vmatmul.bf16.gmra.mxu0 %v381
    %v1173 = vpop.f32.mrf.mxu0
    %v1174 = vadd.f32 0.0, %v1173
    %v1175 = vpop.f32.mrf.mxu0
    %v1176 = vadd.f32 0.0, %v1175
    %1177 = vmatmul.bf16.gmra.mxu0 %v382
    %v1178 = vpop.f32.mrf.mxu0
    %v1179 = vadd.f32 0.0, %v1178
    %v1180 = vpop.f32.mrf.mxu0
    %v1181 = vadd.f32 0.0, %v1180
    %1182 = vmatmul.bf16.gmra.mxu0 %v383
    %v1183 = vpop.f32.mrf.mxu0
    %v1184 = vadd.f32 0.0, %v1183
    %v1185 = vpop.f32.mrf.mxu0
    %v1186 = vadd.f32 0.0, %v1185
    %1187 = vdwg.mxu0
    %1188 = vmatpush.bf16.msra.mxu0 %v976
    %1189 = vmatpush.bf16.msra.mxu0 %v972
    %1190 = vmatpush.bf16.msra.mxu0 %v968
    %1191 = vmatpush.bf16.msra.mxu0 %v964
    %1192 = vmatpush.bf16.msra.mxu0 %v960
    %1193 = vmatpush.bf16.msra.mxu0 %v956
    %1194 = vmatpush.bf16.msra.mxu0 %v952
    %1195 = vmatpush.bf16.msra.mxu0 %v948
    %1196 = vmatmul.bf16.gmra.mxu0 %v368
    %v1197 = vpop.f32.mrf.mxu0
    %v1198 = vadd.f32 0.0, %v1197
    %v1199 = vpop.f32.mrf.mxu0
    %v1200 = vadd.f32 0.0, %v1199
    %1201 = vmatmul.bf16.gmra.mxu0 %v369
    %v1202 = vpop.f32.mrf.mxu0
    %v1203 = vadd.f32 0.0, %v1202
    %v1204 = vpop.f32.mrf.mxu0
    %v1205 = vadd.f32 0.0, %v1204
    %1206 = vmatmul.bf16.gmra.mxu0 %v370
    %v1207 = vpop.f32.mrf.mxu0
    %v1208 = vadd.f32 0.0, %v1207
    %v1209 = vpop.f32.mrf.mxu0
    %v1210 = vadd.f32 0.0, %v1209
    %1211 = vmatmul.bf16.gmra.mxu0 %v371
    %v1212 = vpop.f32.mrf.mxu0
    %v1213 = vadd.f32 0.0, %v1212
    %v1214 = vpop.f32.mrf.mxu0
    %v1215 = vadd.f32 0.0, %v1214
    %1216 = vmatmul.bf16.gmra.mxu0 %v372
    %v1217 = vpop.f32.mrf.mxu0
    %v1218 = vadd.f32 0.0, %v1217
    %v1219 = vpop.f32.mrf.mxu0
    %v1220 = vadd.f32 0.0, %v1219
    %1221 = vmatmul.bf16.gmra.mxu0 %v373
    %v1222 = vpop.f32.mrf.mxu0
    %v1223 = vadd.f32 0.0, %v1222
    %v1224 = vpop.f32.mrf.mxu0
    %v1225 = vadd.f32 0.0, %v1224
    %1226 = vmatmul.bf16.gmra.mxu0 %v374
    %v1227 = vpop.f32.mrf.mxu0
    %v1228 = vadd.f32 0.0, %v1227
    %v1229 = vpop.f32.mrf.mxu0
    %v1230 = vadd.f32 0.0, %v1229
    %1231 = vmatmul.bf16.gmra.mxu0 %v375
    %v1232 = vpop.f32.mrf.mxu0
    %v1233 = vadd.f32 0.0, %v1232
    %v1234 = vpop.f32.mrf.mxu0
    %v1235 = vadd.f32 0.0, %v1234
    %1236 = vmatmul.bf16.gmra.mxu0 %v376
    %v1237 = vpop.f32.mrf.mxu0
    %v1238 = vadd.f32 0.0, %v1237
    %v1239 = vpop.f32.mrf.mxu0
    %v1240 = vadd.f32 0.0, %v1239
    %1241 = vmatmul.bf16.gmra.mxu0 %v377
    %v1242 = vpop.f32.mrf.mxu0
    %v1243 = vadd.f32 0.0, %v1242
    %v1244 = vpop.f32.mrf.mxu0
    %v1245 = vadd.f32 0.0, %v1244
    %1246 = vmatmul.bf16.gmra.mxu0 %v378
    %v1247 = vpop.f32.mrf.mxu0
    %v1248 = vadd.f32 0.0, %v1247
    %v1249 = vpop.f32.mrf.mxu0
    %v1250 = vadd.f32 0.0, %v1249
    %1251 = vmatmul.bf16.gmra.mxu0 %v379
    %v1252 = vpop.f32.mrf.mxu0
    %v1253 = vadd.f32 0.0, %v1252
    %v1254 = vpop.f32.mrf.mxu0
    %v1255 = vadd.f32 0.0, %v1254
    %1256 = vmatmul.bf16.gmra.mxu0 %v380
    %v1257 = vpop.f32.mrf.mxu0
    %v1258 = vadd.f32 0.0, %v1257
    %v1259 = vpop.f32.mrf.mxu0
    %v1260 = vadd.f32 0.0, %v1259
    %1261 = vmatmul.bf16.gmra.mxu0 %v381
    %v1262 = vpop.f32.mrf.mxu0
    %v1263 = vadd.f32 0.0, %v1262
    %v1264 = vpop.f32.mrf.mxu0
    %v1265 = vadd.f32 0.0, %v1264
    %1266 = vmatmul.bf16.gmra.mxu0 %v382
    %v1267 = vpop.f32.mrf.mxu0
    %v1268 = vadd.f32 0.0, %v1267
    %v1269 = vpop.f32.mrf.mxu0
    %v1270 = vadd.f32 0.0, %v1269
    %1271 = vmatmul.bf16.gmra.mxu0 %v383
    %v1272 = vpop.f32.mrf.mxu0
    %v1273 = vadd.f32 0.0, %v1272
    %v1274 = vpop.f32.mrf.mxu0
    %v1275 = vadd.f32 0.0, %v1274
    %1276 = vdwg.mxu0
    %1277 = vmatpush.bf16.msra.mxu0 %v977
    %1278 = vmatpush.bf16.msra.mxu0 %v973
    %1279 = vmatpush.bf16.msra.mxu0 %v969
    %1280 = vmatpush.bf16.msra.mxu0 %v965
    %1281 = vmatpush.bf16.msra.mxu0 %v961
    %1282 = vmatpush.bf16.msra.mxu0 %v957
    %1283 = vmatpush.bf16.msra.mxu0 %v953
    %1284 = vmatpush.bf16.msra.mxu0 %v949
    %1285 = vmatmul.bf16.gmra.mxu0 %v368
    %v1286 = vpop.f32.mrf.mxu0
    %v1287 = vadd.f32 0.0, %v1286
    %v1288 = vpop.f32.mrf.mxu0
    %v1289 = vadd.f32 0.0, %v1288
    %1290 = vmatmul.bf16.gmra.mxu0 %v369
    %v1291 = vpop.f32.mrf.mxu0
    %v1292 = vadd.f32 0.0, %v1291
    %v1293 = vpop.f32.mrf.mxu0
    %v1294 = vadd.f32 0.0, %v1293
    %1295 = vmatmul.bf16.gmra.mxu0 %v370
    %v1296 = vpop.f32.mrf.mxu0
    %v1297 = vadd.f32 0.0, %v1296
    %v1298 = vpop.f32.mrf.mxu0
    %v1299 = vadd.f32 0.0, %v1298
    %1300 = vmatmul.bf16.gmra.mxu0 %v371
    %v1301 = vpop.f32.mrf.mxu0
    %v1302 = vadd.f32 0.0, %v1301
    %v1303 = vpop.f32.mrf.mxu0
    %v1304 = vadd.f32 0.0, %v1303
    %1305 = vmatmul.bf16.gmra.mxu0 %v372
    %v1306 = vpop.f32.mrf.mxu0
    %v1307 = vadd.f32 0.0, %v1306
    %v1308 = vpop.f32.mrf.mxu0
    %v1309 = vadd.f32 0.0, %v1308
    %1310 = vmatmul.bf16.gmra.mxu0 %v373
    %v1311 = vpop.f32.mrf.mxu0
    %v1312 = vadd.f32 0.0, %v1311
    %v1313 = vpop.f32.mrf.mxu0
    %v1314 = vadd.f32 0.0, %v1313
    %1315 = vmatmul.bf16.gmra.mxu0 %v374
    %v1316 = vpop.f32.mrf.mxu0
    %v1317 = vadd.f32 0.0, %v1316
    %v1318 = vpop.f32.mrf.mxu0
    %v1319 = vadd.f32 0.0, %v1318
    %1320 = vmatmul.bf16.gmra.mxu0 %v375
    %v1321 = vpop.f32.mrf.mxu0
    %v1322 = vadd.f32 0.0, %v1321
    %v1323 = vpop.f32.mrf.mxu0
    %v1324 = vadd.f32 0.0, %v1323
    %1325 = vmatmul.bf16.gmra.mxu0 %v376
    %v1326 = vpop.f32.mrf.mxu0
    %v1327 = vadd.f32 0.0, %v1326
    %v1328 = vpop.f32.mrf.mxu0
    %v1329 = vadd.f32 0.0, %v1328
    %1330 = vmatmul.bf16.gmra.mxu0 %v377
    %v1331 = vpop.f32.mrf.mxu0
    %v1332 = vadd.f32 0.0, %v1331
    %v1333 = vpop.f32.mrf.mxu0
    %v1334 = vadd.f32 0.0, %v1333
    %1335 = vmatmul.bf16.gmra.mxu0 %v378
    %v1336 = vpop.f32.mrf.mxu0
    %v1337 = vadd.f32 0.0, %v1336
    %v1338 = vpop.f32.mrf.mxu0
    %v1339 = vadd.f32 0.0, %v1338
    %1340 = vmatmul.bf16.gmra.mxu0 %v379
    %v1341 = vpop.f32.mrf.mxu0
    %v1342 = vadd.f32 0.0, %v1341
    %v1343 = vpop.f32.mrf.mxu0
    %v1344 = vadd.f32 0.0, %v1343
    %1345 = vmatmul.bf16.gmra.mxu0 %v380
    %v1346 = vpop.f32.mrf.mxu0
    %v1347 = vadd.f32 0.0, %v1346
    %v1348 = vpop.f32.mrf.mxu0
    %v1349 = vadd.f32 0.0, %v1348
    %1350 = vmatmul.bf16.gmra.mxu0 %v381
    %v1351 = vpop.f32.mrf.mxu0
    %v1352 = vadd.f32 0.0, %v1351
    %v1353 = vpop.f32.mrf.mxu0
    %v1354 = vadd.f32 0.0, %v1353
    %1355 = vmatmul.bf16.gmra.mxu0 %v382
    %v1356 = vpop.f32.mrf.mxu0
    %v1357 = vadd.f32 0.0, %v1356
    %v1358 = vpop.f32.mrf.mxu0
    %v1359 = vadd.f32 0.0, %v1358
    %1360 = vmatmul.bf16.gmra.mxu0 %v383
    %v1361 = vpop.f32.mrf.mxu0
    %v1362 = vadd.f32 0.0, %v1361
    %v1363 = vpop.f32.mrf.mxu0
    %v1364 = vadd.f32 0.0, %v1363
    %1365 = vdwg.mxu0
    %v1398 = vunpack.c.l.b16 %v786
    %v1399 = vunpack.c.h.b16 %v786
    %v1400 = vunpack.c.l.b16 %v787
    %v1401 = vunpack.c.h.b16 %v787
    %v1402 = vunpack.c.l.b16 %v788
    %v1403 = vunpack.c.h.b16 %v788
    %v1404 = vunpack.c.l.b16 %v789
    %v1405 = vunpack.c.h.b16 %v789
    %v1406 = vunpack.c.l.b16 %v790
    %v1407 = vunpack.c.h.b16 %v790
    %v1408 = vunpack.c.l.b16 %v791
    %v1409 = vunpack.c.h.b16 %v791
    %v1410 = vunpack.c.l.b16 %v792
    %v1411 = vunpack.c.h.b16 %v792
    %v1412 = vunpack.c.l.b16 %v793
    %v1413 = vunpack.c.h.b16 %v793
    %v1414 = vunpack.c.l.b16 %v794
    %v1415 = vunpack.c.h.b16 %v794
    %v1416 = vunpack.c.l.b16 %v795
    %v1417 = vunpack.c.h.b16 %v795
    %v1418 = vunpack.c.l.b16 %v796
    %v1419 = vunpack.c.h.b16 %v796
    %v1420 = vunpack.c.l.b16 %v797
    %v1421 = vunpack.c.h.b16 %v797
    %v1422 = vunpack.c.l.b16 %v798
    %v1423 = vunpack.c.h.b16 %v798
    %v1424 = vunpack.c.l.b16 %v799
    %v1425 = vunpack.c.h.b16 %v799
    %v1426 = vunpack.c.l.b16 %v800
    %v1427 = vunpack.c.h.b16 %v800
    %v1428 = vunpack.c.l.b16 %v801
    %v1429 = vunpack.c.h.b16 %v801
    %v1430 = vunpack.c.l.b16 %v802
    %v1431 = vunpack.c.h.b16 %v802
    %v1432 = vunpack.c.l.b16 %v803
    %v1433 = vunpack.c.h.b16 %v803
    %v1434 = vunpack.c.l.b16 %v804
    %v1435 = vunpack.c.h.b16 %v804
    %v1436 = vunpack.c.l.b16 %v805
    %v1437 = vunpack.c.h.b16 %v805
    %v1438 = vunpack.c.l.b16 %v806
    %v1439 = vunpack.c.h.b16 %v806
    %v1440 = vunpack.c.l.b16 %v807
    %v1441 = vunpack.c.h.b16 %v807
    %v1442 = vunpack.c.l.b16 %v808
    %v1443 = vunpack.c.h.b16 %v808
    %v1444 = vunpack.c.l.b16 %v809
    %v1445 = vunpack.c.h.b16 %v809
    %v1446 = vunpack.c.l.b16 %v810
    %v1447 = vunpack.c.h.b16 %v810
    %v1448 = vunpack.c.l.b16 %v811
    %v1449 = vunpack.c.h.b16 %v811
    %v1450 = vunpack.c.l.b16 %v812
    %v1451 = vunpack.c.h.b16 %v812
    %v1452 = vunpack.c.l.b16 %v813
    %v1453 = vunpack.c.h.b16 %v813
    %v1454 = vunpack.c.l.b16 %v814
    %v1455 = vunpack.c.h.b16 %v814
    %v1456 = vunpack.c.l.b16 %v815
    %v1457 = vunpack.c.h.b16 %v815
    %v1458 = vunpack.c.l.b16 %v816
    %v1459 = vunpack.c.h.b16 %v816
    %v1460 = vunpack.c.l.b16 %v817
    %v1461 = vunpack.c.h.b16 %v817
    %v1462 = vpack.c.b16 %v1402, %v1398
    %v1463 = vpack.c.b16 %v1403, %v1399
    %v1464 = vpack.c.b16 %v1404, %v1400
    %v1465 = vpack.c.b16 %v1405, %v1401
    %v1466 = vpack.c.b16 %v1410, %v1406
    %v1467 = vpack.c.b16 %v1411, %v1407
    %v1468 = vpack.c.b16 %v1412, %v1408
    %v1469 = vpack.c.b16 %v1413, %v1409
    %v1470 = vpack.c.b16 %v1418, %v1414
    %v1471 = vpack.c.b16 %v1419, %v1415
    %v1472 = vpack.c.b16 %v1420, %v1416
    %v1473 = vpack.c.b16 %v1421, %v1417
    %v1474 = vpack.c.b16 %v1426, %v1422
    %v1475 = vpack.c.b16 %v1427, %v1423
    %v1476 = vpack.c.b16 %v1428, %v1424
    %v1477 = vpack.c.b16 %v1429, %v1425
    %v1478 = vpack.c.b16 %v1434, %v1430
    %v1479 = vpack.c.b16 %v1435, %v1431
    %v1480 = vpack.c.b16 %v1436, %v1432
    %v1481 = vpack.c.b16 %v1437, %v1433
    %v1482 = vpack.c.b16 %v1442, %v1438
    %v1483 = vpack.c.b16 %v1443, %v1439
    %v1484 = vpack.c.b16 %v1444, %v1440
    %v1485 = vpack.c.b16 %v1445, %v1441
    %v1486 = vpack.c.b16 %v1450, %v1446
    %v1487 = vpack.c.b16 %v1451, %v1447
    %v1488 = vpack.c.b16 %v1452, %v1448
    %v1489 = vpack.c.b16 %v1453, %v1449
    %v1490 = vpack.c.b16 %v1458, %v1454
    %v1491 = vpack.c.b16 %v1459, %v1455
    %v1492 = vpack.c.b16 %v1460, %v1456
    %v1493 = vpack.c.b16 %v1461, %v1457
    %1526 = vmatpush.bf16.msra.mxu0 %v1490
    %1527 = vmatpush.bf16.msra.mxu0 %v1486
    %1528 = vmatpush.bf16.msra.mxu0 %v1482
    %1529 = vmatpush.bf16.msra.mxu0 %v1478
    %1530 = vmatpush.bf16.msra.mxu0 %v1474
    %1531 = vmatpush.bf16.msra.mxu0 %v1470
    %1532 = vmatpush.bf16.msra.mxu0 %v1466
    %1533 = vmatpush.bf16.msra.mxu0 %v1462
    %1534 = vmatmul.bf16.gmra.mxu0 %v770
    %v1535 = vpop.f32.mrf.mxu0
    %v1536 = vadd.f32 %v1020, %v1535
    %v1537 = vpop.f32.mrf.mxu0
    %v1538 = vadd.f32 %v1022, %v1537
    %1539 = vmatmul.bf16.gmra.mxu0 %v771
    %v1540 = vpop.f32.mrf.mxu0
    %v1541 = vadd.f32 %v1025, %v1540
    %v1542 = vpop.f32.mrf.mxu0
    %v1543 = vadd.f32 %v1027, %v1542
    %1544 = vmatmul.bf16.gmra.mxu0 %v772
    %v1545 = vpop.f32.mrf.mxu0
    %v1546 = vadd.f32 %v1030, %v1545
    %v1547 = vpop.f32.mrf.mxu0
    %v1548 = vadd.f32 %v1032, %v1547
    %1549 = vmatmul.bf16.gmra.mxu0 %v773
    %v1550 = vpop.f32.mrf.mxu0
    %v1551 = vadd.f32 %v1035, %v1550
    %v1552 = vpop.f32.mrf.mxu0
    %v1553 = vadd.f32 %v1037, %v1552
    %1554 = vmatmul.bf16.gmra.mxu0 %v774
    %v1555 = vpop.f32.mrf.mxu0
    %v1556 = vadd.f32 %v1040, %v1555
    %v1557 = vpop.f32.mrf.mxu0
    %v1558 = vadd.f32 %v1042, %v1557
    %1559 = vmatmul.bf16.gmra.mxu0 %v775
    %v1560 = vpop.f32.mrf.mxu0
    %v1561 = vadd.f32 %v1045, %v1560
    %v1562 = vpop.f32.mrf.mxu0
    %v1563 = vadd.f32 %v1047, %v1562
    %1564 = vmatmul.bf16.gmra.mxu0 %v776
    %v1565 = vpop.f32.mrf.mxu0
    %v1566 = vadd.f32 %v1050, %v1565
    %v1567 = vpop.f32.mrf.mxu0
    %v1568 = vadd.f32 %v1052, %v1567
    %1569 = vmatmul.bf16.gmra.mxu0 %v777
    %v1570 = vpop.f32.mrf.mxu0
    %v1571 = vadd.f32 %v1055, %v1570
    %v1572 = vpop.f32.mrf.mxu0
    %v1573 = vadd.f32 %v1057, %v1572
    %1574 = vmatmul.bf16.gmra.mxu0 %v778
    %v1575 = vpop.f32.mrf.mxu0
    %v1576 = vadd.f32 %v1060, %v1575
    %v1577 = vpop.f32.mrf.mxu0
    %v1578 = vadd.f32 %v1062, %v1577
    %1579 = vmatmul.bf16.gmra.mxu0 %v779
    %v1580 = vpop.f32.mrf.mxu0
    %v1581 = vadd.f32 %v1065, %v1580
    %v1582 = vpop.f32.mrf.mxu0
    %v1583 = vadd.f32 %v1067, %v1582
    %1584 = vmatmul.bf16.gmra.mxu0 %v780
    %v1585 = vpop.f32.mrf.mxu0
    %v1586 = vadd.f32 %v1070, %v1585
    %v1587 = vpop.f32.mrf.mxu0
    %v1588 = vadd.f32 %v1072, %v1587
    %1589 = vmatmul.bf16.gmra.mxu0 %v781
    %v1590 = vpop.f32.mrf.mxu0
    %v1591 = vadd.f32 %v1075, %v1590
    %v1592 = vpop.f32.mrf.mxu0
    %v1593 = vadd.f32 %v1077, %v1592
    %1594 = vmatmul.bf16.gmra.mxu0 %v782
    %v1595 = vpop.f32.mrf.mxu0
    %v1596 = vadd.f32 %v1080, %v1595
    %v1597 = vpop.f32.mrf.mxu0
    %v1598 = vadd.f32 %v1082, %v1597
    %1599 = vmatmul.bf16.gmra.mxu0 %v783
    %v1600 = vpop.f32.mrf.mxu0
    %v1601 = vadd.f32 %v1085, %v1600
    %v1602 = vpop.f32.mrf.mxu0
    %v1603 = vadd.f32 %v1087, %v1602
    %1604 = vmatmul.bf16.gmra.mxu0 %v784
    %v1605 = vpop.f32.mrf.mxu0
    %v1606 = vadd.f32 %v1090, %v1605
    %v1607 = vpop.f32.mrf.mxu0
    %v1608 = vadd.f32 %v1092, %v1607
    %1609 = vmatmul.bf16.gmra.mxu0 %v785
    %v1610 = vpop.f32.mrf.mxu0
    %v1611 = vadd.f32 %v1095, %v1610
    %v1612 = vpop.f32.mrf.mxu0
    %v1613 = vadd.f32 %v1097, %v1612
    %1614 = vdwg.mxu0
    %1615 = vmatpush.bf16.msra.mxu0 %v1491
    %1616 = vmatpush.bf16.msra.mxu0 %v1487
    %1617 = vmatpush.bf16.msra.mxu0 %v1483
    %1618 = vmatpush.bf16.msra.mxu0 %v1479
    %1619 = vmatpush.bf16.msra.mxu0 %v1475
    %1620 = vmatpush.bf16.msra.mxu0 %v1471
    %1621 = vmatpush.bf16.msra.mxu0 %v1467
    %1622 = vmatpush.bf16.msra.mxu0 %v1463
    %1623 = vmatmul.bf16.gmra.mxu0 %v770
    %v1624 = vpop.f32.mrf.mxu0
    %v1625 = vadd.f32 %v1109, %v1624
    %v1626 = vpop.f32.mrf.mxu0
    %v1627 = vadd.f32 %v1111, %v1626
    %1628 = vmatmul.bf16.gmra.mxu0 %v771
    %v1629 = vpop.f32.mrf.mxu0
    %v1630 = vadd.f32 %v1114, %v1629
    %v1631 = vpop.f32.mrf.mxu0
    %v1632 = vadd.f32 %v1116, %v1631
    %1633 = vmatmul.bf16.gmra.mxu0 %v772
    %v1634 = vpop.f32.mrf.mxu0
    %v1635 = vadd.f32 %v1119, %v1634
    %v1636 = vpop.f32.mrf.mxu0
    %v1637 = vadd.f32 %v1121, %v1636
    %1638 = vmatmul.bf16.gmra.mxu0 %v773
    %v1639 = vpop.f32.mrf.mxu0
    %v1640 = vadd.f32 %v1124, %v1639
    %v1641 = vpop.f32.mrf.mxu0
    %v1642 = vadd.f32 %v1126, %v1641
    %1643 = vmatmul.bf16.gmra.mxu0 %v774
    %v1644 = vpop.f32.mrf.mxu0
    %v1645 = vadd.f32 %v1129, %v1644
    %v1646 = vpop.f32.mrf.mxu0
    %v1647 = vadd.f32 %v1131, %v1646
    %1648 = vmatmul.bf16.gmra.mxu0 %v775
    %v1649 = vpop.f32.mrf.mxu0
    %v1650 = vadd.f32 %v1134, %v1649
    %v1651 = vpop.f32.mrf.mxu0
    %v1652 = vadd.f32 %v1136, %v1651
    %1653 = vmatmul.bf16.gmra.mxu0 %v776
    %v1654 = vpop.f32.mrf.mxu0
    %v1655 = vadd.f32 %v1139, %v1654
    %v1656 = vpop.f32.mrf.mxu0
    %v1657 = vadd.f32 %v1141, %v1656
    %1658 = vmatmul.bf16.gmra.mxu0 %v777
    %v1659 = vpop.f32.mrf.mxu0
    %v1660 = vadd.f32 %v1144, %v1659
    %v1661 = vpop.f32.mrf.mxu0
    %v1662 = vadd.f32 %v1146, %v1661
    %1663 = vmatmul.bf16.gmra.mxu0 %v778
    %v1664 = vpop.f32.mrf.mxu0
    %v1665 = vadd.f32 %v1149, %v1664
    %v1666 = vpop.f32.mrf.mxu0
    %v1667 = vadd.f32 %v1151, %v1666
    %1668 = vmatmul.bf16.gmra.mxu0 %v779
    %v1669 = vpop.f32.mrf.mxu0
    %v1670 = vadd.f32 %v1154, %v1669
    %v1671 = vpop.f32.mrf.mxu0
    %v1672 = vadd.f32 %v1156, %v1671
    %1673 = vmatmul.bf16.gmra.mxu0 %v780
    %v1674 = vpop.f32.mrf.mxu0
    %v1675 = vadd.f32 %v1159, %v1674
    %v1676 = vpop.f32.mrf.mxu0
    %v1677 = vadd.f32 %v1161, %v1676
    %1678 = vmatmul.bf16.gmra.mxu0 %v781
    %v1679 = vpop.f32.mrf.mxu0
    %v1680 = vadd.f32 %v1164, %v1679
    %v1681 = vpop.f32.mrf.mxu0
    %v1682 = vadd.f32 %v1166, %v1681
    %1683 = vmatmul.bf16.gmra.mxu0 %v782
    %v1684 = vpop.f32.mrf.mxu0
    %v1685 = vadd.f32 %v1169, %v1684
    %v1686 = vpop.f32.mrf.mxu0
    %v1687 = vadd.f32 %v1171, %v1686
    %1688 = vmatmul.bf16.gmra.mxu0 %v783
    %v1689 = vpop.f32.mrf.mxu0
    %v1690 = vadd.f32 %v1174, %v1689
    %v1691 = vpop.f32.mrf.mxu0
    %v1692 = vadd.f32 %v1176, %v1691
    %1693 = vmatmul.bf16.gmra.mxu0 %v784
    %v1694 = vpop.f32.mrf.mxu0
    %v1695 = vadd.f32 %v1179, %v1694
    %v1696 = vpop.f32.mrf.mxu0
    %v1697 = vadd.f32 %v1181, %v1696
    %1698 = vmatmul.bf16.gmra.mxu0 %v785
    %v1699 = vpop.f32.mrf.mxu0
    %v1700 = vadd.f32 %v1184, %v1699
    %v1701 = vpop.f32.mrf.mxu0
    %v1702 = vadd.f32 %v1186, %v1701
    %1703 = vdwg.mxu0
    %1704 = vmatpush.bf16.msra.mxu0 %v1492
    %1705 = vmatpush.bf16.msra.mxu0 %v1488
    %1706 = vmatpush.bf16.msra.mxu0 %v1484
    %1707 = vmatpush.bf16.msra.mxu0 %v1480
    %1708 = vmatpush.bf16.msra.mxu0 %v1476
    %1709 = vmatpush.bf16.msra.mxu0 %v1472
    %1710 = vmatpush.bf16.msra.mxu0 %v1468
    %1711 = vmatpush.bf16.msra.mxu0 %v1464
    %1712 = vmatmul.bf16.gmra.mxu0 %v770
    %v1713 = vpop.f32.mrf.mxu0
    %v1714 = vadd.f32 %v1198, %v1713
    %v1715 = vpop.f32.mrf.mxu0
    %v1716 = vadd.f32 %v1200, %v1715
    %1717 = vmatmul.bf16.gmra.mxu0 %v771
    %v1718 = vpop.f32.mrf.mxu0
    %v1719 = vadd.f32 %v1203, %v1718
    %v1720 = vpop.f32.mrf.mxu0
    %v1721 = vadd.f32 %v1205, %v1720
    %1722 = vmatmul.bf16.gmra.mxu0 %v772
    %v1723 = vpop.f32.mrf.mxu0
    %v1724 = vadd.f32 %v1208, %v1723
    %v1725 = vpop.f32.mrf.mxu0
    %v1726 = vadd.f32 %v1210, %v1725
    %1727 = vmatmul.bf16.gmra.mxu0 %v773
    %v1728 = vpop.f32.mrf.mxu0
    %v1729 = vadd.f32 %v1213, %v1728
    %v1730 = vpop.f32.mrf.mxu0
    %v1731 = vadd.f32 %v1215, %v1730
    %1732 = vmatmul.bf16.gmra.mxu0 %v774
    %v1733 = vpop.f32.mrf.mxu0
    %v1734 = vadd.f32 %v1218, %v1733
    %v1735 = vpop.f32.mrf.mxu0
    %v1736 = vadd.f32 %v1220, %v1735
    %1737 = vmatmul.bf16.gmra.mxu0 %v775
    %v1738 = vpop.f32.mrf.mxu0
    %v1739 = vadd.f32 %v1223, %v1738
    %v1740 = vpop.f32.mrf.mxu0
    %v1741 = vadd.f32 %v1225, %v1740
    %1742 = vmatmul.bf16.gmra.mxu0 %v776
    %v1743 = vpop.f32.mrf.mxu0
    %v1744 = vadd.f32 %v1228, %v1743
    %v1745 = vpop.f32.mrf.mxu0
    %v1746 = vadd.f32 %v1230, %v1745
    %1747 = vmatmul.bf16.gmra.mxu0 %v777
    %v1748 = vpop.f32.mrf.mxu0
    %v1749 = vadd.f32 %v1233, %v1748
    %v1750 = vpop.f32.mrf.mxu0
    %v1751 = vadd.f32 %v1235, %v1750
    %1752 = vmatmul.bf16.gmra.mxu0 %v778
    %v1753 = vpop.f32.mrf.mxu0
    %v1754 = vadd.f32 %v1238, %v1753
    %v1755 = vpop.f32.mrf.mxu0
    %v1756 = vadd.f32 %v1240, %v1755
    %1757 = vmatmul.bf16.gmra.mxu0 %v779
    %v1758 = vpop.f32.mrf.mxu0
    %v1759 = vadd.f32 %v1243, %v1758
    %v1760 = vpop.f32.mrf.mxu0
    %v1761 = vadd.f32 %v1245, %v1760
    %1762 = vmatmul.bf16.gmra.mxu0 %v780
    %v1763 = vpop.f32.mrf.mxu0
    %v1764 = vadd.f32 %v1248, %v1763
    %v1765 = vpop.f32.mrf.mxu0
    %v1766 = vadd.f32 %v1250, %v1765
    %1767 = vmatmul.bf16.gmra.mxu0 %v781
    %v1768 = vpop.f32.mrf.mxu0
    %v1769 = vadd.f32 %v1253, %v1768
    %v1770 = vpop.f32.mrf.mxu0
    %v1771 = vadd.f32 %v1255, %v1770
    %1772 = vmatmul.bf16.gmra.mxu0 %v782
    %v1773 = vpop.f32.mrf.mxu0
    %v1774 = vadd.f32 %v1258, %v1773
    %v1775 = vpop.f32.mrf.mxu0
    %v1776 = vadd.f32 %v1260, %v1775
    %1777 = vmatmul.bf16.gmra.mxu0 %v783
    %v1778 = vpop.f32.mrf.mxu0
    %v1779 = vadd.f32 %v1263, %v1778
    %v1780 = vpop.f32.mrf.mxu0
    %v1781 = vadd.f32 %v1265, %v1780
    %1782 = vmatmul.bf16.gmra.mxu0 %v784
    %v1783 = vpop.f32.mrf.mxu0
    %v1784 = vadd.f32 %v1268, %v1783
    %v1785 = vpop.f32.mrf.mxu0
    %v1786 = vadd.f32 %v1270, %v1785
    %1787 = vmatmul.bf16.gmra.mxu0 %v785
    %v1788 = vpop.f32.mrf.mxu0
    %v1789 = vadd.f32 %v1273, %v1788
    %v1790 = vpop.f32.mrf.mxu0
    %v1791 = vadd.f32 %v1275, %v1790
    %1792 = vdwg.mxu0
    %1793 = vmatpush.bf16.msra.mxu0 %v1493
    %1794 = vmatpush.bf16.msra.mxu0 %v1489
    %1795 = vmatpush.bf16.msra.mxu0 %v1485
    %1796 = vmatpush.bf16.msra.mxu0 %v1481
    %1797 = vmatpush.bf16.msra.mxu0 %v1477
    %1798 = vmatpush.bf16.msra.mxu0 %v1473
    %1799 = vmatpush.bf16.msra.mxu0 %v1469
    %1800 = vmatpush.bf16.msra.mxu0 %v1465
    %1801 = vmatmul.bf16.gmra.mxu0 %v770
    %v1802 = vpop.f32.mrf.mxu0
    %v1803 = vadd.f32 %v1287, %v1802
    %v1804 = vpop.f32.mrf.mxu0
    %v1805 = vadd.f32 %v1289, %v1804
    %1806 = vmatmul.bf16.gmra.mxu0 %v771
    %v1807 = vpop.f32.mrf.mxu0
    %v1808 = vadd.f32 %v1292, %v1807
    %v1809 = vpop.f32.mrf.mxu0
    %v1810 = vadd.f32 %v1294, %v1809
    %1811 = vmatmul.bf16.gmra.mxu0 %v772
    %v1812 = vpop.f32.mrf.mxu0
    %v1813 = vadd.f32 %v1297, %v1812
    %v1814 = vpop.f32.mrf.mxu0
    %v1815 = vadd.f32 %v1299, %v1814
    %1816 = vmatmul.bf16.gmra.mxu0 %v773
    %v1817 = vpop.f32.mrf.mxu0
    %v1818 = vadd.f32 %v1302, %v1817
    %v1819 = vpop.f32.mrf.mxu0
    %v1820 = vadd.f32 %v1304, %v1819
    %1821 = vmatmul.bf16.gmra.mxu0 %v774
    %v1822 = vpop.f32.mrf.mxu0
    %v1823 = vadd.f32 %v1307, %v1822
    %v1824 = vpop.f32.mrf.mxu0
    %v1825 = vadd.f32 %v1309, %v1824
    %1826 = vmatmul.bf16.gmra.mxu0 %v775
    %v1827 = vpop.f32.mrf.mxu0
    %v1828 = vadd.f32 %v1312, %v1827
    %v1829 = vpop.f32.mrf.mxu0
    %v1830 = vadd.f32 %v1314, %v1829
    %1831 = vmatmul.bf16.gmra.mxu0 %v776
    %v1832 = vpop.f32.mrf.mxu0
    %v1833 = vadd.f32 %v1317, %v1832
    %v1834 = vpop.f32.mrf.mxu0
    %v1835 = vadd.f32 %v1319, %v1834
    %1836 = vmatmul.bf16.gmra.mxu0 %v777
    %v1837 = vpop.f32.mrf.mxu0
    %v1838 = vadd.f32 %v1322, %v1837
    %v1839 = vpop.f32.mrf.mxu0
    %v1840 = vadd.f32 %v1324, %v1839
    %1841 = vmatmul.bf16.gmra.mxu0 %v778
    %v1842 = vpop.f32.mrf.mxu0
    %v1843 = vadd.f32 %v1327, %v1842
    %v1844 = vpop.f32.mrf.mxu0
    %v1845 = vadd.f32 %v1329, %v1844
    %1846 = vmatmul.bf16.gmra.mxu0 %v779
    %v1847 = vpop.f32.mrf.mxu0
    %v1848 = vadd.f32 %v1332, %v1847
    %v1849 = vpop.f32.mrf.mxu0
    %v1850 = vadd.f32 %v1334, %v1849
    %1851 = vmatmul.bf16.gmra.mxu0 %v780
    %v1852 = vpop.f32.mrf.mxu0
    %v1853 = vadd.f32 %v1337, %v1852
    %v1854 = vpop.f32.mrf.mxu0
    %v1855 = vadd.f32 %v1339, %v1854
    %1856 = vmatmul.bf16.gmra.mxu0 %v781
    %v1857 = vpop.f32.mrf.mxu0
    %v1858 = vadd.f32 %v1342, %v1857
    %v1859 = vpop.f32.mrf.mxu0
    %v1860 = vadd.f32 %v1344, %v1859
    %1861 = vmatmul.bf16.gmra.mxu0 %v782
    %v1862 = vpop.f32.mrf.mxu0
    %v1863 = vadd.f32 %v1347, %v1862
    %v1864 = vpop.f32.mrf.mxu0
    %v1865 = vadd.f32 %v1349, %v1864
    %1866 = vmatmul.bf16.gmra.mxu0 %v783
    %v1867 = vpop.f32.mrf.mxu0
    %v1868 = vadd.f32 %v1352, %v1867
    %v1869 = vpop.f32.mrf.mxu0
    %v1870 = vadd.f32 %v1354, %v1869
    %1871 = vmatmul.bf16.gmra.mxu0 %v784
    %v1872 = vpop.f32.mrf.mxu0
    %v1873 = vadd.f32 %v1357, %v1872
    %v1874 = vpop.f32.mrf.mxu0
    %v1875 = vadd.f32 %v1359, %v1874
    %1876 = vmatmul.bf16.gmra.mxu0 %v785
    %v1877 = vpop.f32.mrf.mxu0
    %v1878 = vadd.f32 %v1362, %v1877
    %v1879 = vpop.f32.mrf.mxu0
    %v1880 = vadd.f32 %v1364, %v1879
    %1881 = vdwg.mxu0
    %v1882 = vld [vmem:[%s5] sm:$0xf]
    %v1883 = vunpack.c.l.bf16 %v1882
    %v1885 = vperm.slane %v1883, 0
    %v1886 = vperm.slane %v1883, 2
    %v1887 = vperm.slane %v1883, 4
    %v1888 = vperm.slane %v1883, 6
    %v1893 = vperm.slane %v1885, 0
    %v1894 = vperm.slane %v1886, 0
    %v1895 = vperm.slane %v1887, 0
    %v1896 = vperm.slane %v1888, 0
    %v1897 = vadd.f32 %v1536, %v1893
    %v1898 = vadd.f32 %v1625, %v1894
    %v1899 = vadd.f32 %v1714, %v1895
    %v1900 = vadd.f32 %v1803, %v1896
    %v1901 = vadd.f32 %v1538, %v1893
    %v1902 = vadd.f32 %v1627, %v1894
    %v1903 = vadd.f32 %v1716, %v1895
    %v1904 = vadd.f32 %v1805, %v1896
    %v1905 = vadd.f32 %v1541, %v1893
    %v1906 = vadd.f32 %v1630, %v1894
    %v1907 = vadd.f32 %v1719, %v1895
    %v1908 = vadd.f32 %v1808, %v1896
    %v1909 = vadd.f32 %v1543, %v1893
    %v1910 = vadd.f32 %v1632, %v1894
    %v1911 = vadd.f32 %v1721, %v1895
    %v1912 = vadd.f32 %v1810, %v1896
    %v1913 = vadd.f32 %v1546, %v1893
    %v1914 = vadd.f32 %v1635, %v1894
    %v1915 = vadd.f32 %v1724, %v1895
    %v1916 = vadd.f32 %v1813, %v1896
    %v1917 = vadd.f32 %v1548, %v1893
    %v1918 = vadd.f32 %v1637, %v1894
    %v1919 = vadd.f32 %v1726, %v1895
    %v1920 = vadd.f32 %v1815, %v1896
    %v1921 = vadd.f32 %v1551, %v1893
    %v1922 = vadd.f32 %v1640, %v1894
    %v1923 = vadd.f32 %v1729, %v1895
    %v1924 = vadd.f32 %v1818, %v1896
    %v1925 = vadd.f32 %v1553, %v1893
    %v1926 = vadd.f32 %v1642, %v1894
    %v1927 = vadd.f32 %v1731, %v1895
    %v1928 = vadd.f32 %v1820, %v1896
    %v1929 = vadd.f32 %v1556, %v1893
    %v1930 = vadd.f32 %v1645, %v1894
    %v1931 = vadd.f32 %v1734, %v1895
    %v1932 = vadd.f32 %v1823, %v1896
    %v1933 = vadd.f32 %v1558, %v1893
    %v1934 = vadd.f32 %v1647, %v1894
    %v1935 = vadd.f32 %v1736, %v1895
    %v1936 = vadd.f32 %v1825, %v1896
    %v1937 = vadd.f32 %v1561, %v1893
    %v1938 = vadd.f32 %v1650, %v1894
    %v1939 = vadd.f32 %v1739, %v1895
    %v1940 = vadd.f32 %v1828, %v1896
    %v1941 = vadd.f32 %v1563, %v1893
    %v1942 = vadd.f32 %v1652, %v1894
    %v1943 = vadd.f32 %v1741, %v1895
    %v1944 = vadd.f32 %v1830, %v1896
    %v1945 = vadd.f32 %v1566, %v1893
    %v1946 = vadd.f32 %v1655, %v1894
    %v1947 = vadd.f32 %v1744, %v1895
    %v1948 = vadd.f32 %v1833, %v1896
    %v1949 = vadd.f32 %v1568, %v1893
    %v1950 = vadd.f32 %v1657, %v1894
    %v1951 = vadd.f32 %v1746, %v1895
    %v1952 = vadd.f32 %v1835, %v1896
    %v1953 = vadd.f32 %v1571, %v1893
    %v1954 = vadd.f32 %v1660, %v1894
    %v1955 = vadd.f32 %v1749, %v1895
    %v1956 = vadd.f32 %v1838, %v1896
    %v1957 = vadd.f32 %v1573, %v1893
    %v1958 = vadd.f32 %v1662, %v1894
    %v1959 = vadd.f32 %v1751, %v1895
    %v1960 = vadd.f32 %v1840, %v1896
    %v1961 = vadd.f32 %v1576, %v1893
    %v1962 = vadd.f32 %v1665, %v1894
    %v1963 = vadd.f32 %v1754, %v1895
    %v1964 = vadd.f32 %v1843, %v1896
    %v1965 = vadd.f32 %v1578, %v1893
    %v1966 = vadd.f32 %v1667, %v1894
    %v1967 = vadd.f32 %v1756, %v1895
    %v1968 = vadd.f32 %v1845, %v1896
    %v1969 = vadd.f32 %v1581, %v1893
    %v1970 = vadd.f32 %v1670, %v1894
    %v1971 = vadd.f32 %v1759, %v1895
    %v1972 = vadd.f32 %v1848, %v1896
    %v1973 = vadd.f32 %v1583, %v1893
    %v1974 = vadd.f32 %v1672, %v1894
    %v1975 = vadd.f32 %v1761, %v1895
    %v1976 = vadd.f32 %v1850, %v1896
    %v1977 = vadd.f32 %v1586, %v1893
    %v1978 = vadd.f32 %v1675, %v1894
    %v1979 = vadd.f32 %v1764, %v1895
    %v1980 = vadd.f32 %v1853, %v1896
    %v1981 = vadd.f32 %v1588, %v1893
    %v1982 = vadd.f32 %v1677, %v1894
    %v1983 = vadd.f32 %v1766, %v1895
    %v1984 = vadd.f32 %v1855, %v1896
    %v1985 = vadd.f32 %v1591, %v1893
    %v1986 = vadd.f32 %v1680, %v1894
    %v1987 = vadd.f32 %v1769, %v1895
    %v1988 = vadd.f32 %v1858, %v1896
    %v1989 = vadd.f32 %v1593, %v1893
    %v1990 = vadd.f32 %v1682, %v1894
    %v1991 = vadd.f32 %v1771, %v1895
    %v1992 = vadd.f32 %v1860, %v1896
    %v1993 = vadd.f32 %v1596, %v1893
    %v1994 = vadd.f32 %v1685, %v1894
    %v1995 = vadd.f32 %v1774, %v1895
    %v1996 = vadd.f32 %v1863, %v1896
    %v1997 = vadd.f32 %v1598, %v1893
    %v1998 = vadd.f32 %v1687, %v1894
    %v1999 = vadd.f32 %v1776, %v1895
    %v2000 = vadd.f32 %v1865, %v1896
    %v2001 = vadd.f32 %v1601, %v1893
    %v2002 = vadd.f32 %v1690, %v1894
    %v2003 = vadd.f32 %v1779, %v1895
    %v2004 = vadd.f32 %v1868, %v1896
    %v2005 = vadd.f32 %v1603, %v1893
    %v2006 = vadd.f32 %v1692, %v1894
    %v2007 = vadd.f32 %v1781, %v1895
    %v2008 = vadd.f32 %v1870, %v1896
    %v2009 = vadd.f32 %v1606, %v1893
    %v2010 = vadd.f32 %v1695, %v1894
    %v2011 = vadd.f32 %v1784, %v1895
    %v2012 = vadd.f32 %v1873, %v1896
    %v2013 = vadd.f32 %v1608, %v1893
    %v2014 = vadd.f32 %v1697, %v1894
    %v2015 = vadd.f32 %v1786, %v1895
    %v2016 = vadd.f32 %v1875, %v1896
    %v2017 = vadd.f32 %v1611, %v1893
    %v2018 = vadd.f32 %v1700, %v1894
    %v2019 = vadd.f32 %v1789, %v1895
    %v2020 = vadd.f32 %v1878, %v1896
    %v2021 = vadd.f32 %v1613, %v1893
    %v2022 = vadd.f32 %v1702, %v1894
    %v2023 = vadd.f32 %v1791, %v1895
    %v2024 = vadd.f32 %v1880, %v1896
    %v2025 = vmax.f32 %v1897, 0.0
    %v2026 = vmax.f32 %v1898, 0.0
    %v2027 = vmax.f32 %v1899, 0.0
    %v2028 = vmax.f32 %v1900, 0.0
    %v2029 = vmax.f32 %v1901, 0.0
    %v2030 = vmax.f32 %v1902, 0.0
    %v2031 = vmax.f32 %v1903, 0.0
    %v2032 = vmax.f32 %v1904, 0.0
    %v2033 = vmax.f32 %v1905, 0.0
    %v2034 = vmax.f32 %v1906, 0.0
    %v2035 = vmax.f32 %v1907, 0.0
    %v2036 = vmax.f32 %v1908, 0.0
    %v2037 = vmax.f32 %v1909, 0.0
    %v2038 = vmax.f32 %v1910, 0.0
    %v2039 = vmax.f32 %v1911, 0.0
    %v2040 = vmax.f32 %v1912, 0.0
    %v2041 = vmax.f32 %v1913, 0.0
    %v2042 = vmax.f32 %v1914, 0.0
    %v2043 = vmax.f32 %v1915, 0.0
    %v2044 = vmax.f32 %v1916, 0.0
    %v2045 = vmax.f32 %v1917, 0.0
    %v2046 = vmax.f32 %v1918, 0.0
    %v2047 = vmax.f32 %v1919, 0.0
    %v2048 = vmax.f32 %v1920, 0.0
    %v2049 = vmax.f32 %v1921, 0.0
    %v2050 = vmax.f32 %v1922, 0.0
    %v2051 = vmax.f32 %v1923, 0.0
    %v2052 = vmax.f32 %v1924, 0.0
    %v2053 = vmax.f32 %v1925, 0.0
    %v2054 = vmax.f32 %v1926, 0.0
    %v2055 = vmax.f32 %v1927, 0.0
    %v2056 = vmax.f32 %v1928, 0.0
    %v2057 = vmax.f32 %v1929, 0.0
    %v2058 = vmax.f32 %v1930, 0.0
    %v2059 = vmax.f32 %v1931, 0.0
    %v2060 = vmax.f32 %v1932, 0.0
    %v2061 = vmax.f32 %v1933, 0.0
    %v2062 = vmax.f32 %v1934, 0.0
    %v2063 = vmax.f32 %v1935, 0.0
    %v2064 = vmax.f32 %v1936, 0.0
    %v2065 = vmax.f32 %v1937, 0.0
    %v2066 = vmax.f32 %v1938, 0.0
    %v2067 = vmax.f32 %v1939, 0.0
    %v2068 = vmax.f32 %v1940, 0.0
    %v2069 = vmax.f32 %v1941, 0.0
    %v2070 = vmax.f32 %v1942, 0.0
    %v2071 = vmax.f32 %v1943, 0.0
    %v2072 = vmax.f32 %v1944, 0.0
    %v2073 = vmax.f32 %v1945, 0.0
    %v2074 = vmax.f32 %v1946, 0.0
    %v2075 = vmax.f32 %v1947, 0.0
    %v2076 = vmax.f32 %v1948, 0.0
    %v2077 = vmax.f32 %v1949, 0.0
    %v2078 = vmax.f32 %v1950, 0.0
    %v2079 = vmax.f32 %v1951, 0.0
    %v2080 = vmax.f32 %v1952, 0.0
    %v2081 = vmax.f32 %v1953, 0.0
    %v2082 = vmax.f32 %v1954, 0.0
    %v2083 = vmax.f32 %v1955, 0.0
    %v2084 = vmax.f32 %v1956, 0.0
    %v2085 = vmax.f32 %v1957, 0.0
    %v2086 = vmax.f32 %v1958, 0.0
    %v2087 = vmax.f32 %v1959, 0.0
    %v2088 = vmax.f32 %v1960, 0.0
    %v2089 = vmax.f32 %v1961, 0.0
    %v2090 = vmax.f32 %v1962, 0.0
    %v2091 = vmax.f32 %v1963, 0.0
    %v2092 = vmax.f32 %v1964, 0.0
    %v2093 = vmax.f32 %v1965, 0.0
    %v2094 = vmax.f32 %v1966, 0.0
    %v2095 = vmax.f32 %v1967, 0.0
    %v2096 = vmax.f32 %v1968, 0.0
    %v2097 = vmax.f32 %v1969, 0.0
    %v2098 = vmax.f32 %v1970, 0.0
    %v2099 = vmax.f32 %v1971, 0.0
    %v2100 = vmax.f32 %v1972, 0.0
    %v2101 = vmax.f32 %v1973, 0.0
    %v2102 = vmax.f32 %v1974, 0.0
    %v2103 = vmax.f32 %v1975, 0.0
    %v2104 = vmax.f32 %v1976, 0.0
    %v2105 = vmax.f32 %v1977, 0.0
    %v2106 = vmax.f32 %v1978, 0.0
    %v2107 = vmax.f32 %v1979, 0.0
    %v2108 = vmax.f32 %v1980, 0.0
    %v2109 = vmax.f32 %v1981, 0.0
    %v2110 = vmax.f32 %v1982, 0.0
    %v2111 = vmax.f32 %v1983, 0.0
    %v2112 = vmax.f32 %v1984, 0.0
    %v2113 = vmax.f32 %v1985, 0.0
    %v2114 = vmax.f32 %v1986, 0.0
    %v2115 = vmax.f32 %v1987, 0.0
    %v2116 = vmax.f32 %v1988, 0.0
    %v2117 = vmax.f32 %v1989, 0.0
    %v2118 = vmax.f32 %v1990, 0.0
    %v2119 = vmax.f32 %v1991, 0.0
    %v2120 = vmax.f32 %v1992, 0.0
    %v2121 = vmax.f32 %v1993, 0.0
    %v2122 = vmax.f32 %v1994, 0.0
    %v2123 = vmax.f32 %v1995, 0.0
    %v2124 = vmax.f32 %v1996, 0.0
    %v2125 = vmax.f32 %v1997, 0.0
    %v2126 = vmax.f32 %v1998, 0.0
    %v2127 = vmax.f32 %v1999, 0.0
    %v2128 = vmax.f32 %v2000, 0.0
    %v2129 = vmax.f32 %v2001, 0.0
    %v2130 = vmax.f32 %v2002, 0.0
    %v2131 = vmax.f32 %v2003, 0.0
    %v2132 = vmax.f32 %v2004, 0.0
    %v2133 = vmax.f32 %v2005, 0.0
    %v2134 = vmax.f32 %v2006, 0.0
    %v2135 = vmax.f32 %v2007, 0.0
    %v2136 = vmax.f32 %v2008, 0.0
    %v2137 = vmax.f32 %v2009, 0.0
    %v2138 = vmax.f32 %v2010, 0.0
    %v2139 = vmax.f32 %v2011, 0.0
    %v2140 = vmax.f32 %v2012, 0.0
    %v2141 = vmax.f32 %v2013, 0.0
    %v2142 = vmax.f32 %v2014, 0.0
    %v2143 = vmax.f32 %v2015, 0.0
    %v2144 = vmax.f32 %v2016, 0.0
    %v2145 = vmax.f32 %v2017, 0.0
    %v2146 = vmax.f32 %v2018, 0.0
    %v2147 = vmax.f32 %v2019, 0.0
    %v2148 = vmax.f32 %v2020, 0.0
    %v2149 = vmax.f32 %v2021, 0.0
    %v2150 = vmax.f32 %v2022, 0.0
    %v2151 = vmax.f32 %v2023, 0.0
    %v2152 = vmax.f32 %v2024, 0.0
    %v2153 = vpack.c.bf16 %v2029, %v2025
    %v2154 = vpack.c.bf16 %v2030, %v2026
    %v2155 = vpack.c.bf16 %v2031, %v2027
    %v2156 = vpack.c.bf16 %v2032, %v2028
    %v2157 = vpack.c.bf16 %v2037, %v2033
    %v2158 = vpack.c.bf16 %v2038, %v2034
    %v2159 = vpack.c.bf16 %v2039, %v2035
    %v2160 = vpack.c.bf16 %v2040, %v2036
    %v2161 = vpack.c.bf16 %v2045, %v2041
    %v2162 = vpack.c.bf16 %v2046, %v2042
    %v2163 = vpack.c.bf16 %v2047, %v2043
    %v2164 = vpack.c.bf16 %v2048, %v2044
    %v2165 = vpack.c.bf16 %v2053, %v2049
    %v2166 = vpack.c.bf16 %v2054, %v2050
    %v2167 = vpack.c.bf16 %v2055, %v2051
    %v2168 = vpack.c.bf16 %v2056, %v2052
    %v2169 = vpack.c.bf16 %v2061, %v2057
    %v2170 = vpack.c.bf16 %v2062, %v2058
    %v2171 = vpack.c.bf16 %v2063, %v2059
    %v2172 = vpack.c.bf16 %v2064, %v2060
    %v2173 = vpack.c.bf16 %v2069, %v2065
    %v2174 = vpack.c.bf16 %v2070, %v2066
    %v2175 = vpack.c.bf16 %v2071, %v2067
    %v2176 = vpack.c.bf16 %v2072, %v2068
    %v2177 = vpack.c.bf16 %v2077, %v2073
    %v2178 = vpack.c.bf16 %v2078, %v2074
    %v2179 = vpack.c.bf16 %v2079, %v2075
    %v2180 = vpack.c.bf16 %v2080, %v2076
    %v2181 = vpack.c.bf16 %v2085, %v2081
    %v2182 = vpack.c.bf16 %v2086, %v2082
    %v2183 = vpack.c.bf16 %v2087, %v2083
    %v2184 = vpack.c.bf16 %v2088, %v2084
    %v2185 = vpack.c.bf16 %v2093, %v2089
    %v2186 = vpack.c.bf16 %v2094, %v2090
    %v2187 = vpack.c.bf16 %v2095, %v2091
    %v2188 = vpack.c.bf16 %v2096, %v2092
    %v2189 = vpack.c.bf16 %v2101, %v2097
    %v2190 = vpack.c.bf16 %v2102, %v2098
    %v2191 = vpack.c.bf16 %v2103, %v2099
    %v2192 = vpack.c.bf16 %v2104, %v2100
    %v2193 = vpack.c.bf16 %v2109, %v2105
    %v2194 = vpack.c.bf16 %v2110, %v2106
    %v2195 = vpack.c.bf16 %v2111, %v2107
    %v2196 = vpack.c.bf16 %v2112, %v2108
    %v2197 = vpack.c.bf16 %v2117, %v2113
    %v2198 = vpack.c.bf16 %v2118, %v2114
    %v2199 = vpack.c.bf16 %v2119, %v2115
    %v2200 = vpack.c.bf16 %v2120, %v2116
    %v2201 = vpack.c.bf16 %v2125, %v2121
    %v2202 = vpack.c.bf16 %v2126, %v2122
    %v2203 = vpack.c.bf16 %v2127, %v2123
    %v2204 = vpack.c.bf16 %v2128, %v2124
    %v2205 = vpack.c.bf16 %v2133, %v2129
    %v2206 = vpack.c.bf16 %v2134, %v2130
    %v2207 = vpack.c.bf16 %v2135, %v2131
    %v2208 = vpack.c.bf16 %v2136, %v2132
    %v2209 = vpack.c.bf16 %v2141, %v2137
    %v2210 = vpack.c.bf16 %v2142, %v2138
    %v2211 = vpack.c.bf16 %v2143, %v2139
    %v2212 = vpack.c.bf16 %v2144, %v2140
    %v2213 = vpack.c.bf16 %v2149, %v2145
    %v2214 = vpack.c.bf16 %v2150, %v2146
    %v2215 = vpack.c.bf16 %v2151, %v2147
    %v2216 = vpack.c.bf16 %v2152, %v2148
    %2217 = vmatpush.bf16.msra.mxu0 %v2181
    %2218 = vmatpush.bf16.msra.mxu0 %v2177
    %2219 = vmatpush.bf16.msra.mxu0 %v2173
    %2220 = vmatpush.bf16.msra.mxu0 %v2169
    %2221 = vmatpush.bf16.msra.mxu0 %v2165
    %2222 = vmatpush.bf16.msra.mxu0 %v2161
    %2223 = vmatpush.bf16.msra.mxu0 %v2157
    %2224 = vmatpush.bf16.msra.mxu0 %v2153
    %2225 = vmatmul.bf16.gmra.mxu0 %v240
    %v2226 = vpop.f32.mrf.mxu0
    %v2227 = vadd.f32 0.0, %v2226
    %v2228 = vpop.f32.mrf.mxu0
    %v2229 = vadd.f32 0.0, %v2228
    %2230 = vmatmul.bf16.gmra.mxu0 %v242
    %v2231 = vpop.f32.mrf.mxu0
    %v2232 = vadd.f32 0.0, %v2231
    %v2233 = vpop.f32.mrf.mxu0
    %v2234 = vadd.f32 0.0, %v2233
    %2235 = vmatmul.bf16.gmra.mxu0 %v244
    %v2236 = vpop.f32.mrf.mxu0
    %v2237 = vadd.f32 0.0, %v2236
    %v2238 = vpop.f32.mrf.mxu0
    %v2239 = vadd.f32 0.0, %v2238
    %2240 = vmatmul.bf16.gmra.mxu0 %v246
    %v2241 = vpop.f32.mrf.mxu0
    %v2242 = vadd.f32 0.0, %v2241
    %v2243 = vpop.f32.mrf.mxu0
    %v2244 = vadd.f32 0.0, %v2243
    %2245 = vmatmul.bf16.gmra.mxu0 %v248
    %v2246 = vpop.f32.mrf.mxu0
    %v2247 = vadd.f32 0.0, %v2246
    %v2248 = vpop.f32.mrf.mxu0
    %v2249 = vadd.f32 0.0, %v2248
    %2250 = vmatmul.bf16.gmra.mxu0 %v250
    %v2251 = vpop.f32.mrf.mxu0
    %v2252 = vadd.f32 0.0, %v2251
    %v2253 = vpop.f32.mrf.mxu0
    %v2254 = vadd.f32 0.0, %v2253
    %2255 = vmatmul.bf16.gmra.mxu0 %v252
    %v2256 = vpop.f32.mrf.mxu0
    %v2257 = vadd.f32 0.0, %v2256
    %v2258 = vpop.f32.mrf.mxu0
    %v2259 = vadd.f32 0.0, %v2258
    %2260 = vmatmul.bf16.gmra.mxu0 %v254
    %v2261 = vpop.f32.mrf.mxu0
    %v2262 = vadd.f32 0.0, %v2261
    %v2263 = vpop.f32.mrf.mxu0
    %v2264 = vadd.f32 0.0, %v2263
    %2265 = vmatmul.bf16.gmra.mxu0 %v256
    %v2266 = vpop.f32.mrf.mxu0
    %v2267 = vadd.f32 0.0, %v2266
    %v2268 = vpop.f32.mrf.mxu0
    %v2269 = vadd.f32 0.0, %v2268
    %2270 = vmatmul.bf16.gmra.mxu0 %v258
    %v2271 = vpop.f32.mrf.mxu0
    %v2272 = vadd.f32 0.0, %v2271
    %v2273 = vpop.f32.mrf.mxu0
    %v2274 = vadd.f32 0.0, %v2273
    %2275 = vmatmul.bf16.gmra.mxu0 %v260
    %v2276 = vpop.f32.mrf.mxu0
    %v2277 = vadd.f32 0.0, %v2276
    %v2278 = vpop.f32.mrf.mxu0
    %v2279 = vadd.f32 0.0, %v2278
    %2280 = vmatmul.bf16.gmra.mxu0 %v262
    %v2281 = vpop.f32.mrf.mxu0
    %v2282 = vadd.f32 0.0, %v2281
    %v2283 = vpop.f32.mrf.mxu0
    %v2284 = vadd.f32 0.0, %v2283
    %2285 = vmatmul.bf16.gmra.mxu0 %v264
    %v2286 = vpop.f32.mrf.mxu0
    %v2287 = vadd.f32 0.0, %v2286
    %v2288 = vpop.f32.mrf.mxu0
    %v2289 = vadd.f32 0.0, %v2288
    %2290 = vmatmul.bf16.gmra.mxu0 %v266
    %v2291 = vpop.f32.mrf.mxu0
    %v2292 = vadd.f32 0.0, %v2291
    %v2293 = vpop.f32.mrf.mxu0
    %v2294 = vadd.f32 0.0, %v2293
    %2295 = vmatmul.bf16.gmra.mxu0 %v268
    %v2296 = vpop.f32.mrf.mxu0
    %v2297 = vadd.f32 0.0, %v2296
    %v2298 = vpop.f32.mrf.mxu0
    %v2299 = vadd.f32 0.0, %v2298
    %2300 = vmatmul.bf16.gmra.mxu0 %v270
    %v2301 = vpop.f32.mrf.mxu0
    %v2302 = vadd.f32 0.0, %v2301
    %v2303 = vpop.f32.mrf.mxu0
    %v2304 = vadd.f32 0.0, %v2303
    %2305 = vdwg.mxu0
    %2306 = vmatpush.bf16.msra.mxu0 %v2213
    %2307 = vmatpush.bf16.msra.mxu0 %v2209
    %2308 = vmatpush.bf16.msra.mxu0 %v2205
    %2309 = vmatpush.bf16.msra.mxu0 %v2201
    %2310 = vmatpush.bf16.msra.mxu0 %v2197
    %2311 = vmatpush.bf16.msra.mxu0 %v2193
    %2312 = vmatpush.bf16.msra.mxu0 %v2189
    %2313 = vmatpush.bf16.msra.mxu0 %v2185
    %2314 = vmatmul.bf16.gmra.mxu0 %v241
    %v2315 = vpop.f32.mrf.mxu0
    %v2316 = vadd.f32 %v2227, %v2315
    %v2317 = vpop.f32.mrf.mxu0
    %v2318 = vadd.f32 %v2229, %v2317
    %2319 = vmatmul.bf16.gmra.mxu0 %v243
    %v2320 = vpop.f32.mrf.mxu0
    %v2321 = vadd.f32 %v2232, %v2320
    %v2322 = vpop.f32.mrf.mxu0
    %v2323 = vadd.f32 %v2234, %v2322
    %2324 = vmatmul.bf16.gmra.mxu0 %v245
    %v2325 = vpop.f32.mrf.mxu0
    %v2326 = vadd.f32 %v2237, %v2325
    %v2327 = vpop.f32.mrf.mxu0
    %v2328 = vadd.f32 %v2239, %v2327
    %2329 = vmatmul.bf16.gmra.mxu0 %v247
    %v2330 = vpop.f32.mrf.mxu0
    %v2331 = vadd.f32 %v2242, %v2330
    %v2332 = vpop.f32.mrf.mxu0
    %v2333 = vadd.f32 %v2244, %v2332
    %2334 = vmatmul.bf16.gmra.mxu0 %v249
    %v2335 = vpop.f32.mrf.mxu0
    %v2336 = vadd.f32 %v2247, %v2335
    %v2337 = vpop.f32.mrf.mxu0
    %v2338 = vadd.f32 %v2249, %v2337
    %2339 = vmatmul.bf16.gmra.mxu0 %v251
    %v2340 = vpop.f32.mrf.mxu0
    %v2341 = vadd.f32 %v2252, %v2340
    %v2342 = vpop.f32.mrf.mxu0
    %v2343 = vadd.f32 %v2254, %v2342
    %2344 = vmatmul.bf16.gmra.mxu0 %v253
    %v2345 = vpop.f32.mrf.mxu0
    %v2346 = vadd.f32 %v2257, %v2345
    %v2347 = vpop.f32.mrf.mxu0
    %v2348 = vadd.f32 %v2259, %v2347
    %2349 = vmatmul.bf16.gmra.mxu0 %v255
    %v2350 = vpop.f32.mrf.mxu0
    %v2351 = vadd.f32 %v2262, %v2350
    %v2352 = vpop.f32.mrf.mxu0
    %v2353 = vadd.f32 %v2264, %v2352
    %2354 = vmatmul.bf16.gmra.mxu0 %v257
    %v2355 = vpop.f32.mrf.mxu0
    %v2356 = vadd.f32 %v2267, %v2355
    %v2357 = vpop.f32.mrf.mxu0
    %v2358 = vadd.f32 %v2269, %v2357
    %2359 = vmatmul.bf16.gmra.mxu0 %v259
    %v2360 = vpop.f32.mrf.mxu0
    %v2361 = vadd.f32 %v2272, %v2360
    %v2362 = vpop.f32.mrf.mxu0
    %v2363 = vadd.f32 %v2274, %v2362
    %2364 = vmatmul.bf16.gmra.mxu0 %v261
    %v2365 = vpop.f32.mrf.mxu0
    %v2366 = vadd.f32 %v2277, %v2365
    %v2367 = vpop.f32.mrf.mxu0
    %v2368 = vadd.f32 %v2279, %v2367
    %2369 = vmatmul.bf16.gmra.mxu0 %v263
    %v2370 = vpop.f32.mrf.mxu0
    %v2371 = vadd.f32 %v2282, %v2370
    %v2372 = vpop.f32.mrf.mxu0
    %v2373 = vadd.f32 %v2284, %v2372
    %2374 = vmatmul.bf16.gmra.mxu0 %v265
    %v2375 = vpop.f32.mrf.mxu0
    %v2376 = vadd.f32 %v2287, %v2375
    %v2377 = vpop.f32.mrf.mxu0
    %v2378 = vadd.f32 %v2289, %v2377
    %2379 = vmatmul.bf16.gmra.mxu0 %v267
    %v2380 = vpop.f32.mrf.mxu0
    %v2381 = vadd.f32 %v2292, %v2380
    %v2382 = vpop.f32.mrf.mxu0
    %v2383 = vadd.f32 %v2294, %v2382
    %2384 = vmatmul.bf16.gmra.mxu0 %v269
    %v2385 = vpop.f32.mrf.mxu0
    %v2386 = vadd.f32 %v2297, %v2385
    %v2387 = vpop.f32.mrf.mxu0
    %v2388 = vadd.f32 %v2299, %v2387
    %2389 = vmatmul.bf16.gmra.mxu0 %v271
    %v2390 = vpop.f32.mrf.mxu0
    %v2391 = vadd.f32 %v2302, %v2390
    %v2392 = vpop.f32.mrf.mxu0
    %v2393 = vadd.f32 %v2304, %v2392
    %2394 = vdwg.mxu0
    %2395 = vmatpush.bf16.msra.mxu0 %v2182
    %2396 = vmatpush.bf16.msra.mxu0 %v2178
    %2397 = vmatpush.bf16.msra.mxu0 %v2174
    %2398 = vmatpush.bf16.msra.mxu0 %v2170
    %2399 = vmatpush.bf16.msra.mxu0 %v2166
    %2400 = vmatpush.bf16.msra.mxu0 %v2162
    %2401 = vmatpush.bf16.msra.mxu0 %v2158
    %2402 = vmatpush.bf16.msra.mxu0 %v2154
    %2403 = vmatmul.bf16.gmra.mxu0 %v240
    %v2404 = vpop.f32.mrf.mxu0
    %v2405 = vadd.f32 0.0, %v2404
    %v2406 = vpop.f32.mrf.mxu0
    %v2407 = vadd.f32 0.0, %v2406
    %2408 = vmatmul.bf16.gmra.mxu0 %v242
    %v2409 = vpop.f32.mrf.mxu0
    %v2410 = vadd.f32 0.0, %v2409
    %v2411 = vpop.f32.mrf.mxu0
    %v2412 = vadd.f32 0.0, %v2411
    %2413 = vmatmul.bf16.gmra.mxu0 %v244
    %v2414 = vpop.f32.mrf.mxu0
    %v2415 = vadd.f32 0.0, %v2414
    %v2416 = vpop.f32.mrf.mxu0
    %v2417 = vadd.f32 0.0, %v2416
    %2418 = vmatmul.bf16.gmra.mxu0 %v246
    %v2419 = vpop.f32.mrf.mxu0
    %v2420 = vadd.f32 0.0, %v2419
    %v2421 = vpop.f32.mrf.mxu0
    %v2422 = vadd.f32 0.0, %v2421
    %2423 = vmatmul.bf16.gmra.mxu0 %v248
    %v2424 = vpop.f32.mrf.mxu0
    %v2425 = vadd.f32 0.0, %v2424
    %v2426 = vpop.f32.mrf.mxu0
    %v2427 = vadd.f32 0.0, %v2426
    %2428 = vmatmul.bf16.gmra.mxu0 %v250
    %v2429 = vpop.f32.mrf.mxu0
    %v2430 = vadd.f32 0.0, %v2429
    %v2431 = vpop.f32.mrf.mxu0
    %v2432 = vadd.f32 0.0, %v2431
    %2433 = vmatmul.bf16.gmra.mxu0 %v252
    %v2434 = vpop.f32.mrf.mxu0
    %v2435 = vadd.f32 0.0, %v2434
    %v2436 = vpop.f32.mrf.mxu0
    %v2437 = vadd.f32 0.0, %v2436
    %2438 = vmatmul.bf16.gmra.mxu0 %v254
    %v2439 = vpop.f32.mrf.mxu0
    %v2440 = vadd.f32 0.0, %v2439
    %v2441 = vpop.f32.mrf.mxu0
    %v2442 = vadd.f32 0.0, %v2441
    %2443 = vmatmul.bf16.gmra.mxu0 %v256
    %v2444 = vpop.f32.mrf.mxu0
    %v2445 = vadd.f32 0.0, %v2444
    %v2446 = vpop.f32.mrf.mxu0
    %v2447 = vadd.f32 0.0, %v2446
    %2448 = vmatmul.bf16.gmra.mxu0 %v258
    %v2449 = vpop.f32.mrf.mxu0
    %v2450 = vadd.f32 0.0, %v2449
    %v2451 = vpop.f32.mrf.mxu0
    %v2452 = vadd.f32 0.0, %v2451
    %2453 = vmatmul.bf16.gmra.mxu0 %v260
    %v2454 = vpop.f32.mrf.mxu0
    %v2455 = vadd.f32 0.0, %v2454
    %v2456 = vpop.f32.mrf.mxu0
    %v2457 = vadd.f32 0.0, %v2456
    %2458 = vmatmul.bf16.gmra.mxu0 %v262
    %v2459 = vpop.f32.mrf.mxu0
    %v2460 = vadd.f32 0.0, %v2459
    %v2461 = vpop.f32.mrf.mxu0
    %v2462 = vadd.f32 0.0, %v2461
    %2463 = vmatmul.bf16.gmra.mxu0 %v264
    %v2464 = vpop.f32.mrf.mxu0
    %v2465 = vadd.f32 0.0, %v2464
    %v2466 = vpop.f32.mrf.mxu0
    %v2467 = vadd.f32 0.0, %v2466
    %2468 = vmatmul.bf16.gmra.mxu0 %v266
    %v2469 = vpop.f32.mrf.mxu0
    %v2470 = vadd.f32 0.0, %v2469
    %v2471 = vpop.f32.mrf.mxu0
    %v2472 = vadd.f32 0.0, %v2471
    %2473 = vmatmul.bf16.gmra.mxu0 %v268
    %v2474 = vpop.f32.mrf.mxu0
    %v2475 = vadd.f32 0.0, %v2474
    %v2476 = vpop.f32.mrf.mxu0
    %v2477 = vadd.f32 0.0, %v2476
    %2478 = vmatmul.bf16.gmra.mxu0 %v270
    %v2479 = vpop.f32.mrf.mxu0
    %v2480 = vadd.f32 0.0, %v2479
    %v2481 = vpop.f32.mrf.mxu0
    %v2482 = vadd.f32 0.0, %v2481
    %2483 = vdwg.mxu0
    %2484 = vmatpush.bf16.msra.mxu0 %v2214
    %2485 = vmatpush.bf16.msra.mxu0 %v2210
    %2486 = vmatpush.bf16.msra.mxu0 %v2206
    %2487 = vmatpush.bf16.msra.mxu0 %v2202
    %2488 = vmatpush.bf16.msra.mxu0 %v2198
    %2489 = vmatpush.bf16.msra.mxu0 %v2194
    %2490 = vmatpush.bf16.msra.mxu0 %v2190
    %2491 = vmatpush.bf16.msra.mxu0 %v2186
    %2492 = vmatmul.bf16.gmra.mxu0 %v241
    %v2493 = vpop.f32.mrf.mxu0
    %v2494 = vadd.f32 %v2405, %v2493
    %v2495 = vpop.f32.mrf.mxu0
    %v2496 = vadd.f32 %v2407, %v2495
    %2497 = vmatmul.bf16.gmra.mxu0 %v243
    %v2498 = vpop.f32.mrf.mxu0
    %v2499 = vadd.f32 %v2410, %v2498
    %v2500 = vpop.f32.mrf.mxu0
    %v2501 = vadd.f32 %v2412, %v2500
    %2502 = vmatmul.bf16.gmra.mxu0 %v245
    %v2503 = vpop.f32.mrf.mxu0
    %v2504 = vadd.f32 %v2415, %v2503
    %v2505 = vpop.f32.mrf.mxu0
    %v2506 = vadd.f32 %v2417, %v2505
    %2507 = vmatmul.bf16.gmra.mxu0 %v247
    %v2508 = vpop.f32.mrf.mxu0
    %v2509 = vadd.f32 %v2420, %v2508
    %v2510 = vpop.f32.mrf.mxu0
    %v2511 = vadd.f32 %v2422, %v2510
    %2512 = vmatmul.bf16.gmra.mxu0 %v249
    %v2513 = vpop.f32.mrf.mxu0
    %v2514 = vadd.f32 %v2425, %v2513
    %v2515 = vpop.f32.mrf.mxu0
    %v2516 = vadd.f32 %v2427, %v2515
    %2517 = vmatmul.bf16.gmra.mxu0 %v251
    %v2518 = vpop.f32.mrf.mxu0
    %v2519 = vadd.f32 %v2430, %v2518
    %v2520 = vpop.f32.mrf.mxu0
    %v2521 = vadd.f32 %v2432, %v2520
    %2522 = vmatmul.bf16.gmra.mxu0 %v253
    %v2523 = vpop.f32.mrf.mxu0
    %v2524 = vadd.f32 %v2435, %v2523
    %v2525 = vpop.f32.mrf.mxu0
    %v2526 = vadd.f32 %v2437, %v2525
    %2527 = vmatmul.bf16.gmra.mxu0 %v255
    %v2528 = vpop.f32.mrf.mxu0
    %v2529 = vadd.f32 %v2440, %v2528
    %v2530 = vpop.f32.mrf.mxu0
    %v2531 = vadd.f32 %v2442, %v2530
    %2532 = vmatmul.bf16.gmra.mxu0 %v257
    %v2533 = vpop.f32.mrf.mxu0
    %v2534 = vadd.f32 %v2445, %v2533
    %v2535 = vpop.f32.mrf.mxu0
    %v2536 = vadd.f32 %v2447, %v2535
    %2537 = vmatmul.bf16.gmra.mxu0 %v259
    %v2538 = vpop.f32.mrf.mxu0
    %v2539 = vadd.f32 %v2450, %v2538
    %v2540 = vpop.f32.mrf.mxu0
    %v2541 = vadd.f32 %v2452, %v2540
    %2542 = vmatmul.bf16.gmra.mxu0 %v261
    %v2543 = vpop.f32.mrf.mxu0
    %v2544 = vadd.f32 %v2455, %v2543
    %v2545 = vpop.f32.mrf.mxu0
    %v2546 = vadd.f32 %v2457, %v2545
    %2547 = vmatmul.bf16.gmra.mxu0 %v263
    %v2548 = vpop.f32.mrf.mxu0
    %v2549 = vadd.f32 %v2460, %v2548
    %v2550 = vpop.f32.mrf.mxu0
    %v2551 = vadd.f32 %v2462, %v2550
    %2552 = vmatmul.bf16.gmra.mxu0 %v265
    %v2553 = vpop.f32.mrf.mxu0
    %v2554 = vadd.f32 %v2465, %v2553
    %v2555 = vpop.f32.mrf.mxu0
    %v2556 = vadd.f32 %v2467, %v2555
    %2557 = vmatmul.bf16.gmra.mxu0 %v267
    %v2558 = vpop.f32.mrf.mxu0
    %v2559 = vadd.f32 %v2470, %v2558
    %v2560 = vpop.f32.mrf.mxu0
    %v2561 = vadd.f32 %v2472, %v2560
    %2562 = vmatmul.bf16.gmra.mxu0 %v269
    %v2563 = vpop.f32.mrf.mxu0
    %v2564 = vadd.f32 %v2475, %v2563
    %v2565 = vpop.f32.mrf.mxu0
    %v2566 = vadd.f32 %v2477, %v2565
    %2567 = vmatmul.bf16.gmra.mxu0 %v271
    %v2568 = vpop.f32.mrf.mxu0
    %v2569 = vadd.f32 %v2480, %v2568
    %v2570 = vpop.f32.mrf.mxu0
    %v2571 = vadd.f32 %v2482, %v2570
    %2572 = vdwg.mxu0
    %2573 = vmatpush.bf16.msra.mxu0 %v2183
    %2574 = vmatpush.bf16.msra.mxu0 %v2179
    %2575 = vmatpush.bf16.msra.mxu0 %v2175
    %2576 = vmatpush.bf16.msra.mxu0 %v2171
    %2577 = vmatpush.bf16.msra.mxu0 %v2167
    %2578 = vmatpush.bf16.msra.mxu0 %v2163
    %2579 = vmatpush.bf16.msra.mxu0 %v2159
    %2580 = vmatpush.bf16.msra.mxu0 %v2155
    %2581 = vmatmul.bf16.gmra.mxu0 %v240
    %v2582 = vpop.f32.mrf.mxu0
    %v2583 = vadd.f32 0.0, %v2582
    %v2584 = vpop.f32.mrf.mxu0
    %v2585 = vadd.f32 0.0, %v2584
    %2586 = vmatmul.bf16.gmra.mxu0 %v242
    %v2587 = vpop.f32.mrf.mxu0
    %v2588 = vadd.f32 0.0, %v2587
    %v2589 = vpop.f32.mrf.mxu0
    %v2590 = vadd.f32 0.0, %v2589
    %2591 = vmatmul.bf16.gmra.mxu0 %v244
    %v2592 = vpop.f32.mrf.mxu0
    %v2593 = vadd.f32 0.0, %v2592
    %v2594 = vpop.f32.mrf.mxu0
    %v2595 = vadd.f32 0.0, %v2594
    %2596 = vmatmul.bf16.gmra.mxu0 %v246
    %v2597 = vpop.f32.mrf.mxu0
    %v2598 = vadd.f32 0.0, %v2597
    %v2599 = vpop.f32.mrf.mxu0
    %v2600 = vadd.f32 0.0, %v2599
    %2601 = vmatmul.bf16.gmra.mxu0 %v248
    %v2602 = vpop.f32.mrf.mxu0
    %v2603 = vadd.f32 0.0, %v2602
    %v2604 = vpop.f32.mrf.mxu0
    %v2605 = vadd.f32 0.0, %v2604
    %2606 = vmatmul.bf16.gmra.mxu0 %v250
    %v2607 = vpop.f32.mrf.mxu0
    %v2608 = vadd.f32 0.0, %v2607
    %v2609 = vpop.f32.mrf.mxu0
    %v2610 = vadd.f32 0.0, %v2609
    %2611 = vmatmul.bf16.gmra.mxu0 %v252
    %v2612 = vpop.f32.mrf.mxu0
    %v2613 = vadd.f32 0.0, %v2612
    %v2614 = vpop.f32.mrf.mxu0
    %v2615 = vadd.f32 0.0, %v2614
    %2616 = vmatmul.bf16.gmra.mxu0 %v254
    %v2617 = vpop.f32.mrf.mxu0
    %v2618 = vadd.f32 0.0, %v2617
    %v2619 = vpop.f32.mrf.mxu0
    %v2620 = vadd.f32 0.0, %v2619
    %2621 = vmatmul.bf16.gmra.mxu0 %v256
    %v2622 = vpop.f32.mrf.mxu0
    %v2623 = vadd.f32 0.0, %v2622
    %v2624 = vpop.f32.mrf.mxu0
    %v2625 = vadd.f32 0.0, %v2624
    %2626 = vmatmul.bf16.gmra.mxu0 %v258
    %v2627 = vpop.f32.mrf.mxu0
    %v2628 = vadd.f32 0.0, %v2627
    %v2629 = vpop.f32.mrf.mxu0
    %v2630 = vadd.f32 0.0, %v2629
    %2631 = vmatmul.bf16.gmra.mxu0 %v260
    %v2632 = vpop.f32.mrf.mxu0
    %v2633 = vadd.f32 0.0, %v2632
    %v2634 = vpop.f32.mrf.mxu0
    %v2635 = vadd.f32 0.0, %v2634
    %2636 = vmatmul.bf16.gmra.mxu0 %v262
    %v2637 = vpop.f32.mrf.mxu0
    %v2638 = vadd.f32 0.0, %v2637
    %v2639 = vpop.f32.mrf.mxu0
    %v2640 = vadd.f32 0.0, %v2639
    %2641 = vmatmul.bf16.gmra.mxu0 %v264
    %v2642 = vpop.f32.mrf.mxu0
    %v2643 = vadd.f32 0.0, %v2642
    %v2644 = vpop.f32.mrf.mxu0
    %v2645 = vadd.f32 0.0, %v2644
    %2646 = vmatmul.bf16.gmra.mxu0 %v266
    %v2647 = vpop.f32.mrf.mxu0
    %v2648 = vadd.f32 0.0, %v2647
    %v2649 = vpop.f32.mrf.mxu0
    %v2650 = vadd.f32 0.0, %v2649
    %2651 = vmatmul.bf16.gmra.mxu0 %v268
    %v2652 = vpop.f32.mrf.mxu0
    %v2653 = vadd.f32 0.0, %v2652
    %v2654 = vpop.f32.mrf.mxu0
    %v2655 = vadd.f32 0.0, %v2654
    %2656 = vmatmul.bf16.gmra.mxu0 %v270
    %v2657 = vpop.f32.mrf.mxu0
    %v2658 = vadd.f32 0.0, %v2657
    %v2659 = vpop.f32.mrf.mxu0
    %v2660 = vadd.f32 0.0, %v2659
    %2661 = vdwg.mxu0
    %2662 = vmatpush.bf16.msra.mxu0 %v2215
    %2663 = vmatpush.bf16.msra.mxu0 %v2211
    %2664 = vmatpush.bf16.msra.mxu0 %v2207
    %2665 = vmatpush.bf16.msra.mxu0 %v2203
    %2666 = vmatpush.bf16.msra.mxu0 %v2199
    %2667 = vmatpush.bf16.msra.mxu0 %v2195
    %2668 = vmatpush.bf16.msra.mxu0 %v2191
    %2669 = vmatpush.bf16.msra.mxu0 %v2187
    %2670 = vmatmul.bf16.gmra.mxu0 %v241
    %v2671 = vpop.f32.mrf.mxu0
    %v2672 = vadd.f32 %v2583, %v2671
    %v2673 = vpop.f32.mrf.mxu0
    %v2674 = vadd.f32 %v2585, %v2673
    %2675 = vmatmul.bf16.gmra.mxu0 %v243
    %v2676 = vpop.f32.mrf.mxu0
    %v2677 = vadd.f32 %v2588, %v2676
    %v2678 = vpop.f32.mrf.mxu0
    %v2679 = vadd.f32 %v2590, %v2678
    %2680 = vmatmul.bf16.gmra.mxu0 %v245
    %v2681 = vpop.f32.mrf.mxu0
    %v2682 = vadd.f32 %v2593, %v2681
    %v2683 = vpop.f32.mrf.mxu0
    %v2684 = vadd.f32 %v2595, %v2683
    %2685 = vmatmul.bf16.gmra.mxu0 %v247
    %v2686 = vpop.f32.mrf.mxu0
    %v2687 = vadd.f32 %v2598, %v2686
    %v2688 = vpop.f32.mrf.mxu0
    %v2689 = vadd.f32 %v2600, %v2688
    %2690 = vmatmul.bf16.gmra.mxu0 %v249
    %v2691 = vpop.f32.mrf.mxu0
    %v2692 = vadd.f32 %v2603, %v2691
    %v2693 = vpop.f32.mrf.mxu0
    %v2694 = vadd.f32 %v2605, %v2693
    %2695 = vmatmul.bf16.gmra.mxu0 %v251
    %v2696 = vpop.f32.mrf.mxu0
    %v2697 = vadd.f32 %v2608, %v2696
    %v2698 = vpop.f32.mrf.mxu0
    %v2699 = vadd.f32 %v2610, %v2698
    %2700 = vmatmul.bf16.gmra.mxu0 %v253
    %v2701 = vpop.f32.mrf.mxu0
    %v2702 = vadd.f32 %v2613, %v2701
    %v2703 = vpop.f32.mrf.mxu0
    %v2704 = vadd.f32 %v2615, %v2703
    %2705 = vmatmul.bf16.gmra.mxu0 %v255
    %v2706 = vpop.f32.mrf.mxu0
    %v2707 = vadd.f32 %v2618, %v2706
    %v2708 = vpop.f32.mrf.mxu0
    %v2709 = vadd.f32 %v2620, %v2708
    %2710 = vmatmul.bf16.gmra.mxu0 %v257
    %v2711 = vpop.f32.mrf.mxu0
    %v2712 = vadd.f32 %v2623, %v2711
    %v2713 = vpop.f32.mrf.mxu0
    %v2714 = vadd.f32 %v2625, %v2713
    %2715 = vmatmul.bf16.gmra.mxu0 %v259
    %v2716 = vpop.f32.mrf.mxu0
    %v2717 = vadd.f32 %v2628, %v2716
    %v2718 = vpop.f32.mrf.mxu0
    %v2719 = vadd.f32 %v2630, %v2718
    %2720 = vmatmul.bf16.gmra.mxu0 %v261
    %v2721 = vpop.f32.mrf.mxu0
    %v2722 = vadd.f32 %v2633, %v2721
    %v2723 = vpop.f32.mrf.mxu0
    %v2724 = vadd.f32 %v2635, %v2723
    %2725 = vmatmul.bf16.gmra.mxu0 %v263
    %v2726 = vpop.f32.mrf.mxu0
    %v2727 = vadd.f32 %v2638, %v2726
    %v2728 = vpop.f32.mrf.mxu0
    %v2729 = vadd.f32 %v2640, %v2728
    %2730 = vmatmul.bf16.gmra.mxu0 %v265
    %v2731 = vpop.f32.mrf.mxu0
    %v2732 = vadd.f32 %v2643, %v2731
    %v2733 = vpop.f32.mrf.mxu0
    %v2734 = vadd.f32 %v2645, %v2733
    %2735 = vmatmul.bf16.gmra.mxu0 %v267
    %v2736 = vpop.f32.mrf.mxu0
    %v2737 = vadd.f32 %v2648, %v2736
    %v2738 = vpop.f32.mrf.mxu0
    %v2739 = vadd.f32 %v2650, %v2738
    %2740 = vmatmul.bf16.gmra.mxu0 %v269
    %v2741 = vpop.f32.mrf.mxu0
    %v2742 = vadd.f32 %v2653, %v2741
    %v2743 = vpop.f32.mrf.mxu0
    %v2744 = vadd.f32 %v2655, %v2743
    %2745 = vmatmul.bf16.gmra.mxu0 %v271
    %v2746 = vpop.f32.mrf.mxu0
    %v2747 = vadd.f32 %v2658, %v2746
    %v2748 = vpop.f32.mrf.mxu0
    %v2749 = vadd.f32 %v2660, %v2748
    %2750 = vdwg.mxu0
    %2751 = vmatpush.bf16.msra.mxu0 %v2184
    %2752 = vmatpush.bf16.msra.mxu0 %v2180
    %2753 = vmatpush.bf16.msra.mxu0 %v2176
    %2754 = vmatpush.bf16.msra.mxu0 %v2172
    %2755 = vmatpush.bf16.msra.mxu0 %v2168
    %2756 = vmatpush.bf16.msra.mxu0 %v2164
    %2757 = vmatpush.bf16.msra.mxu0 %v2160
    %2758 = vmatpush.bf16.msra.mxu0 %v2156
    %2759 = vmatmul.bf16.gmra.mxu0 %v240
    %v2760 = vpop.f32.mrf.mxu0
    %v2761 = vadd.f32 0.0, %v2760
    %v2762 = vpop.f32.mrf.mxu0
    %v2763 = vadd.f32 0.0, %v2762
    %2764 = vmatmul.bf16.gmra.mxu0 %v242
    %v2765 = vpop.f32.mrf.mxu0
    %v2766 = vadd.f32 0.0, %v2765
    %v2767 = vpop.f32.mrf.mxu0
    %v2768 = vadd.f32 0.0, %v2767
    %2769 = vmatmul.bf16.gmra.mxu0 %v244
    %v2770 = vpop.f32.mrf.mxu0
    %v2771 = vadd.f32 0.0, %v2770
    %v2772 = vpop.f32.mrf.mxu0
    %v2773 = vadd.f32 0.0, %v2772
    %2774 = vmatmul.bf16.gmra.mxu0 %v246
    %v2775 = vpop.f32.mrf.mxu0
    %v2776 = vadd.f32 0.0, %v2775
    %v2777 = vpop.f32.mrf.mxu0
    %v2778 = vadd.f32 0.0, %v2777
    %2779 = vmatmul.bf16.gmra.mxu0 %v248
    %v2780 = vpop.f32.mrf.mxu0
    %v2781 = vadd.f32 0.0, %v2780
    %v2782 = vpop.f32.mrf.mxu0
    %v2783 = vadd.f32 0.0, %v2782
    %2784 = vmatmul.bf16.gmra.mxu0 %v250
    %v2785 = vpop.f32.mrf.mxu0
    %v2786 = vadd.f32 0.0, %v2785
    %v2787 = vpop.f32.mrf.mxu0
    %v2788 = vadd.f32 0.0, %v2787
    %2789 = vmatmul.bf16.gmra.mxu0 %v252
    %v2790 = vpop.f32.mrf.mxu0
    %v2791 = vadd.f32 0.0, %v2790
    %v2792 = vpop.f32.mrf.mxu0
    %v2793 = vadd.f32 0.0, %v2792
    %2794 = vmatmul.bf16.gmra.mxu0 %v254
    %v2795 = vpop.f32.mrf.mxu0
    %v2796 = vadd.f32 0.0, %v2795
    %v2797 = vpop.f32.mrf.mxu0
    %v2798 = vadd.f32 0.0, %v2797
    %2799 = vmatmul.bf16.gmra.mxu0 %v256
    %v2800 = vpop.f32.mrf.mxu0
    %v2801 = vadd.f32 0.0, %v2800
    %v2802 = vpop.f32.mrf.mxu0
    %v2803 = vadd.f32 0.0, %v2802
    %2804 = vmatmul.bf16.gmra.mxu0 %v258
    %v2805 = vpop.f32.mrf.mxu0
    %v2806 = vadd.f32 0.0, %v2805
    %v2807 = vpop.f32.mrf.mxu0
    %v2808 = vadd.f32 0.0, %v2807
    %2809 = vmatmul.bf16.gmra.mxu0 %v260
    %v2810 = vpop.f32.mrf.mxu0
    %v2811 = vadd.f32 0.0, %v2810
    %v2812 = vpop.f32.mrf.mxu0
    %v2813 = vadd.f32 0.0, %v2812
    %2814 = vmatmul.bf16.gmra.mxu0 %v262
    %v2815 = vpop.f32.mrf.mxu0
    %v2816 = vadd.f32 0.0, %v2815
    %v2817 = vpop.f32.mrf.mxu0
    %v2818 = vadd.f32 0.0, %v2817
    %2819 = vmatmul.bf16.gmra.mxu0 %v264
    %v2820 = vpop.f32.mrf.mxu0
    %v2821 = vadd.f32 0.0, %v2820
    %v2822 = vpop.f32.mrf.mxu0
    %v2823 = vadd.f32 0.0, %v2822
    %2824 = vmatmul.bf16.gmra.mxu0 %v266
    %v2825 = vpop.f32.mrf.mxu0
    %v2826 = vadd.f32 0.0, %v2825
    %v2827 = vpop.f32.mrf.mxu0
    %v2828 = vadd.f32 0.0, %v2827
    %2829 = vmatmul.bf16.gmra.mxu0 %v268
    %v2830 = vpop.f32.mrf.mxu0
    %v2831 = vadd.f32 0.0, %v2830
    %v2832 = vpop.f32.mrf.mxu0
    %v2833 = vadd.f32 0.0, %v2832
    %2834 = vmatmul.bf16.gmra.mxu0 %v270
    %v2835 = vpop.f32.mrf.mxu0
    %v2836 = vadd.f32 0.0, %v2835
    %v2837 = vpop.f32.mrf.mxu0
    %v2838 = vadd.f32 0.0, %v2837
    %2839 = vdwg.mxu0
    %2840 = vmatpush.bf16.msra.mxu0 %v2216
    %2841 = vmatpush.bf16.msra.mxu0 %v2212
    %2842 = vmatpush.bf16.msra.mxu0 %v2208
    %2843 = vmatpush.bf16.msra.mxu0 %v2204
    %2844 = vmatpush.bf16.msra.mxu0 %v2200
    %2845 = vmatpush.bf16.msra.mxu0 %v2196
    %2846 = vmatpush.bf16.msra.mxu0 %v2192
    %2847 = vmatpush.bf16.msra.mxu0 %v2188
    %2848 = vmatmul.bf16.gmra.mxu0 %v241
    %v2849 = vpop.f32.mrf.mxu0
    %v2850 = vadd.f32 %v2761, %v2849
    %v2851 = vpop.f32.mrf.mxu0
    %v2852 = vadd.f32 %v2763, %v2851
    %2853 = vmatmul.bf16.gmra.mxu0 %v243
    %v2854 = vpop.f32.mrf.mxu0
    %v2855 = vadd.f32 %v2766, %v2854
    %v2856 = vpop.f32.mrf.mxu0
    %v2857 = vadd.f32 %v2768, %v2856
    %2858 = vmatmul.bf16.gmra.mxu0 %v245
    %v2859 = vpop.f32.mrf.mxu0
    %v2860 = vadd.f32 %v2771, %v2859
    %v2861 = vpop.f32.mrf.mxu0
    %v2862 = vadd.f32 %v2773, %v2861
    %2863 = vmatmul.bf16.gmra.mxu0 %v247
    %v2864 = vpop.f32.mrf.mxu0
    %v2865 = vadd.f32 %v2776, %v2864
    %v2866 = vpop.f32.mrf.mxu0
    %v2867 = vadd.f32 %v2778, %v2866
    %2868 = vmatmul.bf16.gmra.mxu0 %v249
    %v2869 = vpop.f32.mrf.mxu0
    %v2870 = vadd.f32 %v2781, %v2869
    %v2871 = vpop.f32.mrf.mxu0
    %v2872 = vadd.f32 %v2783, %v2871
    %2873 = vmatmul.bf16.gmra.mxu0 %v251
    %v2874 = vpop.f32.mrf.mxu0
    %v2875 = vadd.f32 %v2786, %v2874
    %v2876 = vpop.f32.mrf.mxu0
    %v2877 = vadd.f32 %v2788, %v2876
    %2878 = vmatmul.bf16.gmra.mxu0 %v253
    %v2879 = vpop.f32.mrf.mxu0
    %v2880 = vadd.f32 %v2791, %v2879
    %v2881 = vpop.f32.mrf.mxu0
    %v2882 = vadd.f32 %v2793, %v2881
    %2883 = vmatmul.bf16.gmra.mxu0 %v255
    %v2884 = vpop.f32.mrf.mxu0
    %v2885 = vadd.f32 %v2796, %v2884
    %v2886 = vpop.f32.mrf.mxu0
    %v2887 = vadd.f32 %v2798, %v2886
    %2888 = vmatmul.bf16.gmra.mxu0 %v257
    %v2889 = vpop.f32.mrf.mxu0
    %v2890 = vadd.f32 %v2801, %v2889
    %v2891 = vpop.f32.mrf.mxu0
    %v2892 = vadd.f32 %v2803, %v2891
    %2893 = vmatmul.bf16.gmra.mxu0 %v259
    %v2894 = vpop.f32.mrf.mxu0
    %v2895 = vadd.f32 %v2806, %v2894
    %v2896 = vpop.f32.mrf.mxu0
    %v2897 = vadd.f32 %v2808, %v2896
    %2898 = vmatmul.bf16.gmra.mxu0 %v261
    %v2899 = vpop.f32.mrf.mxu0
    %v2900 = vadd.f32 %v2811, %v2899
    %v2901 = vpop.f32.mrf.mxu0
    %v2902 = vadd.f32 %v2813, %v2901
    %2903 = vmatmul.bf16.gmra.mxu0 %v263
    %v2904 = vpop.f32.mrf.mxu0
    %v2905 = vadd.f32 %v2816, %v2904
    %v2906 = vpop.f32.mrf.mxu0
    %v2907 = vadd.f32 %v2818, %v2906
    %2908 = vmatmul.bf16.gmra.mxu0 %v265
    %v2909 = vpop.f32.mrf.mxu0
    %v2910 = vadd.f32 %v2821, %v2909
    %v2911 = vpop.f32.mrf.mxu0
    %v2912 = vadd.f32 %v2823, %v2911
    %2913 = vmatmul.bf16.gmra.mxu0 %v267
    %v2914 = vpop.f32.mrf.mxu0
    %v2915 = vadd.f32 %v2826, %v2914
    %v2916 = vpop.f32.mrf.mxu0
    %v2917 = vadd.f32 %v2828, %v2916
    %2918 = vmatmul.bf16.gmra.mxu0 %v269
    %v2919 = vpop.f32.mrf.mxu0
    %v2920 = vadd.f32 %v2831, %v2919
    %v2921 = vpop.f32.mrf.mxu0
    %v2922 = vadd.f32 %v2833, %v2921
    %2923 = vmatmul.bf16.gmra.mxu0 %v271
    %v2924 = vpop.f32.mrf.mxu0
    %v2925 = vadd.f32 %v2836, %v2924
    %v2926 = vpop.f32.mrf.mxu0
    %v2927 = vadd.f32 %v2838, %v2926
    %2928 = vdwg.mxu0
    %v2929 = vmul.f32 %v2316, %v581
    %v2930 = vmul.f32 %v2494, %v581
    %v2931 = vmul.f32 %v2672, %v581
    %v2932 = vmul.f32 %v2850, %v581
    %v2933 = vmul.f32 %v2318, %v586
    %v2934 = vmul.f32 %v2496, %v586
    %v2935 = vmul.f32 %v2674, %v586
    %v2936 = vmul.f32 %v2852, %v586
    %v2937 = vmul.f32 %v2321, %v591
    %v2938 = vmul.f32 %v2499, %v591
    %v2939 = vmul.f32 %v2677, %v591
    %v2940 = vmul.f32 %v2855, %v591
    %v2941 = vmul.f32 %v2323, %v596
    %v2942 = vmul.f32 %v2501, %v596
    %v2943 = vmul.f32 %v2679, %v596
    %v2944 = vmul.f32 %v2857, %v596
    %v2945 = vmul.f32 %v2326, %v601
    %v2946 = vmul.f32 %v2504, %v601
    %v2947 = vmul.f32 %v2682, %v601
    %v2948 = vmul.f32 %v2860, %v601
    %v2949 = vmul.f32 %v2328, %v606
    %v2950 = vmul.f32 %v2506, %v606
    %v2951 = vmul.f32 %v2684, %v606
    %v2952 = vmul.f32 %v2862, %v606
    %v2953 = vmul.f32 %v2331, %v611
    %v2954 = vmul.f32 %v2509, %v611
    %v2955 = vmul.f32 %v2687, %v611
    %v2956 = vmul.f32 %v2865, %v611
    %v2957 = vmul.f32 %v2333, %v616
    %v2958 = vmul.f32 %v2511, %v616
    %v2959 = vmul.f32 %v2689, %v616
    %v2960 = vmul.f32 %v2867, %v616
    %v2961 = vmul.f32 %v2336, %v621
    %v2962 = vmul.f32 %v2514, %v621
    %v2963 = vmul.f32 %v2692, %v621
    %v2964 = vmul.f32 %v2870, %v621
    %v2965 = vmul.f32 %v2338, %v626
    %v2966 = vmul.f32 %v2516, %v626
    %v2967 = vmul.f32 %v2694, %v626
    %v2968 = vmul.f32 %v2872, %v626
    %v2969 = vmul.f32 %v2341, %v631
    %v2970 = vmul.f32 %v2519, %v631
    %v2971 = vmul.f32 %v2697, %v631
    %v2972 = vmul.f32 %v2875, %v631
    %v2973 = vmul.f32 %v2343, %v636
    %v2974 = vmul.f32 %v2521, %v636
    %v2975 = vmul.f32 %v2699, %v636
    %v2976 = vmul.f32 %v2877, %v636
    %v2977 = vmul.f32 %v2346, %v641
    %v2978 = vmul.f32 %v2524, %v641
    %v2979 = vmul.f32 %v2702, %v641
    %v2980 = vmul.f32 %v2880, %v641
    %v2981 = vmul.f32 %v2348, %v646
    %v2982 = vmul.f32 %v2526, %v646
    %v2983 = vmul.f32 %v2704, %v646
    %v2984 = vmul.f32 %v2882, %v646
    %v2985 = vmul.f32 %v2351, %v651
    %v2986 = vmul.f32 %v2529, %v651
    %v2987 = vmul.f32 %v2707, %v651
    %v2988 = vmul.f32 %v2885, %v651
    %v2989 = vmul.f32 %v2353, %v656
    %v2990 = vmul.f32 %v2531, %v656
    %v2991 = vmul.f32 %v2709, %v656
    %v2992 = vmul.f32 %v2887, %v656
    %v2993 = vmul.f32 %v2356, %v661
    %v2994 = vmul.f32 %v2534, %v661
    %v2995 = vmul.f32 %v2712, %v661
    %v2996 = vmul.f32 %v2890, %v661
    %v2997 = vmul.f32 %v2358, %v666
    %v2998 = vmul.f32 %v2536, %v666
    %v2999 = vmul.f32 %v2714, %v666
    %v3000 = vmul.f32 %v2892, %v666
    %v3001 = vmul.f32 %v2361, %v671
    %v3002 = vmul.f32 %v2539, %v671
    %v3003 = vmul.f32 %v2717, %v671
    %v3004 = vmul.f32 %v2895, %v671
    %v3005 = vmul.f32 %v2363, %v676
    %v3006 = vmul.f32 %v2541, %v676
    %v3007 = vmul.f32 %v2719, %v676
    %v3008 = vmul.f32 %v2897, %v676
    %v3009 = vmul.f32 %v2366, %v681
    %v3010 = vmul.f32 %v2544, %v681
    %v3011 = vmul.f32 %v2722, %v681
    %v3012 = vmul.f32 %v2900, %v681
    %v3013 = vmul.f32 %v2368, %v686
    %v3014 = vmul.f32 %v2546, %v686
    %v3015 = vmul.f32 %v2724, %v686
    %v3016 = vmul.f32 %v2902, %v686
    %v3017 = vmul.f32 %v2371, %v691
    %v3018 = vmul.f32 %v2549, %v691
    %v3019 = vmul.f32 %v2727, %v691
    %v3020 = vmul.f32 %v2905, %v691
    %v3021 = vmul.f32 %v2373, %v696
    %v3022 = vmul.f32 %v2551, %v696
    %v3023 = vmul.f32 %v2729, %v696
    %v3024 = vmul.f32 %v2907, %v696
    %v3025 = vmul.f32 %v2376, %v701
    %v3026 = vmul.f32 %v2554, %v701
    %v3027 = vmul.f32 %v2732, %v701
    %v3028 = vmul.f32 %v2910, %v701
    %v3029 = vmul.f32 %v2378, %v706
    %v3030 = vmul.f32 %v2556, %v706
    %v3031 = vmul.f32 %v2734, %v706
    %v3032 = vmul.f32 %v2912, %v706
    %v3033 = vmul.f32 %v2381, %v711
    %v3034 = vmul.f32 %v2559, %v711
    %v3035 = vmul.f32 %v2737, %v711
    %v3036 = vmul.f32 %v2915, %v711
    %v3037 = vmul.f32 %v2383, %v716
    %v3038 = vmul.f32 %v2561, %v716
    %v3039 = vmul.f32 %v2739, %v716
    %v3040 = vmul.f32 %v2917, %v716
    %v3041 = vmul.f32 %v2386, %v721
    %v3042 = vmul.f32 %v2564, %v721
    %v3043 = vmul.f32 %v2742, %v721
    %v3044 = vmul.f32 %v2920, %v721
    %v3045 = vmul.f32 %v2388, %v726
    %v3046 = vmul.f32 %v2566, %v726
    %v3047 = vmul.f32 %v2744, %v726
    %v3048 = vmul.f32 %v2922, %v726
    %v3049 = vmul.f32 %v2391, %v731
    %v3050 = vmul.f32 %v2569, %v731
    %v3051 = vmul.f32 %v2747, %v731
    %v3052 = vmul.f32 %v2925, %v731
    %v3053 = vmul.f32 %v2393, %v736
    %v3054 = vmul.f32 %v2571, %v736
    %v3055 = vmul.f32 %v2749, %v736
    %v3056 = vmul.f32 %v2927, %v736
    %v3057 = vpack.c.bf16 %v2933, %v2929
    %v3058 = vpack.c.bf16 %v2934, %v2930
    %v3059 = vpack.c.bf16 %v2935, %v2931
    %v3060 = vpack.c.bf16 %v2936, %v2932
    %v3061 = vpack.c.bf16 %v2941, %v2937
    %v3062 = vpack.c.bf16 %v2942, %v2938
    %v3063 = vpack.c.bf16 %v2943, %v2939
    %v3064 = vpack.c.bf16 %v2944, %v2940
    %v3065 = vpack.c.bf16 %v2949, %v2945
    %v3066 = vpack.c.bf16 %v2950, %v2946
    %v3067 = vpack.c.bf16 %v2951, %v2947
    %v3068 = vpack.c.bf16 %v2952, %v2948
    %v3069 = vpack.c.bf16 %v2957, %v2953
    %v3070 = vpack.c.bf16 %v2958, %v2954
    %v3071 = vpack.c.bf16 %v2959, %v2955
    %v3072 = vpack.c.bf16 %v2960, %v2956
    %v3073 = vpack.c.bf16 %v2965, %v2961
    %v3074 = vpack.c.bf16 %v2966, %v2962
    %v3075 = vpack.c.bf16 %v2967, %v2963
    %v3076 = vpack.c.bf16 %v2968, %v2964
    %v3077 = vpack.c.bf16 %v2973, %v2969
    %v3078 = vpack.c.bf16 %v2974, %v2970
    %v3079 = vpack.c.bf16 %v2975, %v2971
    %v3080 = vpack.c.bf16 %v2976, %v2972
    %v3081 = vpack.c.bf16 %v2981, %v2977
    %v3082 = vpack.c.bf16 %v2982, %v2978
    %v3083 = vpack.c.bf16 %v2983, %v2979
    %v3084 = vpack.c.bf16 %v2984, %v2980
    %v3085 = vpack.c.bf16 %v2989, %v2985
    %v3086 = vpack.c.bf16 %v2990, %v2986
    %v3087 = vpack.c.bf16 %v2991, %v2987
    %v3088 = vpack.c.bf16 %v2992, %v2988
    %v3089 = vpack.c.bf16 %v2997, %v2993
    %v3090 = vpack.c.bf16 %v2998, %v2994
    %v3091 = vpack.c.bf16 %v2999, %v2995
    %v3092 = vpack.c.bf16 %v3000, %v2996
    %v3093 = vpack.c.bf16 %v3005, %v3001
    %v3094 = vpack.c.bf16 %v3006, %v3002
    %v3095 = vpack.c.bf16 %v3007, %v3003
    %v3096 = vpack.c.bf16 %v3008, %v3004
    %v3097 = vpack.c.bf16 %v3013, %v3009
    %v3098 = vpack.c.bf16 %v3014, %v3010
    %v3099 = vpack.c.bf16 %v3015, %v3011
    %v3100 = vpack.c.bf16 %v3016, %v3012
    %v3101 = vpack.c.bf16 %v3021, %v3017
    %v3102 = vpack.c.bf16 %v3022, %v3018
    %v3103 = vpack.c.bf16 %v3023, %v3019
    %v3104 = vpack.c.bf16 %v3024, %v3020
    %v3105 = vpack.c.bf16 %v3029, %v3025
    %v3106 = vpack.c.bf16 %v3030, %v3026
    %v3107 = vpack.c.bf16 %v3031, %v3027
    %v3108 = vpack.c.bf16 %v3032, %v3028
    %v3109 = vpack.c.bf16 %v3037, %v3033
    %v3110 = vpack.c.bf16 %v3038, %v3034
    %v3111 = vpack.c.bf16 %v3039, %v3035
    %v3112 = vpack.c.bf16 %v3040, %v3036
    %v3113 = vpack.c.bf16 %v3045, %v3041
    %v3114 = vpack.c.bf16 %v3046, %v3042
    %v3115 = vpack.c.bf16 %v3047, %v3043
    %v3116 = vpack.c.bf16 %v3048, %v3044
    %v3117 = vpack.c.bf16 %v3053, %v3049
    %v3118 = vpack.c.bf16 %v3054, %v3050
    %v3119 = vpack.c.bf16 %v3055, %v3051
    %v3120 = vpack.c.bf16 %v3056, %v3052
    %v3121 = vld [vmem:[%s6] sm:$0xf]
    %v3122 = vld [vmem:[%s6 + $0x4] sm:$0xf]
    %v3123 = vld [vmem:[%s6 + $0x8] sm:$0xf]
    %v3124 = vld [vmem:[%s6 + $0xc] sm:$0xf]
    %v3125 = vld [vmem:[%s6 + $0x10] sm:$0xf]
    %v3126 = vld [vmem:[%s6 + $0x14] sm:$0xf]
    %v3127 = vld [vmem:[%s6 + $0x18] sm:$0xf]
    %v3128 = vld [vmem:[%s6 + $0x1c] sm:$0xf]
    %v3129 = vld [vmem:[%s6 + $0x20] sm:$0xf]
    %v3130 = vld [vmem:[%s6 + $0x24] sm:$0xf]
    %v3131 = vld [vmem:[%s6 + $0x28] sm:$0xf]
    %v3132 = vld [vmem:[%s6 + $0x2c] sm:$0xf]
    %v3133 = vld [vmem:[%s6 + $0x30] sm:$0xf]
    %v3134 = vld [vmem:[%s6 + $0x34] sm:$0xf]
    %v3135 = vld [vmem:[%s6 + $0x38] sm:$0xf]
    %v3136 = vld [vmem:[%s6 + $0x3c] sm:$0xf]
    %v3137 = vld [vmem:[%s6 + $0x40] sm:$0xf]
    %v3138 = vld [vmem:[%s6 + $0x44] sm:$0xf]
    %v3139 = vld [vmem:[%s6 + $0x48] sm:$0xf]
    %v3140 = vld [vmem:[%s6 + $0x4c] sm:$0xf]
    %v3141 = vld [vmem:[%s6 + $0x50] sm:$0xf]
    %v3142 = vld [vmem:[%s6 + $0x54] sm:$0xf]
    %v3143 = vld [vmem:[%s6 + $0x58] sm:$0xf]
    %v3144 = vld [vmem:[%s6 + $0x5c] sm:$0xf]
    %v3145 = vld [vmem:[%s6 + $0x60] sm:$0xf]
    %v3146 = vld [vmem:[%s6 + $0x64] sm:$0xf]
    %v3147 = vld [vmem:[%s6 + $0x68] sm:$0xf]
    %v3148 = vld [vmem:[%s6 + $0x6c] sm:$0xf]
    %v3149 = vld [vmem:[%s6 + $0x70] sm:$0xf]
    %v3150 = vld [vmem:[%s6 + $0x74] sm:$0xf]
    %v3151 = vld [vmem:[%s6 + $0x78] sm:$0xf]
    %v3152 = vld [vmem:[%s6 + $0x7c] sm:$0xf]
    %v3153 = vld [vmem:[%s6 + $0x80] sm:$0xf]
    %v3154 = vld [vmem:[%s6 + $0x84] sm:$0xf]
    %v3155 = vld [vmem:[%s6 + $0x88] sm:$0xf]
    %v3156 = vld [vmem:[%s6 + $0x8c] sm:$0xf]
    %v3157 = vld [vmem:[%s6 + $0x90] sm:$0xf]
    %v3158 = vld [vmem:[%s6 + $0x94] sm:$0xf]
    %v3159 = vld [vmem:[%s6 + $0x98] sm:$0xf]
    %v3160 = vld [vmem:[%s6 + $0x9c] sm:$0xf]
    %v3161 = vld [vmem:[%s6 + $0xa0] sm:$0xf]
    %v3162 = vld [vmem:[%s6 + $0xa4] sm:$0xf]
    %v3163 = vld [vmem:[%s6 + $0xa8] sm:$0xf]
    %v3164 = vld [vmem:[%s6 + $0xac] sm:$0xf]
    %v3165 = vld [vmem:[%s6 + $0xb0] sm:$0xf]
    %v3166 = vld [vmem:[%s6 + $0xb4] sm:$0xf]
    %v3167 = vld [vmem:[%s6 + $0xb8] sm:$0xf]
    %v3168 = vld [vmem:[%s6 + $0xbc] sm:$0xf]
    %v3169 = vld [vmem:[%s6 + $0xc0] sm:$0xf]
    %v3170 = vld [vmem:[%s6 + $0xc4] sm:$0xf]
    %v3171 = vld [vmem:[%s6 + $0xc8] sm:$0xf]
    %v3172 = vld [vmem:[%s6 + $0xcc] sm:$0xf]
    %v3173 = vld [vmem:[%s6 + $0xd0] sm:$0xf]
    %v3174 = vld [vmem:[%s6 + $0xd4] sm:$0xf]
    %v3175 = vld [vmem:[%s6 + $0xd8] sm:$0xf]
    %v3176 = vld [vmem:[%s6 + $0xdc] sm:$0xf]
    %v3177 = vld [vmem:[%s6 + $0xe0] sm:$0xf]
    %v3178 = vld [vmem:[%s6 + $0xe4] sm:$0xf]
    %v3179 = vld [vmem:[%s6 + $0xe8] sm:$0xf]
    %v3180 = vld [vmem:[%s6 + $0xec] sm:$0xf]
    %v3181 = vld [vmem:[%s6 + $0xf0] sm:$0xf]
    %v3182 = vld [vmem:[%s6 + $0xf4] sm:$0xf]
    %v3183 = vld [vmem:[%s6 + $0xf8] sm:$0xf]
    %v3184 = vld [vmem:[%s6 + $0xfc] sm:$0xf]
    %v3185 = vld [vmem:[%s7] sm:$0xf]
    %v3186 = vld [vmem:[%s7 + $0x4] sm:$0xf]
    %v3187 = vld [vmem:[%s7 + $0x8] sm:$0xf]
    %v3188 = vld [vmem:[%s7 + $0xc] sm:$0xf]
    %v3189 = vld [vmem:[%s7 + $0x10] sm:$0xf]
    %v3190 = vld [vmem:[%s7 + $0x14] sm:$0xf]
    %v3191 = vld [vmem:[%s7 + $0x18] sm:$0xf]
    %v3192 = vld [vmem:[%s7 + $0x1c] sm:$0xf]
    %v3193 = vld [vmem:[%s7 + $0x20] sm:$0xf]
    %v3194 = vld [vmem:[%s7 + $0x24] sm:$0xf]
    %v3195 = vld [vmem:[%s7 + $0x28] sm:$0xf]
    %v3196 = vld [vmem:[%s7 + $0x2c] sm:$0xf]
    %v3197 = vld [vmem:[%s7 + $0x30] sm:$0xf]
    %v3198 = vld [vmem:[%s7 + $0x34] sm:$0xf]
    %v3199 = vld [vmem:[%s7 + $0x38] sm:$0xf]
    %v3200 = vld [vmem:[%s7 + $0x3c] sm:$0xf]
    %v3201 = vld [vmem:[%s7 + $0x40] sm:$0xf]
    %v3202 = vld [vmem:[%s7 + $0x44] sm:$0xf]
    %v3203 = vld [vmem:[%s7 + $0x48] sm:$0xf]
    %v3204 = vld [vmem:[%s7 + $0x4c] sm:$0xf]
    %v3205 = vld [vmem:[%s7 + $0x50] sm:$0xf]
    %v3206 = vld [vmem:[%s7 + $0x54] sm:$0xf]
    %v3207 = vld [vmem:[%s7 + $0x58] sm:$0xf]
    %v3208 = vld [vmem:[%s7 + $0x5c] sm:$0xf]
    %v3209 = vld [vmem:[%s7 + $0x60] sm:$0xf]
    %v3210 = vld [vmem:[%s7 + $0x64] sm:$0xf]
    %v3211 = vld [vmem:[%s7 + $0x68] sm:$0xf]
    %v3212 = vld [vmem:[%s7 + $0x6c] sm:$0xf]
    %v3213 = vld [vmem:[%s7 + $0x70] sm:$0xf]
    %v3214 = vld [vmem:[%s7 + $0x74] sm:$0xf]
    %v3215 = vld [vmem:[%s7 + $0x78] sm:$0xf]
    %v3216 = vld [vmem:[%s7 + $0x7c] sm:$0xf]
    %v3217 = vld [vmem:[%s7 + $0x80] sm:$0xf]
    %v3218 = vld [vmem:[%s7 + $0x84] sm:$0xf]
    %v3219 = vld [vmem:[%s7 + $0x88] sm:$0xf]
    %v3220 = vld [vmem:[%s7 + $0x8c] sm:$0xf]
    %v3221 = vld [vmem:[%s7 + $0x90] sm:$0xf]
    %v3222 = vld [vmem:[%s7 + $0x94] sm:$0xf]
    %v3223 = vld [vmem:[%s7 + $0x98] sm:$0xf]
    %v3224 = vld [vmem:[%s7 + $0x9c] sm:$0xf]
    %v3225 = vld [vmem:[%s7 + $0xa0] sm:$0xf]
    %v3226 = vld [vmem:[%s7 + $0xa4] sm:$0xf]
    %v3227 = vld [vmem:[%s7 + $0xa8] sm:$0xf]
    %v3228 = vld [vmem:[%s7 + $0xac] sm:$0xf]
    %v3229 = vld [vmem:[%s7 + $0xb0] sm:$0xf]
    %v3230 = vld [vmem:[%s7 + $0xb4] sm:$0xf]
    %v3231 = vld [vmem:[%s7 + $0xb8] sm:$0xf]
    %v3232 = vld [vmem:[%s7 + $0xbc] sm:$0xf]
    %v3233 = vld [vmem:[%s7 + $0xc0] sm:$0xf]
    %v3234 = vld [vmem:[%s7 + $0xc4] sm:$0xf]
    %v3235 = vld [vmem:[%s7 + $0xc8] sm:$0xf]
    %v3236 = vld [vmem:[%s7 + $0xcc] sm:$0xf]
    %v3237 = vld [vmem:[%s7 + $0xd0] sm:$0xf]
    %v3238 = vld [vmem:[%s7 + $0xd4] sm:$0xf]
    %v3239 = vld [vmem:[%s7 + $0xd8] sm:$0xf]
    %v3240 = vld [vmem:[%s7 + $0xdc] sm:$0xf]
    %v3241 = vld [vmem:[%s7 + $0xe0] sm:$0xf]
    %v3242 = vld [vmem:[%s7 + $0xe4] sm:$0xf]
    %v3243 = vld [vmem:[%s7 + $0xe8] sm:$0xf]
    %v3244 = vld [vmem:[%s7 + $0xec] sm:$0xf]
    %v3245 = vld [vmem:[%s7 + $0xf0] sm:$0xf]
    %v3246 = vld [vmem:[%s7 + $0xf4] sm:$0xf]
    %v3247 = vld [vmem:[%s7 + $0xf8] sm:$0xf]
    %v3248 = vld [vmem:[%s7 + $0xfc] sm:$0xf]
    %v3313 = vunpack.c.l.b16 %v3185
    %v3314 = vunpack.c.l.b16 %v3186
    %v3315 = vunpack.c.l.b16 %v3187
    %v3316 = vunpack.c.l.b16 %v3188
    %v3317 = vunpack.c.l.b16 %v3189
    %v3318 = vunpack.c.l.b16 %v3190
    %v3319 = vunpack.c.l.b16 %v3191
    %v3320 = vunpack.c.l.b16 %v3192
    %v3321 = vunpack.c.l.b16 %v3193
    %v3322 = vunpack.c.l.b16 %v3194
    %v3323 = vunpack.c.l.b16 %v3195
    %v3324 = vunpack.c.l.b16 %v3196
    %v3325 = vunpack.c.l.b16 %v3197
    %v3326 = vunpack.c.l.b16 %v3198
    %v3327 = vunpack.c.l.b16 %v3199
    %v3328 = vunpack.c.l.b16 %v3200
    %v3329 = vunpack.c.l.b16 %v3201
    %v3330 = vunpack.c.l.b16 %v3202
    %v3331 = vunpack.c.l.b16 %v3203
    %v3332 = vunpack.c.l.b16 %v3204
    %v3333 = vunpack.c.l.b16 %v3205
    %v3334 = vunpack.c.l.b16 %v3206
    %v3335 = vunpack.c.l.b16 %v3207
    %v3336 = vunpack.c.l.b16 %v3208
    %v3337 = vunpack.c.l.b16 %v3209
    %v3338 = vunpack.c.l.b16 %v3210
    %v3339 = vunpack.c.l.b16 %v3211
    %v3340 = vunpack.c.l.b16 %v3212
    %v3341 = vunpack.c.l.b16 %v3213
    %v3342 = vunpack.c.l.b16 %v3214
    %v3343 = vunpack.c.l.b16 %v3215
    %v3344 = vunpack.c.l.b16 %v3216
    %v3345 = vunpack.c.l.b16 %v3217
    %v3346 = vunpack.c.l.b16 %v3218
    %v3347 = vunpack.c.l.b16 %v3219
    %v3348 = vunpack.c.l.b16 %v3220
    %v3349 = vunpack.c.l.b16 %v3221
    %v3350 = vunpack.c.l.b16 %v3222
    %v3351 = vunpack.c.l.b16 %v3223
    %v3352 = vunpack.c.l.b16 %v3224
    %v3353 = vunpack.c.l.b16 %v3225
    %v3354 = vunpack.c.l.b16 %v3226
    %v3355 = vunpack.c.l.b16 %v3227
    %v3356 = vunpack.c.l.b16 %v3228
    %v3357 = vunpack.c.l.b16 %v3229
    %v3358 = vunpack.c.l.b16 %v3230
    %v3359 = vunpack.c.l.b16 %v3231
    %v3360 = vunpack.c.l.b16 %v3232
    %v3361 = vunpack.c.l.b16 %v3233
    %v3362 = vunpack.c.l.b16 %v3234
    %v3363 = vunpack.c.l.b16 %v3235
    %v3364 = vunpack.c.l.b16 %v3236
    %v3365 = vunpack.c.l.b16 %v3237
    %v3366 = vunpack.c.l.b16 %v3238
    %v3367 = vunpack.c.l.b16 %v3239
    %v3368 = vunpack.c.l.b16 %v3240
    %v3369 = vunpack.c.l.b16 %v3241
    %v3370 = vunpack.c.l.b16 %v3242
    %v3371 = vunpack.c.l.b16 %v3243
    %v3372 = vunpack.c.l.b16 %v3244
    %v3373 = vunpack.c.l.b16 %v3245
    %v3374 = vunpack.c.l.b16 %v3246
    %v3375 = vunpack.c.l.b16 %v3247
    %v3376 = vunpack.c.l.b16 %v3248
    %v3377 = vpack.c.b16 %v3314, %v3313
    %v3378 = vpack.c.b16 %v3316, %v3315
    %v3379 = vpack.c.b16 %v3318, %v3317
    %v3380 = vpack.c.b16 %v3320, %v3319
    %v3381 = vpack.c.b16 %v3322, %v3321
    %v3382 = vpack.c.b16 %v3324, %v3323
    %v3383 = vpack.c.b16 %v3326, %v3325
    %v3384 = vpack.c.b16 %v3328, %v3327
    %v3385 = vpack.c.b16 %v3330, %v3329
    %v3386 = vpack.c.b16 %v3332, %v3331
    %v3387 = vpack.c.b16 %v3334, %v3333
    %v3388 = vpack.c.b16 %v3336, %v3335
    %v3389 = vpack.c.b16 %v3338, %v3337
    %v3390 = vpack.c.b16 %v3340, %v3339
    %v3391 = vpack.c.b16 %v3342, %v3341
    %v3392 = vpack.c.b16 %v3344, %v3343
    %v3393 = vpack.c.b16 %v3346, %v3345
    %v3394 = vpack.c.b16 %v3348, %v3347
    %v3395 = vpack.c.b16 %v3350, %v3349
    %v3396 = vpack.c.b16 %v3352, %v3351
    %v3397 = vpack.c.b16 %v3354, %v3353
    %v3398 = vpack.c.b16 %v3356, %v3355
    %v3399 = vpack.c.b16 %v3358, %v3357
    %v3400 = vpack.c.b16 %v3360, %v3359
    %v3401 = vpack.c.b16 %v3362, %v3361
    %v3402 = vpack.c.b16 %v3364, %v3363
    %v3403 = vpack.c.b16 %v3366, %v3365
    %v3404 = vpack.c.b16 %v3368, %v3367
    %v3405 = vpack.c.b16 %v3370, %v3369
    %v3406 = vpack.c.b16 %v3372, %v3371
    %v3407 = vpack.c.b16 %v3374, %v3373
    %v3408 = vpack.c.b16 %v3376, %v3375
    %3441 = vmatpush.bf16.msra.mxu0 %v3384
    %3442 = vmatpush.bf16.msra.mxu0 %v3383
    %3443 = vmatpush.bf16.msra.mxu0 %v3382
    %3444 = vmatpush.bf16.msra.mxu0 %v3381
    %3445 = vmatpush.bf16.msra.mxu0 %v3380
    %3446 = vmatpush.bf16.msra.mxu0 %v3379
    %3447 = vmatpush.bf16.msra.mxu0 %v3378
    %3448 = vmatpush.bf16.msra.mxu0 %v3377
    %3449 = vmatmul.bf16.gmra.mxu0 %v2153
    %v3450 = vpop.f32.mrf.mxu0
    %v3451 = vadd.f32 0.0, %v3450
    %v3452 = vpop.f32.mrf.mxu0
    %v3453 = vadd.f32 0.0, %v3452
    %3454 = vmatmul.bf16.gmra.mxu0 %v2157
    %v3455 = vpop.f32.mrf.mxu0
    %v3456 = vadd.f32 0.0, %v3455
    %v3457 = vpop.f32.mrf.mxu0
    %v3458 = vadd.f32 0.0, %v3457
    %3459 = vmatmul.bf16.gmra.mxu0 %v2161
    %v3460 = vpop.f32.mrf.mxu0
    %v3461 = vadd.f32 0.0, %v3460
    %v3462 = vpop.f32.mrf.mxu0
    %v3463 = vadd.f32 0.0, %v3462
    %3464 = vmatmul.bf16.gmra.mxu0 %v2165
    %v3465 = vpop.f32.mrf.mxu0
    %v3466 = vadd.f32 0.0, %v3465
    %v3467 = vpop.f32.mrf.mxu0
    %v3468 = vadd.f32 0.0, %v3467
    %3469 = vmatmul.bf16.gmra.mxu0 %v2169
    %v3470 = vpop.f32.mrf.mxu0
    %v3471 = vadd.f32 0.0, %v3470
    %v3472 = vpop.f32.mrf.mxu0
    %v3473 = vadd.f32 0.0, %v3472
    %3474 = vmatmul.bf16.gmra.mxu0 %v2173
    %v3475 = vpop.f32.mrf.mxu0
    %v3476 = vadd.f32 0.0, %v3475
    %v3477 = vpop.f32.mrf.mxu0
    %v3478 = vadd.f32 0.0, %v3477
    %3479 = vmatmul.bf16.gmra.mxu0 %v2177
    %v3480 = vpop.f32.mrf.mxu0
    %v3481 = vadd.f32 0.0, %v3480
    %v3482 = vpop.f32.mrf.mxu0
    %v3483 = vadd.f32 0.0, %v3482
    %3484 = vmatmul.bf16.gmra.mxu0 %v2181
    %v3485 = vpop.f32.mrf.mxu0
    %v3486 = vadd.f32 0.0, %v3485
    %v3487 = vpop.f32.mrf.mxu0
    %v3488 = vadd.f32 0.0, %v3487
    %3489 = vmatmul.bf16.gmra.mxu0 %v2185
    %v3490 = vpop.f32.mrf.mxu0
    %v3491 = vadd.f32 0.0, %v3490
    %v3492 = vpop.f32.mrf.mxu0
    %v3493 = vadd.f32 0.0, %v3492
    %3494 = vmatmul.bf16.gmra.mxu0 %v2189
    %v3495 = vpop.f32.mrf.mxu0
    %v3496 = vadd.f32 0.0, %v3495
    %v3497 = vpop.f32.mrf.mxu0
    %v3498 = vadd.f32 0.0, %v3497
    %3499 = vmatmul.bf16.gmra.mxu0 %v2193
    %v3500 = vpop.f32.mrf.mxu0
    %v3501 = vadd.f32 0.0, %v3500
    %v3502 = vpop.f32.mrf.mxu0
    %v3503 = vadd.f32 0.0, %v3502
    %3504 = vmatmul.bf16.gmra.mxu0 %v2197
    %v3505 = vpop.f32.mrf.mxu0
    %v3506 = vadd.f32 0.0, %v3505
    %v3507 = vpop.f32.mrf.mxu0
    %v3508 = vadd.f32 0.0, %v3507
    %3509 = vmatmul.bf16.gmra.mxu0 %v2201
    %v3510 = vpop.f32.mrf.mxu0
    %v3511 = vadd.f32 0.0, %v3510
    %v3512 = vpop.f32.mrf.mxu0
    %v3513 = vadd.f32 0.0, %v3512
    %3514 = vmatmul.bf16.gmra.mxu0 %v2205
    %v3515 = vpop.f32.mrf.mxu0
    %v3516 = vadd.f32 0.0, %v3515
    %v3517 = vpop.f32.mrf.mxu0
    %v3518 = vadd.f32 0.0, %v3517
    %3519 = vmatmul.bf16.gmra.mxu0 %v2209
    %v3520 = vpop.f32.mrf.mxu0
    %v3521 = vadd.f32 0.0, %v3520
    %v3522 = vpop.f32.mrf.mxu0
    %v3523 = vadd.f32 0.0, %v3522
    %3524 = vmatmul.bf16.gmra.mxu0 %v2213
    %v3525 = vpop.f32.mrf.mxu0
    %v3526 = vadd.f32 0.0, %v3525
    %v3527 = vpop.f32.mrf.mxu0
    %v3528 = vadd.f32 0.0, %v3527
    %3529 = vdwg.mxu0
    %3530 = vmatpush.bf16.msra.mxu0 %v3392
    %3531 = vmatpush.bf16.msra.mxu0 %v3391
    %3532 = vmatpush.bf16.msra.mxu0 %v3390
    %3533 = vmatpush.bf16.msra.mxu0 %v3389
    %3534 = vmatpush.bf16.msra.mxu0 %v3388
    %3535 = vmatpush.bf16.msra.mxu0 %v3387
    %3536 = vmatpush.bf16.msra.mxu0 %v3386
    %3537 = vmatpush.bf16.msra.mxu0 %v3385
    %3538 = vmatmul.bf16.gmra.mxu0 %v2154
    %v3539 = vpop.f32.mrf.mxu0
    %v3540 = vadd.f32 %v3451, %v3539
    %v3541 = vpop.f32.mrf.mxu0
    %v3542 = vadd.f32 %v3453, %v3541
    %3543 = vmatmul.bf16.gmra.mxu0 %v2158
    %v3544 = vpop.f32.mrf.mxu0
    %v3545 = vadd.f32 %v3456, %v3544
    %v3546 = vpop.f32.mrf.mxu0
    %v3547 = vadd.f32 %v3458, %v3546
    %3548 = vmatmul.bf16.gmra.mxu0 %v2162
    %v3549 = vpop.f32.mrf.mxu0
    %v3550 = vadd.f32 %v3461, %v3549
    %v3551 = vpop.f32.mrf.mxu0
    %v3552 = vadd.f32 %v3463, %v3551
    %3553 = vmatmul.bf16.gmra.mxu0 %v2166
    %v3554 = vpop.f32.mrf.mxu0
    %v3555 = vadd.f32 %v3466, %v3554
    %v3556 = vpop.f32.mrf.mxu0
    %v3557 = vadd.f32 %v3468, %v3556
    %3558 = vmatmul.bf16.gmra.mxu0 %v2170
    %v3559 = vpop.f32.mrf.mxu0
    %v3560 = vadd.f32 %v3471, %v3559
    %v3561 = vpop.f32.mrf.mxu0
    %v3562 = vadd.f32 %v3473, %v3561
    %3563 = vmatmul.bf16.gmra.mxu0 %v2174
    %v3564 = vpop.f32.mrf.mxu0
    %v3565 = vadd.f32 %v3476, %v3564
    %v3566 = vpop.f32.mrf.mxu0
    %v3567 = vadd.f32 %v3478, %v3566
    %3568 = vmatmul.bf16.gmra.mxu0 %v2178
    %v3569 = vpop.f32.mrf.mxu0
    %v3570 = vadd.f32 %v3481, %v3569
    %v3571 = vpop.f32.mrf.mxu0
    %v3572 = vadd.f32 %v3483, %v3571
    %3573 = vmatmul.bf16.gmra.mxu0 %v2182
    %v3574 = vpop.f32.mrf.mxu0
    %v3575 = vadd.f32 %v3486, %v3574
    %v3576 = vpop.f32.mrf.mxu0
    %v3577 = vadd.f32 %v3488, %v3576
    %3578 = vmatmul.bf16.gmra.mxu0 %v2186
    %v3579 = vpop.f32.mrf.mxu0
    %v3580 = vadd.f32 %v3491, %v3579
    %v3581 = vpop.f32.mrf.mxu0
    %v3582 = vadd.f32 %v3493, %v3581
    %3583 = vmatmul.bf16.gmra.mxu0 %v2190
    %v3584 = vpop.f32.mrf.mxu0
    %v3585 = vadd.f32 %v3496, %v3584
    %v3586 = vpop.f32.mrf.mxu0
    %v3587 = vadd.f32 %v3498, %v3586
    %3588 = vmatmul.bf16.gmra.mxu0 %v2194
    %v3589 = vpop.f32.mrf.mxu0
    %v3590 = vadd.f32 %v3501, %v3589
    %v3591 = vpop.f32.mrf.mxu0
    %v3592 = vadd.f32 %v3503, %v3591
    %3593 = vmatmul.bf16.gmra.mxu0 %v2198
    %v3594 = vpop.f32.mrf.mxu0
    %v3595 = vadd.f32 %v3506, %v3594
    %v3596 = vpop.f32.mrf.mxu0
    %v3597 = vadd.f32 %v3508, %v3596
    %3598 = vmatmul.bf16.gmra.mxu0 %v2202
    %v3599 = vpop.f32.mrf.mxu0
    %v3600 = vadd.f32 %v3511, %v3599
    %v3601 = vpop.f32.mrf.mxu0
    %v3602 = vadd.f32 %v3513, %v3601
    %3603 = vmatmul.bf16.gmra.mxu0 %v2206
    %v3604 = vpop.f32.mrf.mxu0
    %v3605 = vadd.f32 %v3516, %v3604
    %v3606 = vpop.f32.mrf.mxu0
    %v3607 = vadd.f32 %v3518, %v3606
    %3608 = vmatmul.bf16.gmra.mxu0 %v2210
    %v3609 = vpop.f32.mrf.mxu0
    %v3610 = vadd.f32 %v3521, %v3609
    %v3611 = vpop.f32.mrf.mxu0
    %v3612 = vadd.f32 %v3523, %v3611
    %3613 = vmatmul.bf16.gmra.mxu0 %v2214
    %v3614 = vpop.f32.mrf.mxu0
    %v3615 = vadd.f32 %v3526, %v3614
    %v3616 = vpop.f32.mrf.mxu0
    %v3617 = vadd.f32 %v3528, %v3616
    %3618 = vdwg.mxu0
    %3619 = vmatpush.bf16.msra.mxu0 %v3400
    %3620 = vmatpush.bf16.msra.mxu0 %v3399
    %3621 = vmatpush.bf16.msra.mxu0 %v3398
    %3622 = vmatpush.bf16.msra.mxu0 %v3397
    %3623 = vmatpush.bf16.msra.mxu0 %v3396
    %3624 = vmatpush.bf16.msra.mxu0 %v3395
    %3625 = vmatpush.bf16.msra.mxu0 %v3394
    %3626 = vmatpush.bf16.msra.mxu0 %v3393
    %3627 = vmatmul.bf16.gmra.mxu0 %v2155
    %v3628 = vpop.f32.mrf.mxu0
    %v3629 = vadd.f32 %v3540, %v3628
    %v3630 = vpop.f32.mrf.mxu0
    %v3631 = vadd.f32 %v3542, %v3630
    %3632 = vmatmul.bf16.gmra.mxu0 %v2159
    %v3633 = vpop.f32.mrf.mxu0
    %v3634 = vadd.f32 %v3545, %v3633
    %v3635 = vpop.f32.mrf.mxu0
    %v3636 = vadd.f32 %v3547, %v3635
    %3637 = vmatmul.bf16.gmra.mxu0 %v2163
    %v3638 = vpop.f32.mrf.mxu0
    %v3639 = vadd.f32 %v3550, %v3638
    %v3640 = vpop.f32.mrf.mxu0
    %v3641 = vadd.f32 %v3552, %v3640
    %3642 = vmatmul.bf16.gmra.mxu0 %v2167
    %v3643 = vpop.f32.mrf.mxu0
    %v3644 = vadd.f32 %v3555, %v3643
    %v3645 = vpop.f32.mrf.mxu0
    %v3646 = vadd.f32 %v3557, %v3645
    %3647 = vmatmul.bf16.gmra.mxu0 %v2171
    %v3648 = vpop.f32.mrf.mxu0
    %v3649 = vadd.f32 %v3560, %v3648
    %v3650 = vpop.f32.mrf.mxu0
    %v3651 = vadd.f32 %v3562, %v3650
    %3652 = vmatmul.bf16.gmra.mxu0 %v2175
    %v3653 = vpop.f32.mrf.mxu0
    %v3654 = vadd.f32 %v3565, %v3653
    %v3655 = vpop.f32.mrf.mxu0
    %v3656 = vadd.f32 %v3567, %v3655
    %3657 = vmatmul.bf16.gmra.mxu0 %v2179
    %v3658 = vpop.f32.mrf.mxu0
    %v3659 = vadd.f32 %v3570, %v3658
    %v3660 = vpop.f32.mrf.mxu0
    %v3661 = vadd.f32 %v3572, %v3660
    %3662 = vmatmul.bf16.gmra.mxu0 %v2183
    %v3663 = vpop.f32.mrf.mxu0
    %v3664 = vadd.f32 %v3575, %v3663
    %v3665 = vpop.f32.mrf.mxu0
    %v3666 = vadd.f32 %v3577, %v3665
    %3667 = vmatmul.bf16.gmra.mxu0 %v2187
    %v3668 = vpop.f32.mrf.mxu0
    %v3669 = vadd.f32 %v3580, %v3668
    %v3670 = vpop.f32.mrf.mxu0
    %v3671 = vadd.f32 %v3582, %v3670
    %3672 = vmatmul.bf16.gmra.mxu0 %v2191
    %v3673 = vpop.f32.mrf.mxu0
    %v3674 = vadd.f32 %v3585, %v3673
    %v3675 = vpop.f32.mrf.mxu0
    %v3676 = vadd.f32 %v3587, %v3675
    %3677 = vmatmul.bf16.gmra.mxu0 %v2195
    %v3678 = vpop.f32.mrf.mxu0
    %v3679 = vadd.f32 %v3590, %v3678
    %v3680 = vpop.f32.mrf.mxu0
    %v3681 = vadd.f32 %v3592, %v3680
    %3682 = vmatmul.bf16.gmra.mxu0 %v2199
    %v3683 = vpop.f32.mrf.mxu0
    %v3684 = vadd.f32 %v3595, %v3683
    %v3685 = vpop.f32.mrf.mxu0
    %v3686 = vadd.f32 %v3597, %v3685
    %3687 = vmatmul.bf16.gmra.mxu0 %v2203
    %v3688 = vpop.f32.mrf.mxu0
    %v3689 = vadd.f32 %v3600, %v3688
    %v3690 = vpop.f32.mrf.mxu0
    %v3691 = vadd.f32 %v3602, %v3690
    %3692 = vmatmul.bf16.gmra.mxu0 %v2207
    %v3693 = vpop.f32.mrf.mxu0
    %v3694 = vadd.f32 %v3605, %v3693
    %v3695 = vpop.f32.mrf.mxu0
    %v3696 = vadd.f32 %v3607, %v3695
    %3697 = vmatmul.bf16.gmra.mxu0 %v2211
    %v3698 = vpop.f32.mrf.mxu0
    %v3699 = vadd.f32 %v3610, %v3698
    %v3700 = vpop.f32.mrf.mxu0
    %v3701 = vadd.f32 %v3612, %v3700
    %3702 = vmatmul.bf16.gmra.mxu0 %v2215
    %v3703 = vpop.f32.mrf.mxu0
    %v3704 = vadd.f32 %v3615, %v3703
    %v3705 = vpop.f32.mrf.mxu0
    %v3706 = vadd.f32 %v3617, %v3705
    %3707 = vdwg.mxu0
    %3708 = vmatpush.bf16.msra.mxu0 %v3408
    %3709 = vmatpush.bf16.msra.mxu0 %v3407
    %3710 = vmatpush.bf16.msra.mxu0 %v3406
    %3711 = vmatpush.bf16.msra.mxu0 %v3405
    %3712 = vmatpush.bf16.msra.mxu0 %v3404
    %3713 = vmatpush.bf16.msra.mxu0 %v3403
    %3714 = vmatpush.bf16.msra.mxu0 %v3402
    %3715 = vmatpush.bf16.msra.mxu0 %v3401
    %3716 = vmatmul.bf16.gmra.mxu0 %v2156
    %v3717 = vpop.f32.mrf.mxu0
    %v3718 = vadd.f32 %v3629, %v3717
    %v3719 = vpop.f32.mrf.mxu0
    %v3720 = vadd.f32 %v3631, %v3719
    %3721 = vmatmul.bf16.gmra.mxu0 %v2160
    %v3722 = vpop.f32.mrf.mxu0
    %v3723 = vadd.f32 %v3634, %v3722
    %v3724 = vpop.f32.mrf.mxu0
    %v3725 = vadd.f32 %v3636, %v3724
    %3726 = vmatmul.bf16.gmra.mxu0 %v2164
    %v3727 = vpop.f32.mrf.mxu0
    %v3728 = vadd.f32 %v3639, %v3727
    %v3729 = vpop.f32.mrf.mxu0
    %v3730 = vadd.f32 %v3641, %v3729
    %3731 = vmatmul.bf16.gmra.mxu0 %v2168
    %v3732 = vpop.f32.mrf.mxu0
    %v3733 = vadd.f32 %v3644, %v3732
    %v3734 = vpop.f32.mrf.mxu0
    %v3735 = vadd.f32 %v3646, %v3734
    %3736 = vmatmul.bf16.gmra.mxu0 %v2172
    %v3737 = vpop.f32.mrf.mxu0
    %v3738 = vadd.f32 %v3649, %v3737
    %v3739 = vpop.f32.mrf.mxu0
    %v3740 = vadd.f32 %v3651, %v3739
    %3741 = vmatmul.bf16.gmra.mxu0 %v2176
    %v3742 = vpop.f32.mrf.mxu0
    %v3743 = vadd.f32 %v3654, %v3742
    %v3744 = vpop.f32.mrf.mxu0
    %v3745 = vadd.f32 %v3656, %v3744
    %3746 = vmatmul.bf16.gmra.mxu0 %v2180
    %v3747 = vpop.f32.mrf.mxu0
    %v3748 = vadd.f32 %v3659, %v3747
    %v3749 = vpop.f32.mrf.mxu0
    %v3750 = vadd.f32 %v3661, %v3749
    %3751 = vmatmul.bf16.gmra.mxu0 %v2184
    %v3752 = vpop.f32.mrf.mxu0
    %v3753 = vadd.f32 %v3664, %v3752
    %v3754 = vpop.f32.mrf.mxu0
    %v3755 = vadd.f32 %v3666, %v3754
    %3756 = vmatmul.bf16.gmra.mxu0 %v2188
    %v3757 = vpop.f32.mrf.mxu0
    %v3758 = vadd.f32 %v3669, %v3757
    %v3759 = vpop.f32.mrf.mxu0
    %v3760 = vadd.f32 %v3671, %v3759
    %3761 = vmatmul.bf16.gmra.mxu0 %v2192
    %v3762 = vpop.f32.mrf.mxu0
    %v3763 = vadd.f32 %v3674, %v3762
    %v3764 = vpop.f32.mrf.mxu0
    %v3765 = vadd.f32 %v3676, %v3764
    %3766 = vmatmul.bf16.gmra.mxu0 %v2196
    %v3767 = vpop.f32.mrf.mxu0
    %v3768 = vadd.f32 %v3679, %v3767
    %v3769 = vpop.f32.mrf.mxu0
    %v3770 = vadd.f32 %v3681, %v3769
    %3771 = vmatmul.bf16.gmra.mxu0 %v2200
    %v3772 = vpop.f32.mrf.mxu0
    %v3773 = vadd.f32 %v3684, %v3772
    %v3774 = vpop.f32.mrf.mxu0
    %v3775 = vadd.f32 %v3686, %v3774
    %3776 = vmatmul.bf16.gmra.mxu0 %v2204
    %v3777 = vpop.f32.mrf.mxu0
    %v3778 = vadd.f32 %v3689, %v3777
    %v3779 = vpop.f32.mrf.mxu0
    %v3780 = vadd.f32 %v3691, %v3779
    %3781 = vmatmul.bf16.gmra.mxu0 %v2208
    %v3782 = vpop.f32.mrf.mxu0
    %v3783 = vadd.f32 %v3694, %v3782
    %v3784 = vpop.f32.mrf.mxu0
    %v3785 = vadd.f32 %v3696, %v3784
    %3786 = vmatmul.bf16.gmra.mxu0 %v2212
    %v3787 = vpop.f32.mrf.mxu0
    %v3788 = vadd.f32 %v3699, %v3787
    %v3789 = vpop.f32.mrf.mxu0
    %v3790 = vadd.f32 %v3701, %v3789
    %3791 = vmatmul.bf16.gmra.mxu0 %v2216
    %v3792 = vpop.f32.mrf.mxu0
    %v3793 = vadd.f32 %v3704, %v3792
    %v3794 = vpop.f32.mrf.mxu0
    %v3795 = vadd.f32 %v3706, %v3794
    %3796 = vdwg.mxu0
    %v3861 = vunpack.c.l.b16 %v3121
    %v3862 = vunpack.c.l.b16 %v3122
    %v3863 = vunpack.c.l.b16 %v3123
    %v3864 = vunpack.c.l.b16 %v3124
    %v3865 = vunpack.c.l.b16 %v3125
    %v3866 = vunpack.c.l.b16 %v3126
    %v3867 = vunpack.c.l.b16 %v3127
    %v3868 = vunpack.c.l.b16 %v3128
    %v3869 = vunpack.c.l.b16 %v3129
    %v3870 = vunpack.c.l.b16 %v3130
    %v3871 = vunpack.c.l.b16 %v3131
    %v3872 = vunpack.c.l.b16 %v3132
    %v3873 = vunpack.c.l.b16 %v3133
    %v3874 = vunpack.c.l.b16 %v3134
    %v3875 = vunpack.c.l.b16 %v3135
    %v3876 = vunpack.c.l.b16 %v3136
    %v3877 = vunpack.c.l.b16 %v3137
    %v3878 = vunpack.c.l.b16 %v3138
    %v3879 = vunpack.c.l.b16 %v3139
    %v3880 = vunpack.c.l.b16 %v3140
    %v3881 = vunpack.c.l.b16 %v3141
    %v3882 = vunpack.c.l.b16 %v3142
    %v3883 = vunpack.c.l.b16 %v3143
    %v3884 = vunpack.c.l.b16 %v3144
    %v3885 = vunpack.c.l.b16 %v3145
    %v3886 = vunpack.c.l.b16 %v3146
    %v3887 = vunpack.c.l.b16 %v3147
    %v3888 = vunpack.c.l.b16 %v3148
    %v3889 = vunpack.c.l.b16 %v3149
    %v3890 = vunpack.c.l.b16 %v3150
    %v3891 = vunpack.c.l.b16 %v3151
    %v3892 = vunpack.c.l.b16 %v3152
    %v3893 = vunpack.c.l.b16 %v3153
    %v3894 = vunpack.c.l.b16 %v3154
    %v3895 = vunpack.c.l.b16 %v3155
    %v3896 = vunpack.c.l.b16 %v3156
    %v3897 = vunpack.c.l.b16 %v3157
    %v3898 = vunpack.c.l.b16 %v3158
    %v3899 = vunpack.c.l.b16 %v3159
    %v3900 = vunpack.c.l.b16 %v3160
    %v3901 = vunpack.c.l.b16 %v3161
    %v3902 = vunpack.c.l.b16 %v3162
    %v3903 = vunpack.c.l.b16 %v3163
    %v3904 = vunpack.c.l.b16 %v3164
    %v3905 = vunpack.c.l.b16 %v3165
    %v3906 = vunpack.c.l.b16 %v3166
    %v3907 = vunpack.c.l.b16 %v3167
    %v3908 = vunpack.c.l.b16 %v3168
    %v3909 = vunpack.c.l.b16 %v3169
    %v3910 = vunpack.c.l.b16 %v3170
    %v3911 = vunpack.c.l.b16 %v3171
    %v3912 = vunpack.c.l.b16 %v3172
    %v3913 = vunpack.c.l.b16 %v3173
    %v3914 = vunpack.c.l.b16 %v3174
    %v3915 = vunpack.c.l.b16 %v3175
    %v3916 = vunpack.c.l.b16 %v3176
    %v3917 = vunpack.c.l.b16 %v3177
    %v3918 = vunpack.c.l.b16 %v3178
    %v3919 = vunpack.c.l.b16 %v3179
    %v3920 = vunpack.c.l.b16 %v3180
    %v3921 = vunpack.c.l.b16 %v3181
    %v3922 = vunpack.c.l.b16 %v3182
    %v3923 = vunpack.c.l.b16 %v3183
    %v3924 = vunpack.c.l.b16 %v3184
    %v3925 = vpack.c.b16 %v3862, %v3861
    %v3926 = vpack.c.b16 %v3864, %v3863
    %v3927 = vpack.c.b16 %v3866, %v3865
    %v3928 = vpack.c.b16 %v3868, %v3867
    %v3929 = vpack.c.b16 %v3870, %v3869
    %v3930 = vpack.c.b16 %v3872, %v3871
    %v3931 = vpack.c.b16 %v3874, %v3873
    %v3932 = vpack.c.b16 %v3876, %v3875
    %v3933 = vpack.c.b16 %v3878, %v3877
    %v3934 = vpack.c.b16 %v3880, %v3879
    %v3935 = vpack.c.b16 %v3882, %v3881
    %v3936 = vpack.c.b16 %v3884, %v3883
    %v3937 = vpack.c.b16 %v3886, %v3885
    %v3938 = vpack.c.b16 %v3888, %v3887
    %v3939 = vpack.c.b16 %v3890, %v3889
    %v3940 = vpack.c.b16 %v3892, %v3891
    %v3941 = vpack.c.b16 %v3894, %v3893
    %v3942 = vpack.c.b16 %v3896, %v3895
    %v3943 = vpack.c.b16 %v3898, %v3897
    %v3944 = vpack.c.b16 %v3900, %v3899
    %v3945 = vpack.c.b16 %v3902, %v3901
    %v3946 = vpack.c.b16 %v3904, %v3903
    %v3947 = vpack.c.b16 %v3906, %v3905
    %v3948 = vpack.c.b16 %v3908, %v3907
    %v3949 = vpack.c.b16 %v3910, %v3909
    %v3950 = vpack.c.b16 %v3912, %v3911
    %v3951 = vpack.c.b16 %v3914, %v3913
    %v3952 = vpack.c.b16 %v3916, %v3915
    %v3953 = vpack.c.b16 %v3918, %v3917
    %v3954 = vpack.c.b16 %v3920, %v3919
    %v3955 = vpack.c.b16 %v3922, %v3921
    %v3956 = vpack.c.b16 %v3924, %v3923
    %3989 = vmatpush.bf16.msra.mxu0 %v3932
    %3990 = vmatpush.bf16.msra.mxu0 %v3931
    %3991 = vmatpush.bf16.msra.mxu0 %v3930
    %3992 = vmatpush.bf16.msra.mxu0 %v3929
    %3993 = vmatpush.bf16.msra.mxu0 %v3928
    %3994 = vmatpush.bf16.msra.mxu0 %v3927
    %3995 = vmatpush.bf16.msra.mxu0 %v3926
    %3996 = vmatpush.bf16.msra.mxu0 %v3925
    %3997 = vmatmul.bf16.gmra.mxu0 %v3057
    %v3998 = vpop.f32.mrf.mxu0
    %v3999 = vadd.f32 %v3718, %v3998
    %v4000 = vpop.f32.mrf.mxu0
    %v4001 = vadd.f32 %v3720, %v4000
    %4002 = vmatmul.bf16.gmra.mxu0 %v3061
    %v4003 = vpop.f32.mrf.mxu0
    %v4004 = vadd.f32 %v3723, %v4003
    %v4005 = vpop.f32.mrf.mxu0
    %v4006 = vadd.f32 %v3725, %v4005
    %4007 = vmatmul.bf16.gmra.mxu0 %v3065
    %v4008 = vpop.f32.mrf.mxu0
    %v4009 = vadd.f32 %v3728, %v4008
    %v4010 = vpop.f32.mrf.mxu0
    %v4011 = vadd.f32 %v3730, %v4010
    %4012 = vmatmul.bf16.gmra.mxu0 %v3069
    %v4013 = vpop.f32.mrf.mxu0
    %v4014 = vadd.f32 %v3733, %v4013
    %v4015 = vpop.f32.mrf.mxu0
    %v4016 = vadd.f32 %v3735, %v4015
    %4017 = vmatmul.bf16.gmra.mxu0 %v3073
    %v4018 = vpop.f32.mrf.mxu0
    %v4019 = vadd.f32 %v3738, %v4018
    %v4020 = vpop.f32.mrf.mxu0
    %v4021 = vadd.f32 %v3740, %v4020
    %4022 = vmatmul.bf16.gmra.mxu0 %v3077
    %v4023 = vpop.f32.mrf.mxu0
    %v4024 = vadd.f32 %v3743, %v4023
    %v4025 = vpop.f32.mrf.mxu0
    %v4026 = vadd.f32 %v3745, %v4025
    %4027 = vmatmul.bf16.gmra.mxu0 %v3081
    %v4028 = vpop.f32.mrf.mxu0
    %v4029 = vadd.f32 %v3748, %v4028
    %v4030 = vpop.f32.mrf.mxu0
    %v4031 = vadd.f32 %v3750, %v4030
    %4032 = vmatmul.bf16.gmra.mxu0 %v3085
    %v4033 = vpop.f32.mrf.mxu0
    %v4034 = vadd.f32 %v3753, %v4033
    %v4035 = vpop.f32.mrf.mxu0
    %v4036 = vadd.f32 %v3755, %v4035
    %4037 = vmatmul.bf16.gmra.mxu0 %v3089
    %v4038 = vpop.f32.mrf.mxu0
    %v4039 = vadd.f32 %v3758, %v4038
    %v4040 = vpop.f32.mrf.mxu0
    %v4041 = vadd.f32 %v3760, %v4040
    %4042 = vmatmul.bf16.gmra.mxu0 %v3093
    %v4043 = vpop.f32.mrf.mxu0
    %v4044 = vadd.f32 %v3763, %v4043
    %v4045 = vpop.f32.mrf.mxu0
    %v4046 = vadd.f32 %v3765, %v4045
    %4047 = vmatmul.bf16.gmra.mxu0 %v3097
    %v4048 = vpop.f32.mrf.mxu0
    %v4049 = vadd.f32 %v3768, %v4048
    %v4050 = vpop.f32.mrf.mxu0
    %v4051 = vadd.f32 %v3770, %v4050
    %4052 = vmatmul.bf16.gmra.mxu0 %v3101
    %v4053 = vpop.f32.mrf.mxu0
    %v4054 = vadd.f32 %v3773, %v4053
    %v4055 = vpop.f32.mrf.mxu0
    %v4056 = vadd.f32 %v3775, %v4055
    %4057 = vmatmul.bf16.gmra.mxu0 %v3105
    %v4058 = vpop.f32.mrf.mxu0
    %v4059 = vadd.f32 %v3778, %v4058
    %v4060 = vpop.f32.mrf.mxu0
    %v4061 = vadd.f32 %v3780, %v4060
    %4062 = vmatmul.bf16.gmra.mxu0 %v3109
    %v4063 = vpop.f32.mrf.mxu0
    %v4064 = vadd.f32 %v3783, %v4063
    %v4065 = vpop.f32.mrf.mxu0
    %v4066 = vadd.f32 %v3785, %v4065
    %4067 = vmatmul.bf16.gmra.mxu0 %v3113
    %v4068 = vpop.f32.mrf.mxu0
    %v4069 = vadd.f32 %v3788, %v4068
    %v4070 = vpop.f32.mrf.mxu0
    %v4071 = vadd.f32 %v3790, %v4070
    %4072 = vmatmul.bf16.gmra.mxu0 %v3117
    %v4073 = vpop.f32.mrf.mxu0
    %v4074 = vadd.f32 %v3793, %v4073
    %v4075 = vpop.f32.mrf.mxu0
    %v4076 = vadd.f32 %v3795, %v4075
    %4077 = vdwg.mxu0
    %4078 = vmatpush.bf16.msra.mxu0 %v3940
    %4079 = vmatpush.bf16.msra.mxu0 %v3939
    %4080 = vmatpush.bf16.msra.mxu0 %v3938
    %4081 = vmatpush.bf16.msra.mxu0 %v3937
    %4082 = vmatpush.bf16.msra.mxu0 %v3936
    %4083 = vmatpush.bf16.msra.mxu0 %v3935
    %4084 = vmatpush.bf16.msra.mxu0 %v3934
    %4085 = vmatpush.bf16.msra.mxu0 %v3933
    %4086 = vmatmul.bf16.gmra.mxu0 %v3058
    %v4087 = vpop.f32.mrf.mxu0
    %v4088 = vadd.f32 %v3999, %v4087
    %v4089 = vpop.f32.mrf.mxu0
    %v4090 = vadd.f32 %v4001, %v4089
    %4091 = vmatmul.bf16.gmra.mxu0 %v3062
    %v4092 = vpop.f32.mrf.mxu0
    %v4093 = vadd.f32 %v4004, %v4092
    %v4094 = vpop.f32.mrf.mxu0
    %v4095 = vadd.f32 %v4006, %v4094
    %4096 = vmatmul.bf16.gmra.mxu0 %v3066
    %v4097 = vpop.f32.mrf.mxu0
    %v4098 = vadd.f32 %v4009, %v4097
    %v4099 = vpop.f32.mrf.mxu0
    %v4100 = vadd.f32 %v4011, %v4099
    %4101 = vmatmul.bf16.gmra.mxu0 %v3070
    %v4102 = vpop.f32.mrf.mxu0
    %v4103 = vadd.f32 %v4014, %v4102
    %v4104 = vpop.f32.mrf.mxu0
    %v4105 = vadd.f32 %v4016, %v4104
    %4106 = vmatmul.bf16.gmra.mxu0 %v3074
    %v4107 = vpop.f32.mrf.mxu0
    %v4108 = vadd.f32 %v4019, %v4107
    %v4109 = vpop.f32.mrf.mxu0
    %v4110 = vadd.f32 %v4021, %v4109
    %4111 = vmatmul.bf16.gmra.mxu0 %v3078
    %v4112 = vpop.f32.mrf.mxu0
    %v4113 = vadd.f32 %v4024, %v4112
    %v4114 = vpop.f32.mrf.mxu0
    %v4115 = vadd.f32 %v4026, %v4114
    %4116 = vmatmul.bf16.gmra.mxu0 %v3082
    %v4117 = vpop.f32.mrf.mxu0
    %v4118 = vadd.f32 %v4029, %v4117
    %v4119 = vpop.f32.mrf.mxu0
    %v4120 = vadd.f32 %v4031, %v4119
    %4121 = vmatmul.bf16.gmra.mxu0 %v3086
    %v4122 = vpop.f32.mrf.mxu0
    %v4123 = vadd.f32 %v4034, %v4122
    %v4124 = vpop.f32.mrf.mxu0
    %v4125 = vadd.f32 %v4036, %v4124
    %4126 = vmatmul.bf16.gmra.mxu0 %v3090
    %v4127 = vpop.f32.mrf.mxu0
    %v4128 = vadd.f32 %v4039, %v4127
    %v4129 = vpop.f32.mrf.mxu0
    %v4130 = vadd.f32 %v4041, %v4129
    %4131 = vmatmul.bf16.gmra.mxu0 %v3094
    %v4132 = vpop.f32.mrf.mxu0
    %v4133 = vadd.f32 %v4044, %v4132
    %v4134 = vpop.f32.mrf.mxu0
    %v4135 = vadd.f32 %v4046, %v4134
    %4136 = vmatmul.bf16.gmra.mxu0 %v3098
    %v4137 = vpop.f32.mrf.mxu0
    %v4138 = vadd.f32 %v4049, %v4137
    %v4139 = vpop.f32.mrf.mxu0
    %v4140 = vadd.f32 %v4051, %v4139
    %4141 = vmatmul.bf16.gmra.mxu0 %v3102
    %v4142 = vpop.f32.mrf.mxu0
    %v4143 = vadd.f32 %v4054, %v4142
    %v4144 = vpop.f32.mrf.mxu0
    %v4145 = vadd.f32 %v4056, %v4144
    %4146 = vmatmul.bf16.gmra.mxu0 %v3106
    %v4147 = vpop.f32.mrf.mxu0
    %v4148 = vadd.f32 %v4059, %v4147
    %v4149 = vpop.f32.mrf.mxu0
    %v4150 = vadd.f32 %v4061, %v4149
    %4151 = vmatmul.bf16.gmra.mxu0 %v3110
    %v4152 = vpop.f32.mrf.mxu0
    %v4153 = vadd.f32 %v4064, %v4152
    %v4154 = vpop.f32.mrf.mxu0
    %v4155 = vadd.f32 %v4066, %v4154
    %4156 = vmatmul.bf16.gmra.mxu0 %v3114
    %v4157 = vpop.f32.mrf.mxu0
    %v4158 = vadd.f32 %v4069, %v4157
    %v4159 = vpop.f32.mrf.mxu0
    %v4160 = vadd.f32 %v4071, %v4159
    %4161 = vmatmul.bf16.gmra.mxu0 %v3118
    %v4162 = vpop.f32.mrf.mxu0
    %v4163 = vadd.f32 %v4074, %v4162
    %v4164 = vpop.f32.mrf.mxu0
    %v4165 = vadd.f32 %v4076, %v4164
    %4166 = vdwg.mxu0
    %4167 = vmatpush.bf16.msra.mxu0 %v3948
    %4168 = vmatpush.bf16.msra.mxu0 %v3947
    %4169 = vmatpush.bf16.msra.mxu0 %v3946
    %4170 = vmatpush.bf16.msra.mxu0 %v3945
    %4171 = vmatpush.bf16.msra.mxu0 %v3944
    %4172 = vmatpush.bf16.msra.mxu0 %v3943
    %4173 = vmatpush.bf16.msra.mxu0 %v3942
    %4174 = vmatpush.bf16.msra.mxu0 %v3941
    %4175 = vmatmul.bf16.gmra.mxu0 %v3059
    %v4176 = vpop.f32.mrf.mxu0
    %v4177 = vadd.f32 %v4088, %v4176
    %v4178 = vpop.f32.mrf.mxu0
    %v4179 = vadd.f32 %v4090, %v4178
    %4180 = vmatmul.bf16.gmra.mxu0 %v3063
    %v4181 = vpop.f32.mrf.mxu0
    %v4182 = vadd.f32 %v4093, %v4181
    %v4183 = vpop.f32.mrf.mxu0
    %v4184 = vadd.f32 %v4095, %v4183
    %4185 = vmatmul.bf16.gmra.mxu0 %v3067
    %v4186 = vpop.f32.mrf.mxu0
    %v4187 = vadd.f32 %v4098, %v4186
    %v4188 = vpop.f32.mrf.mxu0
    %v4189 = vadd.f32 %v4100, %v4188
    %4190 = vmatmul.bf16.gmra.mxu0 %v3071
    %v4191 = vpop.f32.mrf.mxu0
    %v4192 = vadd.f32 %v4103, %v4191
    %v4193 = vpop.f32.mrf.mxu0
    %v4194 = vadd.f32 %v4105, %v4193
    %4195 = vmatmul.bf16.gmra.mxu0 %v3075
    %v4196 = vpop.f32.mrf.mxu0
    %v4197 = vadd.f32 %v4108, %v4196
    %v4198 = vpop.f32.mrf.mxu0
    %v4199 = vadd.f32 %v4110, %v4198
    %4200 = vmatmul.bf16.gmra.mxu0 %v3079
    %v4201 = vpop.f32.mrf.mxu0
    %v4202 = vadd.f32 %v4113, %v4201
    %v4203 = vpop.f32.mrf.mxu0
    %v4204 = vadd.f32 %v4115, %v4203
    %4205 = vmatmul.bf16.gmra.mxu0 %v3083
    %v4206 = vpop.f32.mrf.mxu0
    %v4207 = vadd.f32 %v4118, %v4206
    %v4208 = vpop.f32.mrf.mxu0
    %v4209 = vadd.f32 %v4120, %v4208
    %4210 = vmatmul.bf16.gmra.mxu0 %v3087
    %v4211 = vpop.f32.mrf.mxu0
    %v4212 = vadd.f32 %v4123, %v4211
    %v4213 = vpop.f32.mrf.mxu0
    %v4214 = vadd.f32 %v4125, %v4213
    %4215 = vmatmul.bf16.gmra.mxu0 %v3091
    %v4216 = vpop.f32.mrf.mxu0
    %v4217 = vadd.f32 %v4128, %v4216
    %v4218 = vpop.f32.mrf.mxu0
    %v4219 = vadd.f32 %v4130, %v4218
    %4220 = vmatmul.bf16.gmra.mxu0 %v3095
    %v4221 = vpop.f32.mrf.mxu0
    %v4222 = vadd.f32 %v4133, %v4221
    %v4223 = vpop.f32.mrf.mxu0
    %v4224 = vadd.f32 %v4135, %v4223
    %4225 = vmatmul.bf16.gmra.mxu0 %v3099
    %v4226 = vpop.f32.mrf.mxu0
    %v4227 = vadd.f32 %v4138, %v4226
    %v4228 = vpop.f32.mrf.mxu0
    %v4229 = vadd.f32 %v4140, %v4228
    %4230 = vmatmul.bf16.gmra.mxu0 %v3103
    %v4231 = vpop.f32.mrf.mxu0
    %v4232 = vadd.f32 %v4143, %v4231
    %v4233 = vpop.f32.mrf.mxu0
    %v4234 = vadd.f32 %v4145, %v4233
    %4235 = vmatmul.bf16.gmra.mxu0 %v3107
    %v4236 = vpop.f32.mrf.mxu0
    %v4237 = vadd.f32 %v4148, %v4236
    %v4238 = vpop.f32.mrf.mxu0
    %v4239 = vadd.f32 %v4150, %v4238
    %4240 = vmatmul.bf16.gmra.mxu0 %v3111
    %v4241 = vpop.f32.mrf.mxu0
    %v4242 = vadd.f32 %v4153, %v4241
    %v4243 = vpop.f32.mrf.mxu0
    %v4244 = vadd.f32 %v4155, %v4243
    %4245 = vmatmul.bf16.gmra.mxu0 %v3115
    %v4246 = vpop.f32.mrf.mxu0
    %v4247 = vadd.f32 %v4158, %v4246
    %v4248 = vpop.f32.mrf.mxu0
    %v4249 = vadd.f32 %v4160, %v4248
    %4250 = vmatmul.bf16.gmra.mxu0 %v3119
    %v4251 = vpop.f32.mrf.mxu0
    %v4252 = vadd.f32 %v4163, %v4251
    %v4253 = vpop.f32.mrf.mxu0
    %v4254 = vadd.f32 %v4165, %v4253
    %4255 = vdwg.mxu0
    %4256 = vmatpush.bf16.msra.mxu0 %v3956
    %4257 = vmatpush.bf16.msra.mxu0 %v3955
    %4258 = vmatpush.bf16.msra.mxu0 %v3954
    %4259 = vmatpush.bf16.msra.mxu0 %v3953
    %4260 = vmatpush.bf16.msra.mxu0 %v3952
    %4261 = vmatpush.bf16.msra.mxu0 %v3951
    %4262 = vmatpush.bf16.msra.mxu0 %v3950
    %4263 = vmatpush.bf16.msra.mxu0 %v3949
    %4264 = vmatmul.bf16.gmra.mxu0 %v3060
    %v4265 = vpop.f32.mrf.mxu0
    %v4266 = vadd.f32 %v4177, %v4265
    %v4267 = vpop.f32.mrf.mxu0
    %v4268 = vadd.f32 %v4179, %v4267
    %4269 = vmatmul.bf16.gmra.mxu0 %v3064
    %v4270 = vpop.f32.mrf.mxu0
    %v4271 = vadd.f32 %v4182, %v4270
    %v4272 = vpop.f32.mrf.mxu0
    %v4273 = vadd.f32 %v4184, %v4272
    %4274 = vmatmul.bf16.gmra.mxu0 %v3068
    %v4275 = vpop.f32.mrf.mxu0
    %v4276 = vadd.f32 %v4187, %v4275
    %v4277 = vpop.f32.mrf.mxu0
    %v4278 = vadd.f32 %v4189, %v4277
    %4279 = vmatmul.bf16.gmra.mxu0 %v3072
    %v4280 = vpop.f32.mrf.mxu0
    %v4281 = vadd.f32 %v4192, %v4280
    %v4282 = vpop.f32.mrf.mxu0
    %v4283 = vadd.f32 %v4194, %v4282
    %4284 = vmatmul.bf16.gmra.mxu0 %v3076
    %v4285 = vpop.f32.mrf.mxu0
    %v4286 = vadd.f32 %v4197, %v4285
    %v4287 = vpop.f32.mrf.mxu0
    %v4288 = vadd.f32 %v4199, %v4287
    %4289 = vmatmul.bf16.gmra.mxu0 %v3080
    %v4290 = vpop.f32.mrf.mxu0
    %v4291 = vadd.f32 %v4202, %v4290
    %v4292 = vpop.f32.mrf.mxu0
    %v4293 = vadd.f32 %v4204, %v4292
    %4294 = vmatmul.bf16.gmra.mxu0 %v3084
    %v4295 = vpop.f32.mrf.mxu0
    %v4296 = vadd.f32 %v4207, %v4295
    %v4297 = vpop.f32.mrf.mxu0
    %v4298 = vadd.f32 %v4209, %v4297
    %4299 = vmatmul.bf16.gmra.mxu0 %v3088
    %v4300 = vpop.f32.mrf.mxu0
    %v4301 = vadd.f32 %v4212, %v4300
    %v4302 = vpop.f32.mrf.mxu0
    %v4303 = vadd.f32 %v4214, %v4302
    %4304 = vmatmul.bf16.gmra.mxu0 %v3092
    %v4305 = vpop.f32.mrf.mxu0
    %v4306 = vadd.f32 %v4217, %v4305
    %v4307 = vpop.f32.mrf.mxu0
    %v4308 = vadd.f32 %v4219, %v4307
    %4309 = vmatmul.bf16.gmra.mxu0 %v3096
    %v4310 = vpop.f32.mrf.mxu0
    %v4311 = vadd.f32 %v4222, %v4310
    %v4312 = vpop.f32.mrf.mxu0
    %v4313 = vadd.f32 %v4224, %v4312
    %4314 = vmatmul.bf16.gmra.mxu0 %v3100
    %v4315 = vpop.f32.mrf.mxu0
    %v4316 = vadd.f32 %v4227, %v4315
    %v4317 = vpop.f32.mrf.mxu0
    %v4318 = vadd.f32 %v4229, %v4317
    %4319 = vmatmul.bf16.gmra.mxu0 %v3104
    %v4320 = vpop.f32.mrf.mxu0
    %v4321 = vadd.f32 %v4232, %v4320
    %v4322 = vpop.f32.mrf.mxu0
    %v4323 = vadd.f32 %v4234, %v4322
    %4324 = vmatmul.bf16.gmra.mxu0 %v3108
    %v4325 = vpop.f32.mrf.mxu0
    %v4326 = vadd.f32 %v4237, %v4325
    %v4327 = vpop.f32.mrf.mxu0
    %v4328 = vadd.f32 %v4239, %v4327
    %4329 = vmatmul.bf16.gmra.mxu0 %v3112
    %v4330 = vpop.f32.mrf.mxu0
    %v4331 = vadd.f32 %v4242, %v4330
    %v4332 = vpop.f32.mrf.mxu0
    %v4333 = vadd.f32 %v4244, %v4332
    %4334 = vmatmul.bf16.gmra.mxu0 %v3116
    %v4335 = vpop.f32.mrf.mxu0
    %v4336 = vadd.f32 %v4247, %v4335
    %v4337 = vpop.f32.mrf.mxu0
    %v4338 = vadd.f32 %v4249, %v4337
    %4339 = vmatmul.bf16.gmra.mxu0 %v3120
    %v4340 = vpop.f32.mrf.mxu0
    %v4341 = vadd.f32 %v4252, %v4340
    %v4342 = vpop.f32.mrf.mxu0
    %v4343 = vadd.f32 %v4254, %v4342
    %4344 = vdwg.mxu0
    %v4345 = vld [vmem:[%s8] sm:$0x1]
    %v4346 = vunpack.c.l.bf16 %v4345
    %v4347 = vperm.slane %v4346, 0
    %v4348 = vadd.f32 %v4266, %v4347
    %v4349 = vadd.f32 %v4268, %v4347
    %v4350 = vadd.f32 %v4271, %v4347
    %v4351 = vadd.f32 %v4273, %v4347
    %v4352 = vadd.f32 %v4276, %v4347
    %v4353 = vadd.f32 %v4278, %v4347
    %v4354 = vadd.f32 %v4281, %v4347
    %v4355 = vadd.f32 %v4283, %v4347
    %v4356 = vadd.f32 %v4286, %v4347
    %v4357 = vadd.f32 %v4288, %v4347
    %v4358 = vadd.f32 %v4291, %v4347
    %v4359 = vadd.f32 %v4293, %v4347
    %v4360 = vadd.f32 %v4296, %v4347
    %v4361 = vadd.f32 %v4298, %v4347
    %v4362 = vadd.f32 %v4301, %v4347
    %v4363 = vadd.f32 %v4303, %v4347
    %v4364 = vadd.f32 %v4306, %v4347
    %v4365 = vadd.f32 %v4308, %v4347
    %v4366 = vadd.f32 %v4311, %v4347
    %v4367 = vadd.f32 %v4313, %v4347
    %v4368 = vadd.f32 %v4316, %v4347
    %v4369 = vadd.f32 %v4318, %v4347
    %v4370 = vadd.f32 %v4321, %v4347
    %v4371 = vadd.f32 %v4323, %v4347
    %v4372 = vadd.f32 %v4326, %v4347
    %v4373 = vadd.f32 %v4328, %v4347
    %v4374 = vadd.f32 %v4331, %v4347
    %v4375 = vadd.f32 %v4333, %v4347
    %v4376 = vadd.f32 %v4336, %v4347
    %v4377 = vadd.f32 %v4338, %v4347
    %v4378 = vadd.f32 %v4341, %v4347
    %v4379 = vadd.f32 %v4343, %v4347
    %v4380 = vmax.f32 %v4348, 0.0
    %v4381 = vmax.f32 %v4349, 0.0
    %v4382 = vmax.f32 %v4350, 0.0
    %v4383 = vmax.f32 %v4351, 0.0
    %v4384 = vmax.f32 %v4352, 0.0
    %v4385 = vmax.f32 %v4353, 0.0
    %v4386 = vmax.f32 %v4354, 0.0
    %v4387 = vmax.f32 %v4355, 0.0
    %v4388 = vmax.f32 %v4356, 0.0
    %v4389 = vmax.f32 %v4357, 0.0
    %v4390 = vmax.f32 %v4358, 0.0
    %v4391 = vmax.f32 %v4359, 0.0
    %v4392 = vmax.f32 %v4360, 0.0
    %v4393 = vmax.f32 %v4361, 0.0
    %v4394 = vmax.f32 %v4362, 0.0
    %v4395 = vmax.f32 %v4363, 0.0
    %v4396 = vmax.f32 %v4364, 0.0
    %v4397 = vmax.f32 %v4365, 0.0
    %v4398 = vmax.f32 %v4366, 0.0
    %v4399 = vmax.f32 %v4367, 0.0
    %v4400 = vmax.f32 %v4368, 0.0
    %v4401 = vmax.f32 %v4369, 0.0
    %v4402 = vmax.f32 %v4370, 0.0
    %v4403 = vmax.f32 %v4371, 0.0
    %v4404 = vmax.f32 %v4372, 0.0
    %v4405 = vmax.f32 %v4373, 0.0
    %v4406 = vmax.f32 %v4374, 0.0
    %v4407 = vmax.f32 %v4375, 0.0
    %v4408 = vmax.f32 %v4376, 0.0
    %v4409 = vmax.f32 %v4377, 0.0
    %v4410 = vmax.f32 %v4378, 0.0
    %v4411 = vmax.f32 %v4379, 0.0
    %v4412 = vpack.c.bf16 %v4381, %v4380
    %v4413 = vpack.c.bf16 %v4383, %v4382
    %v4414 = vpack.c.bf16 %v4385, %v4384
    %v4415 = vpack.c.bf16 %v4387, %v4386
    %v4416 = vpack.c.bf16 %v4389, %v4388
    %v4417 = vpack.c.bf16 %v4391, %v4390
    %v4418 = vpack.c.bf16 %v4393, %v4392
    %v4419 = vpack.c.bf16 %v4395, %v4394
    %v4420 = vpack.c.bf16 %v4397, %v4396
    %v4421 = vpack.c.bf16 %v4399, %v4398
    %v4422 = vpack.c.bf16 %v4401, %v4400
    %v4423 = vpack.c.bf16 %v4403, %v4402
    %v4424 = vpack.c.bf16 %v4405, %v4404
    %v4425 = vpack.c.bf16 %v4407, %v4406
    %v4426 = vpack.c.bf16 %v4409, %v4408
    %v4427 = vpack.c.bf16 %v4411, %v4410
    %4428 = vmatpush.bf16.msra.mxu0 %v4419
    %4429 = vmatpush.bf16.msra.mxu0 %v4418
    %4430 = vmatpush.bf16.msra.mxu0 %v4417
    %4431 = vmatpush.bf16.msra.mxu0 %v4416
    %4432 = vmatpush.bf16.msra.mxu0 %v4415
    %4433 = vmatpush.bf16.msra.mxu0 %v4414
    %4434 = vmatpush.bf16.msra.mxu0 %v4413
    %4435 = vmatpush.bf16.msra.mxu0 %v4412
    %4436 = vmatmul.bf16.gmra.mxu0 %v240
    %v4437 = vpop.f32.mrf.mxu0
    %v4438 = vadd.f32 0.0, %v4437
    %v4439 = vpop.f32.mrf.mxu0
    %v4440 = vadd.f32 0.0, %v4439
    %4441 = vmatmul.bf16.gmra.mxu0 %v242
    %v4442 = vpop.f32.mrf.mxu0
    %v4443 = vadd.f32 0.0, %v4442
    %v4444 = vpop.f32.mrf.mxu0
    %v4445 = vadd.f32 0.0, %v4444
    %4446 = vmatmul.bf16.gmra.mxu0 %v244
    %v4447 = vpop.f32.mrf.mxu0
    %v4448 = vadd.f32 0.0, %v4447
    %v4449 = vpop.f32.mrf.mxu0
    %v4450 = vadd.f32 0.0, %v4449
    %4451 = vmatmul.bf16.gmra.mxu0 %v246
    %v4452 = vpop.f32.mrf.mxu0
    %v4453 = vadd.f32 0.0, %v4452
    %v4454 = vpop.f32.mrf.mxu0
    %v4455 = vadd.f32 0.0, %v4454
    %4456 = vmatmul.bf16.gmra.mxu0 %v248
    %v4457 = vpop.f32.mrf.mxu0
    %v4458 = vadd.f32 0.0, %v4457
    %v4459 = vpop.f32.mrf.mxu0
    %v4460 = vadd.f32 0.0, %v4459
    %4461 = vmatmul.bf16.gmra.mxu0 %v250
    %v4462 = vpop.f32.mrf.mxu0
    %v4463 = vadd.f32 0.0, %v4462
    %v4464 = vpop.f32.mrf.mxu0
    %v4465 = vadd.f32 0.0, %v4464
    %4466 = vmatmul.bf16.gmra.mxu0 %v252
    %v4467 = vpop.f32.mrf.mxu0
    %v4468 = vadd.f32 0.0, %v4467
    %v4469 = vpop.f32.mrf.mxu0
    %v4470 = vadd.f32 0.0, %v4469
    %4471 = vmatmul.bf16.gmra.mxu0 %v254
    %v4472 = vpop.f32.mrf.mxu0
    %v4473 = vadd.f32 0.0, %v4472
    %v4474 = vpop.f32.mrf.mxu0
    %v4475 = vadd.f32 0.0, %v4474
    %4476 = vmatmul.bf16.gmra.mxu0 %v256
    %v4477 = vpop.f32.mrf.mxu0
    %v4478 = vadd.f32 0.0, %v4477
    %v4479 = vpop.f32.mrf.mxu0
    %v4480 = vadd.f32 0.0, %v4479
    %4481 = vmatmul.bf16.gmra.mxu0 %v258
    %v4482 = vpop.f32.mrf.mxu0
    %v4483 = vadd.f32 0.0, %v4482
    %v4484 = vpop.f32.mrf.mxu0
    %v4485 = vadd.f32 0.0, %v4484
    %4486 = vmatmul.bf16.gmra.mxu0 %v260
    %v4487 = vpop.f32.mrf.mxu0
    %v4488 = vadd.f32 0.0, %v4487
    %v4489 = vpop.f32.mrf.mxu0
    %v4490 = vadd.f32 0.0, %v4489
    %4491 = vmatmul.bf16.gmra.mxu0 %v262
    %v4492 = vpop.f32.mrf.mxu0
    %v4493 = vadd.f32 0.0, %v4492
    %v4494 = vpop.f32.mrf.mxu0
    %v4495 = vadd.f32 0.0, %v4494
    %4496 = vmatmul.bf16.gmra.mxu0 %v264
    %v4497 = vpop.f32.mrf.mxu0
    %v4498 = vadd.f32 0.0, %v4497
    %v4499 = vpop.f32.mrf.mxu0
    %v4500 = vadd.f32 0.0, %v4499
    %4501 = vmatmul.bf16.gmra.mxu0 %v266
    %v4502 = vpop.f32.mrf.mxu0
    %v4503 = vadd.f32 0.0, %v4502
    %v4504 = vpop.f32.mrf.mxu0
    %v4505 = vadd.f32 0.0, %v4504
    %4506 = vmatmul.bf16.gmra.mxu0 %v268
    %v4507 = vpop.f32.mrf.mxu0
    %v4508 = vadd.f32 0.0, %v4507
    %v4509 = vpop.f32.mrf.mxu0
    %v4510 = vadd.f32 0.0, %v4509
    %4511 = vmatmul.bf16.gmra.mxu0 %v270
    %v4512 = vpop.f32.mrf.mxu0
    %v4513 = vadd.f32 0.0, %v4512
    %v4514 = vpop.f32.mrf.mxu0
    %v4515 = vadd.f32 0.0, %v4514
    %4516 = vdwg.mxu0
    %4517 = vmatpush.bf16.msra.mxu0 %v4427
    %4518 = vmatpush.bf16.msra.mxu0 %v4426
    %4519 = vmatpush.bf16.msra.mxu0 %v4425
    %4520 = vmatpush.bf16.msra.mxu0 %v4424
    %4521 = vmatpush.bf16.msra.mxu0 %v4423
    %4522 = vmatpush.bf16.msra.mxu0 %v4422
    %4523 = vmatpush.bf16.msra.mxu0 %v4421
    %4524 = vmatpush.bf16.msra.mxu0 %v4420
    %4525 = vmatmul.bf16.gmra.mxu0 %v241
    %v4526 = vpop.f32.mrf.mxu0
    %v4527 = vadd.f32 %v4438, %v4526
    %v4528 = vpop.f32.mrf.mxu0
    %v4529 = vadd.f32 %v4440, %v4528
    %4530 = vmatmul.bf16.gmra.mxu0 %v243
    %v4531 = vpop.f32.mrf.mxu0
    %v4532 = vadd.f32 %v4443, %v4531
    %v4533 = vpop.f32.mrf.mxu0
    %v4534 = vadd.f32 %v4445, %v4533
    %4535 = vmatmul.bf16.gmra.mxu0 %v245
    %v4536 = vpop.f32.mrf.mxu0
    %v4537 = vadd.f32 %v4448, %v4536
    %v4538 = vpop.f32.mrf.mxu0
    %v4539 = vadd.f32 %v4450, %v4538
    %4540 = vmatmul.bf16.gmra.mxu0 %v247
    %v4541 = vpop.f32.mrf.mxu0
    %v4542 = vadd.f32 %v4453, %v4541
    %v4543 = vpop.f32.mrf.mxu0
    %v4544 = vadd.f32 %v4455, %v4543
    %4545 = vmatmul.bf16.gmra.mxu0 %v249
    %v4546 = vpop.f32.mrf.mxu0
    %v4547 = vadd.f32 %v4458, %v4546
    %v4548 = vpop.f32.mrf.mxu0
    %v4549 = vadd.f32 %v4460, %v4548
    %4550 = vmatmul.bf16.gmra.mxu0 %v251
    %v4551 = vpop.f32.mrf.mxu0
    %v4552 = vadd.f32 %v4463, %v4551
    %v4553 = vpop.f32.mrf.mxu0
    %v4554 = vadd.f32 %v4465, %v4553
    %4555 = vmatmul.bf16.gmra.mxu0 %v253
    %v4556 = vpop.f32.mrf.mxu0
    %v4557 = vadd.f32 %v4468, %v4556
    %v4558 = vpop.f32.mrf.mxu0
    %v4559 = vadd.f32 %v4470, %v4558
    %4560 = vmatmul.bf16.gmra.mxu0 %v255
    %v4561 = vpop.f32.mrf.mxu0
    %v4562 = vadd.f32 %v4473, %v4561
    %v4563 = vpop.f32.mrf.mxu0
    %v4564 = vadd.f32 %v4475, %v4563
    %4565 = vmatmul.bf16.gmra.mxu0 %v257
    %v4566 = vpop.f32.mrf.mxu0
    %v4567 = vadd.f32 %v4478, %v4566
    %v4568 = vpop.f32.mrf.mxu0
    %v4569 = vadd.f32 %v4480, %v4568
    %4570 = vmatmul.bf16.gmra.mxu0 %v259
    %v4571 = vpop.f32.mrf.mxu0
    %v4572 = vadd.f32 %v4483, %v4571
    %v4573 = vpop.f32.mrf.mxu0
    %v4574 = vadd.f32 %v4485, %v4573
    %4575 = vmatmul.bf16.gmra.mxu0 %v261
    %v4576 = vpop.f32.mrf.mxu0
    %v4577 = vadd.f32 %v4488, %v4576
    %v4578 = vpop.f32.mrf.mxu0
    %v4579 = vadd.f32 %v4490, %v4578
    %4580 = vmatmul.bf16.gmra.mxu0 %v263
    %v4581 = vpop.f32.mrf.mxu0
    %v4582 = vadd.f32 %v4493, %v4581
    %v4583 = vpop.f32.mrf.mxu0
    %v4584 = vadd.f32 %v4495, %v4583
    %4585 = vmatmul.bf16.gmra.mxu0 %v265
    %v4586 = vpop.f32.mrf.mxu0
    %v4587 = vadd.f32 %v4498, %v4586
    %v4588 = vpop.f32.mrf.mxu0
    %v4589 = vadd.f32 %v4500, %v4588
    %4590 = vmatmul.bf16.gmra.mxu0 %v267
    %v4591 = vpop.f32.mrf.mxu0
    %v4592 = vadd.f32 %v4503, %v4591
    %v4593 = vpop.f32.mrf.mxu0
    %v4594 = vadd.f32 %v4505, %v4593
    %4595 = vmatmul.bf16.gmra.mxu0 %v269
    %v4596 = vpop.f32.mrf.mxu0
    %v4597 = vadd.f32 %v4508, %v4596
    %v4598 = vpop.f32.mrf.mxu0
    %v4599 = vadd.f32 %v4510, %v4598
    %4600 = vmatmul.bf16.gmra.mxu0 %v271
    %v4601 = vpop.f32.mrf.mxu0
    %v4602 = vadd.f32 %v4513, %v4601
    %v4603 = vpop.f32.mrf.mxu0
    %v4604 = vadd.f32 %v4515, %v4603
    %4605 = vdwg.mxu0
    %v4606 = vmul.f32 %v4527, %v581
    %v4607 = vmul.f32 %v4529, %v586
    %v4608 = vmul.f32 %v4532, %v591
    %v4609 = vmul.f32 %v4534, %v596
    %v4610 = vmul.f32 %v4537, %v601
    %v4611 = vmul.f32 %v4539, %v606
    %v4612 = vmul.f32 %v4542, %v611
    %v4613 = vmul.f32 %v4544, %v616
    %v4614 = vmul.f32 %v4547, %v621
    %v4615 = vmul.f32 %v4549, %v626
    %v4616 = vmul.f32 %v4552, %v631
    %v4617 = vmul.f32 %v4554, %v636
    %v4618 = vmul.f32 %v4557, %v641
    %v4619 = vmul.f32 %v4559, %v646
    %v4620 = vmul.f32 %v4562, %v651
    %v4621 = vmul.f32 %v4564, %v656
    %v4622 = vmul.f32 %v4567, %v661
    %v4623 = vmul.f32 %v4569, %v666
    %v4624 = vmul.f32 %v4572, %v671
    %v4625 = vmul.f32 %v4574, %v676
    %v4626 = vmul.f32 %v4577, %v681
    %v4627 = vmul.f32 %v4579, %v686
    %v4628 = vmul.f32 %v4582, %v691
    %v4629 = vmul.f32 %v4584, %v696
    %v4630 = vmul.f32 %v4587, %v701
    %v4631 = vmul.f32 %v4589, %v706
    %v4632 = vmul.f32 %v4592, %v711
    %v4633 = vmul.f32 %v4594, %v716
    %v4634 = vmul.f32 %v4597, %v721
    %v4635 = vmul.f32 %v4599, %v726
    %v4636 = vmul.f32 %v4602, %v731
    %v4637 = vmul.f32 %v4604, %v736
    %v4638 = vpack.c.bf16 %v4607, %v4606
    %v4639 = vpack.c.bf16 %v4609, %v4608
    %v4640 = vpack.c.bf16 %v4611, %v4610
    %v4641 = vpack.c.bf16 %v4613, %v4612
    %v4642 = vpack.c.bf16 %v4615, %v4614
    %v4643 = vpack.c.bf16 %v4617, %v4616
    %v4644 = vpack.c.bf16 %v4619, %v4618
    %v4645 = vpack.c.bf16 %v4621, %v4620
    %v4646 = vpack.c.bf16 %v4623, %v4622
    %v4647 = vpack.c.bf16 %v4625, %v4624
    %v4648 = vpack.c.bf16 %v4627, %v4626
    %v4649 = vpack.c.bf16 %v4629, %v4628
    %v4650 = vpack.c.bf16 %v4631, %v4630
    %v4651 = vpack.c.bf16 %v4633, %v4632
    %v4652 = vpack.c.bf16 %v4635, %v4634
    %v4653 = vpack.c.bf16 %v4637, %v4636
    %v4654 = vld [vmem:[%s9] sm:$0xf]
    %v4655 = vld [vmem:[%s9 + $0x4] sm:$0xf]
    %v4656 = vld [vmem:[%s9 + $0x8] sm:$0xf]
    %v4657 = vld [vmem:[%s9 + $0xc] sm:$0xf]
    %v4658 = vld [vmem:[%s9 + $0x10] sm:$0xf]
    %v4659 = vld [vmem:[%s9 + $0x14] sm:$0xf]
    %v4660 = vld [vmem:[%s9 + $0x18] sm:$0xf]
    %v4661 = vld [vmem:[%s9 + $0x1c] sm:$0xf]
    %v4662 = vld [vmem:[%s9 + $0x20] sm:$0xf]
    %v4663 = vld [vmem:[%s9 + $0x24] sm:$0xf]
    %v4664 = vld [vmem:[%s9 + $0x28] sm:$0xf]
    %v4665 = vld [vmem:[%s9 + $0x2c] sm:$0xf]
    %v4666 = vld [vmem:[%s9 + $0x30] sm:$0xf]
    %v4667 = vld [vmem:[%s9 + $0x34] sm:$0xf]
    %v4668 = vld [vmem:[%s9 + $0x38] sm:$0xf]
    %v4669 = vld [vmem:[%s9 + $0x3c] sm:$0xf]
    %v4670 = vld [vmem:[%s10] sm:$0xf]
    %v4671 = vld [vmem:[%s10 + $0x4] sm:$0xf]
    %v4672 = vld [vmem:[%s10 + $0x8] sm:$0xf]
    %v4673 = vld [vmem:[%s10 + $0xc] sm:$0xf]
    %v4674 = vld [vmem:[%s10 + $0x10] sm:$0xf]
    %v4675 = vld [vmem:[%s10 + $0x14] sm:$0xf]
    %v4676 = vld [vmem:[%s10 + $0x18] sm:$0xf]
    %v4677 = vld [vmem:[%s10 + $0x1c] sm:$0xf]
    %v4678 = vld [vmem:[%s10 + $0x20] sm:$0xf]
    %v4679 = vld [vmem:[%s10 + $0x24] sm:$0xf]
    %v4680 = vld [vmem:[%s10 + $0x28] sm:$0xf]
    %v4681 = vld [vmem:[%s10 + $0x2c] sm:$0xf]
    %v4682 = vld [vmem:[%s10 + $0x30] sm:$0xf]
    %v4683 = vld [vmem:[%s10 + $0x34] sm:$0xf]
    %v4684 = vld [vmem:[%s10 + $0x38] sm:$0xf]
    %v4685 = vld [vmem:[%s10 + $0x3c] sm:$0xf]
    %v4702 = vunpack.c.l.b16 %v4670
    %v4703 = vunpack.c.l.b16 %v4671
    %v4704 = vunpack.c.l.b16 %v4672
    %v4705 = vunpack.c.l.b16 %v4673
    %v4706 = vunpack.c.l.b16 %v4674
    %v4707 = vunpack.c.l.b16 %v4675
    %v4708 = vunpack.c.l.b16 %v4676
    %v4709 = vunpack.c.l.b16 %v4677
    %v4710 = vunpack.c.l.b16 %v4678
    %v4711 = vunpack.c.l.b16 %v4679
    %v4712 = vunpack.c.l.b16 %v4680
    %v4713 = vunpack.c.l.b16 %v4681
    %v4714 = vunpack.c.l.b16 %v4682
    %v4715 = vunpack.c.l.b16 %v4683
    %v4716 = vunpack.c.l.b16 %v4684
    %v4717 = vunpack.c.l.b16 %v4685
    %v4718 = vpack.c.b16 %v4703, %v4702
    %v4719 = vpack.c.b16 %v4705, %v4704
    %v4720 = vpack.c.b16 %v4707, %v4706
    %v4721 = vpack.c.b16 %v4709, %v4708
    %v4722 = vpack.c.b16 %v4711, %v4710
    %v4723 = vpack.c.b16 %v4713, %v4712
    %v4724 = vpack.c.b16 %v4715, %v4714
    %v4725 = vpack.c.b16 %v4717, %v4716
    %4734 = vmatpush.bf16.msra.mxu0 %v4725
    %4735 = vmatpush.bf16.msra.mxu0 %v4724
    %4736 = vmatpush.bf16.msra.mxu0 %v4723
    %4737 = vmatpush.bf16.msra.mxu0 %v4722
    %4738 = vmatpush.bf16.msra.mxu0 %v4721
    %4739 = vmatpush.bf16.msra.mxu0 %v4720
    %4740 = vmatpush.bf16.msra.mxu0 %v4719
    %4741 = vmatpush.bf16.msra.mxu0 %v4718
    %4742 = vmatmul.bf16.gmra.mxu0 %v4412
    %v4743 = vpop.f32.mrf.mxu0
    %v4744 = vadd.f32 0.0, %v4743
    %v4745 = vpop.f32.mrf.mxu0
    %v4746 = vadd.f32 0.0, %v4745
    %4747 = vmatmul.bf16.gmra.mxu0 %v4413
    %v4748 = vpop.f32.mrf.mxu0
    %v4749 = vadd.f32 0.0, %v4748
    %v4750 = vpop.f32.mrf.mxu0
    %v4751 = vadd.f32 0.0, %v4750
    %4752 = vmatmul.bf16.gmra.mxu0 %v4414
    %v4753 = vpop.f32.mrf.mxu0
    %v4754 = vadd.f32 0.0, %v4753
    %v4755 = vpop.f32.mrf.mxu0
    %v4756 = vadd.f32 0.0, %v4755
    %4757 = vmatmul.bf16.gmra.mxu0 %v4415
    %v4758 = vpop.f32.mrf.mxu0
    %v4759 = vadd.f32 0.0, %v4758
    %v4760 = vpop.f32.mrf.mxu0
    %v4761 = vadd.f32 0.0, %v4760
    %4762 = vmatmul.bf16.gmra.mxu0 %v4416
    %v4763 = vpop.f32.mrf.mxu0
    %v4764 = vadd.f32 0.0, %v4763
    %v4765 = vpop.f32.mrf.mxu0
    %v4766 = vadd.f32 0.0, %v4765
    %4767 = vmatmul.bf16.gmra.mxu0 %v4417
    %v4768 = vpop.f32.mrf.mxu0
    %v4769 = vadd.f32 0.0, %v4768
    %v4770 = vpop.f32.mrf.mxu0
    %v4771 = vadd.f32 0.0, %v4770
    %4772 = vmatmul.bf16.gmra.mxu0 %v4418
    %v4773 = vpop.f32.mrf.mxu0
    %v4774 = vadd.f32 0.0, %v4773
    %v4775 = vpop.f32.mrf.mxu0
    %v4776 = vadd.f32 0.0, %v4775
    %4777 = vmatmul.bf16.gmra.mxu0 %v4419
    %v4778 = vpop.f32.mrf.mxu0
    %v4779 = vadd.f32 0.0, %v4778
    %v4780 = vpop.f32.mrf.mxu0
    %v4781 = vadd.f32 0.0, %v4780
    %4782 = vmatmul.bf16.gmra.mxu0 %v4420
    %v4783 = vpop.f32.mrf.mxu0
    %v4784 = vadd.f32 0.0, %v4783
    %v4785 = vpop.f32.mrf.mxu0
    %v4786 = vadd.f32 0.0, %v4785
    %4787 = vmatmul.bf16.gmra.mxu0 %v4421
    %v4788 = vpop.f32.mrf.mxu0
    %v4789 = vadd.f32 0.0, %v4788
    %v4790 = vpop.f32.mrf.mxu0
    %v4791 = vadd.f32 0.0, %v4790
    %4792 = vmatmul.bf16.gmra.mxu0 %v4422
    %v4793 = vpop.f32.mrf.mxu0
    %v4794 = vadd.f32 0.0, %v4793
    %v4795 = vpop.f32.mrf.mxu0
    %v4796 = vadd.f32 0.0, %v4795
    %4797 = vmatmul.bf16.gmra.mxu0 %v4423
    %v4798 = vpop.f32.mrf.mxu0
    %v4799 = vadd.f32 0.0, %v4798
    %v4800 = vpop.f32.mrf.mxu0
    %v4801 = vadd.f32 0.0, %v4800
    %4802 = vmatmul.bf16.gmra.mxu0 %v4424
    %v4803 = vpop.f32.mrf.mxu0
    %v4804 = vadd.f32 0.0, %v4803
    %v4805 = vpop.f32.mrf.mxu0
    %v4806 = vadd.f32 0.0, %v4805
    %4807 = vmatmul.bf16.gmra.mxu0 %v4425
    %v4808 = vpop.f32.mrf.mxu0
    %v4809 = vadd.f32 0.0, %v4808
    %v4810 = vpop.f32.mrf.mxu0
    %v4811 = vadd.f32 0.0, %v4810
    %4812 = vmatmul.bf16.gmra.mxu0 %v4426
    %v4813 = vpop.f32.mrf.mxu0
    %v4814 = vadd.f32 0.0, %v4813
    %v4815 = vpop.f32.mrf.mxu0
    %v4816 = vadd.f32 0.0, %v4815
    %4817 = vmatmul.bf16.gmra.mxu0 %v4427
    %v4818 = vpop.f32.mrf.mxu0
    %v4819 = vadd.f32 0.0, %v4818
    %v4820 = vpop.f32.mrf.mxu0
    %v4821 = vadd.f32 0.0, %v4820
    %4822 = vdwg.mxu0
    %v4839 = vunpack.c.l.b16 %v4654
    %v4840 = vunpack.c.l.b16 %v4655
    %v4841 = vunpack.c.l.b16 %v4656
    %v4842 = vunpack.c.l.b16 %v4657
    %v4843 = vunpack.c.l.b16 %v4658
    %v4844 = vunpack.c.l.b16 %v4659
    %v4845 = vunpack.c.l.b16 %v4660
    %v4846 = vunpack.c.l.b16 %v4661
    %v4847 = vunpack.c.l.b16 %v4662
    %v4848 = vunpack.c.l.b16 %v4663
    %v4849 = vunpack.c.l.b16 %v4664
    %v4850 = vunpack.c.l.b16 %v4665
    %v4851 = vunpack.c.l.b16 %v4666
    %v4852 = vunpack.c.l.b16 %v4667
    %v4853 = vunpack.c.l.b16 %v4668
    %v4854 = vunpack.c.l.b16 %v4669
    %v4855 = vpack.c.b16 %v4840, %v4839
    %v4856 = vpack.c.b16 %v4842, %v4841
    %v4857 = vpack.c.b16 %v4844, %v4843
    %v4858 = vpack.c.b16 %v4846, %v4845
    %v4859 = vpack.c.b16 %v4848, %v4847
    %v4860 = vpack.c.b16 %v4850, %v4849
    %v4861 = vpack.c.b16 %v4852, %v4851
    %v4862 = vpack.c.b16 %v4854, %v4853
    %4871 = vmatpush.bf16.msra.mxu0 %v4862
    %4872 = vmatpush.bf16.msra.mxu0 %v4861
    %4873 = vmatpush.bf16.msra.mxu0 %v4860
    %4874 = vmatpush.bf16.msra.mxu0 %v4859
    %4875 = vmatpush.bf16.msra.mxu0 %v4858
    %4876 = vmatpush.bf16.msra.mxu0 %v4857
    %4877 = vmatpush.bf16.msra.mxu0 %v4856
    %4878 = vmatpush.bf16.msra.mxu0 %v4855
    %4879 = vmatmul.bf16.gmra.mxu0 %v4638
    %v4880 = vpop.f32.mrf.mxu0
    %v4881 = vadd.f32 %v4744, %v4880
    %v4882 = vpop.f32.mrf.mxu0
    %v4883 = vadd.f32 %v4746, %v4882
    %4884 = vmatmul.bf16.gmra.mxu0 %v4639
    %v4885 = vpop.f32.mrf.mxu0
    %v4886 = vadd.f32 %v4749, %v4885
    %v4887 = vpop.f32.mrf.mxu0
    %v4888 = vadd.f32 %v4751, %v4887
    %4889 = vmatmul.bf16.gmra.mxu0 %v4640
    %v4890 = vpop.f32.mrf.mxu0
    %v4891 = vadd.f32 %v4754, %v4890
    %v4892 = vpop.f32.mrf.mxu0
    %v4893 = vadd.f32 %v4756, %v4892
    %4894 = vmatmul.bf16.gmra.mxu0 %v4641
    %v4895 = vpop.f32.mrf.mxu0
    %v4896 = vadd.f32 %v4759, %v4895
    %v4897 = vpop.f32.mrf.mxu0
    %v4898 = vadd.f32 %v4761, %v4897
    %4899 = vmatmul.bf16.gmra.mxu0 %v4642
    %v4900 = vpop.f32.mrf.mxu0
    %v4901 = vadd.f32 %v4764, %v4900
    %v4902 = vpop.f32.mrf.mxu0
    %v4903 = vadd.f32 %v4766, %v4902
    %4904 = vmatmul.bf16.gmra.mxu0 %v4643
    %v4905 = vpop.f32.mrf.mxu0
    %v4906 = vadd.f32 %v4769, %v4905
    %v4907 = vpop.f32.mrf.mxu0
    %v4908 = vadd.f32 %v4771, %v4907
    %4909 = vmatmul.bf16.gmra.mxu0 %v4644
    %v4910 = vpop.f32.mrf.mxu0
    %v4911 = vadd.f32 %v4774, %v4910
    %v4912 = vpop.f32.mrf.mxu0
    %v4913 = vadd.f32 %v4776, %v4912
    %4914 = vmatmul.bf16.gmra.mxu0 %v4645
    %v4915 = vpop.f32.mrf.mxu0
    %v4916 = vadd.f32 %v4779, %v4915
    %v4917 = vpop.f32.mrf.mxu0
    %v4918 = vadd.f32 %v4781, %v4917
    %4919 = vmatmul.bf16.gmra.mxu0 %v4646
    %v4920 = vpop.f32.mrf.mxu0
    %v4921 = vadd.f32 %v4784, %v4920
    %v4922 = vpop.f32.mrf.mxu0
    %v4923 = vadd.f32 %v4786, %v4922
    %4924 = vmatmul.bf16.gmra.mxu0 %v4647
    %v4925 = vpop.f32.mrf.mxu0
    %v4926 = vadd.f32 %v4789, %v4925
    %v4927 = vpop.f32.mrf.mxu0
    %v4928 = vadd.f32 %v4791, %v4927
    %4929 = vmatmul.bf16.gmra.mxu0 %v4648
    %v4930 = vpop.f32.mrf.mxu0
    %v4931 = vadd.f32 %v4794, %v4930
    %v4932 = vpop.f32.mrf.mxu0
    %v4933 = vadd.f32 %v4796, %v4932
    %4934 = vmatmul.bf16.gmra.mxu0 %v4649
    %v4935 = vpop.f32.mrf.mxu0
    %v4936 = vadd.f32 %v4799, %v4935
    %v4937 = vpop.f32.mrf.mxu0
    %v4938 = vadd.f32 %v4801, %v4937
    %4939 = vmatmul.bf16.gmra.mxu0 %v4650
    %v4940 = vpop.f32.mrf.mxu0
    %v4941 = vadd.f32 %v4804, %v4940
    %v4942 = vpop.f32.mrf.mxu0
    %v4943 = vadd.f32 %v4806, %v4942
    %4944 = vmatmul.bf16.gmra.mxu0 %v4651
    %v4945 = vpop.f32.mrf.mxu0
    %v4946 = vadd.f32 %v4809, %v4945
    %v4947 = vpop.f32.mrf.mxu0
    %v4948 = vadd.f32 %v4811, %v4947
    %4949 = vmatmul.bf16.gmra.mxu0 %v4652
    %v4950 = vpop.f32.mrf.mxu0
    %v4951 = vadd.f32 %v4814, %v4950
    %v4952 = vpop.f32.mrf.mxu0
    %v4953 = vadd.f32 %v4816, %v4952
    %4954 = vmatmul.bf16.gmra.mxu0 %v4653
    %v4955 = vpop.f32.mrf.mxu0
    %v4956 = vadd.f32 %v4819, %v4955
    %v4957 = vpop.f32.mrf.mxu0
    %v4958 = vadd.f32 %v4821, %v4957
    %4959 = vdwg.mxu0
    %v4960 = vld [vmem:[%s11] sm:$0x1]
    %v4961 = vunpack.c.l.bf16 %v4960
    %v4962 = vperm.slane %v4961, 0
    %v4963 = vadd.f32 %v4881, %v4962
    %v4964 = vadd.f32 %v4883, %v4962
    %v4965 = vadd.f32 %v4886, %v4962
    %v4966 = vadd.f32 %v4888, %v4962
    %v4967 = vadd.f32 %v4891, %v4962
    %v4968 = vadd.f32 %v4893, %v4962
    %v4969 = vadd.f32 %v4896, %v4962
    %v4970 = vadd.f32 %v4898, %v4962
    %v4971 = vadd.f32 %v4901, %v4962
    %v4972 = vadd.f32 %v4903, %v4962
    %v4973 = vadd.f32 %v4906, %v4962
    %v4974 = vadd.f32 %v4908, %v4962
    %v4975 = vadd.f32 %v4911, %v4962
    %v4976 = vadd.f32 %v4913, %v4962
    %v4977 = vadd.f32 %v4916, %v4962
    %v4978 = vadd.f32 %v4918, %v4962
    %v4979 = vadd.f32 %v4921, %v4962
    %v4980 = vadd.f32 %v4923, %v4962
    %v4981 = vadd.f32 %v4926, %v4962
    %v4982 = vadd.f32 %v4928, %v4962
    %v4983 = vadd.f32 %v4931, %v4962
    %v4984 = vadd.f32 %v4933, %v4962
    %v4985 = vadd.f32 %v4936, %v4962
    %v4986 = vadd.f32 %v4938, %v4962
    %v4987 = vadd.f32 %v4941, %v4962
    %v4988 = vadd.f32 %v4943, %v4962
    %v4989 = vadd.f32 %v4946, %v4962
    %v4990 = vadd.f32 %v4948, %v4962
    %v4991 = vadd.f32 %v4951, %v4962
    %v4992 = vadd.f32 %v4953, %v4962
    %v4993 = vadd.f32 %v4956, %v4962
    %v4994 = vadd.f32 %v4958, %v4962
    %v4995 = vmax.f32 %v4963, 0.0
    %v4996 = vmax.f32 %v4964, 0.0
    %v4997 = vmax.f32 %v4965, 0.0
    %v4998 = vmax.f32 %v4966, 0.0
    %v4999 = vmax.f32 %v4967, 0.0
    %v5000 = vmax.f32 %v4968, 0.0
    %v5001 = vmax.f32 %v4969, 0.0
    %v5002 = vmax.f32 %v4970, 0.0
    %v5003 = vmax.f32 %v4971, 0.0
    %v5004 = vmax.f32 %v4972, 0.0
    %v5005 = vmax.f32 %v4973, 0.0
    %v5006 = vmax.f32 %v4974, 0.0
    %v5007 = vmax.f32 %v4975, 0.0
    %v5008 = vmax.f32 %v4976, 0.0
    %v5009 = vmax.f32 %v4977, 0.0
    %v5010 = vmax.f32 %v4978, 0.0
    %v5011 = vmax.f32 %v4979, 0.0
    %v5012 = vmax.f32 %v4980, 0.0
    %v5013 = vmax.f32 %v4981, 0.0
    %v5014 = vmax.f32 %v4982, 0.0
    %v5015 = vmax.f32 %v4983, 0.0
    %v5016 = vmax.f32 %v4984, 0.0
    %v5017 = vmax.f32 %v4985, 0.0
    %v5018 = vmax.f32 %v4986, 0.0
    %v5019 = vmax.f32 %v4987, 0.0
    %v5020 = vmax.f32 %v4988, 0.0
    %v5021 = vmax.f32 %v4989, 0.0
    %v5022 = vmax.f32 %v4990, 0.0
    %v5023 = vmax.f32 %v4991, 0.0
    %v5024 = vmax.f32 %v4992, 0.0
    %v5025 = vmax.f32 %v4993, 0.0
    %v5026 = vmax.f32 %v4994, 0.0
    %v5027 = vpack.c.bf16 %v4996, %v4995
    %v5028 = vpack.c.bf16 %v4998, %v4997
    %v5029 = vpack.c.bf16 %v5000, %v4999
    %v5030 = vpack.c.bf16 %v5002, %v5001
    %v5031 = vpack.c.bf16 %v5004, %v5003
    %v5032 = vpack.c.bf16 %v5006, %v5005
    %v5033 = vpack.c.bf16 %v5008, %v5007
    %v5034 = vpack.c.bf16 %v5010, %v5009
    %v5035 = vpack.c.bf16 %v5012, %v5011
    %v5036 = vpack.c.bf16 %v5014, %v5013
    %v5037 = vpack.c.bf16 %v5016, %v5015
    %v5038 = vpack.c.bf16 %v5018, %v5017
    %v5039 = vpack.c.bf16 %v5020, %v5019
    %v5040 = vpack.c.bf16 %v5022, %v5021
    %v5041 = vpack.c.bf16 %v5024, %v5023
    %v5042 = vpack.c.bf16 %v5026, %v5025
    %v5043 = vunpack.c.l.bf16 %v5027
    %v5044 = vunpack.c.h.bf16 %v5027
    %v5045 = vunpack.c.l.bf16 %v5028
    %v5046 = vunpack.c.h.bf16 %v5028
    %v5047 = vunpack.c.l.bf16 %v5029
    %v5048 = vunpack.c.h.bf16 %v5029
    %v5049 = vunpack.c.l.bf16 %v5030
    %v5050 = vunpack.c.h.bf16 %v5030
    %v5051 = vunpack.c.l.bf16 %v5031
    %v5052 = vunpack.c.h.bf16 %v5031
    %v5053 = vunpack.c.l.bf16 %v5032
    %v5054 = vunpack.c.h.bf16 %v5032
    %v5055 = vunpack.c.l.bf16 %v5033
    %v5056 = vunpack.c.h.bf16 %v5033
    %v5057 = vunpack.c.l.bf16 %v5034
    %v5058 = vunpack.c.h.bf16 %v5034
    %v5059 = vunpack.c.l.bf16 %v5035
    %v5060 = vunpack.c.h.bf16 %v5035
    %v5061 = vunpack.c.l.bf16 %v5036
    %v5062 = vunpack.c.h.bf16 %v5036
    %v5063 = vunpack.c.l.bf16 %v5037
    %v5064 = vunpack.c.h.bf16 %v5037
    %v5065 = vunpack.c.l.bf16 %v5038
    %v5066 = vunpack.c.h.bf16 %v5038
    %v5067 = vunpack.c.l.bf16 %v5039
    %v5068 = vunpack.c.h.bf16 %v5039
    %v5069 = vunpack.c.l.bf16 %v5040
    %v5070 = vunpack.c.h.bf16 %v5040
    %v5071 = vunpack.c.l.bf16 %v5041
    %v5072 = vunpack.c.h.bf16 %v5041
    %v5073 = vunpack.c.l.bf16 %v5042
    %v5074 = vunpack.c.h.bf16 %v5042
    %v5075 = vadd.f32 %v5043, %v5044
    %v5076 = vadd.f32 %v5075, %v5045
    %v5077 = vadd.f32 %v5076, %v5046
    %v5078 = vadd.f32 %v5077, %v5047
    %v5079 = vadd.f32 %v5078, %v5048
    %v5080 = vadd.f32 %v5079, %v5049
    %v5081 = vadd.f32 %v5080, %v5050
    %v5082 = vadd.f32 %v5081, %v5051
    %v5083 = vadd.f32 %v5082, %v5052
    %v5084 = vadd.f32 %v5083, %v5053
    %v5085 = vadd.f32 %v5084, %v5054
    %v5086 = vadd.f32 %v5085, %v5055
    %v5087 = vadd.f32 %v5086, %v5056
    %v5088 = vadd.f32 %v5087, %v5057
    %v5089 = vadd.f32 %v5088, %v5058
    %v5090 = vadd.f32 %v5089, %v5059
    %v5091 = vadd.f32 %v5090, %v5060
    %v5092 = vadd.f32 %v5091, %v5061
    %v5093 = vadd.f32 %v5092, %v5062
    %v5094 = vadd.f32 %v5093, %v5063
    %v5095 = vadd.f32 %v5094, %v5064
    %v5096 = vadd.f32 %v5095, %v5065
    %v5097 = vadd.f32 %v5096, %v5066
    %v5098 = vadd.f32 %v5097, %v5067
    %v5099 = vadd.f32 %v5098, %v5068
    %v5100 = vadd.f32 %v5099, %v5069
    %v5101 = vadd.f32 %v5100, %v5070
    %v5102 = vadd.f32 %v5101, %v5071
    %v5103 = vadd.f32 %v5102, %v5072
    %v5104 = vadd.f32 %v5103, %v5073
    %v5105 = vadd.f32 %v5104, %v5074
    %v5106 = vrot.slane %v5105, 4
    %v5107 = vadd.f32 %v5105, %v5106
    %v5108 = vrot.slane %v5107, 2
    %v5109 = vadd.f32 %v5107, %v5108
    %v5110 = vrot.slane %v5109, 1
    %v5111 = vadd.f32 %v5109, %v5110
    %v5112 = vmul.f32 %v5111, 0.00390625
    %v5113 = vpack.c.bf16 %v5112, %v5112
    %v5114 = vld [vmem:[%s12] sm:$0xf]
    %v5115 = vld [vmem:[%s12 + $0x4] sm:$0xf]
    %v5116 = vld [vmem:[%s12 + $0x8] sm:$0xf]
    %v5117 = vld [vmem:[%s12 + $0xc] sm:$0xf]
    %v5118 = vld [vmem:[%s12 + $0x10] sm:$0xf]
    %v5119 = vld [vmem:[%s12 + $0x14] sm:$0xf]
    %v5120 = vld [vmem:[%s12 + $0x18] sm:$0xf]
    %v5121 = vld [vmem:[%s12 + $0x1c] sm:$0xf]
    %v5122 = vld [vmem:[%s12 + $0x20] sm:$0xf]
    %v5123 = vld [vmem:[%s12 + $0x24] sm:$0xf]
    %v5124 = vld [vmem:[%s12 + $0x28] sm:$0xf]
    %v5125 = vld [vmem:[%s12 + $0x2c] sm:$0xf]
    %v5126 = vld [vmem:[%s12 + $0x30] sm:$0xf]
    %v5127 = vld [vmem:[%s12 + $0x34] sm:$0xf]
    %v5128 = vld [vmem:[%s12 + $0x38] sm:$0xf]
    %v5129 = vld [vmem:[%s12 + $0x3c] sm:$0xf]
    %v5130 = vld [vmem:[%s13] sm:$0x1]
    %v5131 = vunpack.c.l.bf16 %v5130
    %v5148 = vunpack.c.l.b16 %v5114
    %v5149 = vunpack.c.l.b16 %v5115
    %v5150 = vunpack.c.l.b16 %v5116
    %v5151 = vunpack.c.l.b16 %v5117
    %v5152 = vunpack.c.l.b16 %v5118
    %v5153 = vunpack.c.l.b16 %v5119
    %v5154 = vunpack.c.l.b16 %v5120
    %v5155 = vunpack.c.l.b16 %v5121
    %v5156 = vunpack.c.l.b16 %v5122
    %v5157 = vunpack.c.l.b16 %v5123
    %v5158 = vunpack.c.l.b16 %v5124
    %v5159 = vunpack.c.l.b16 %v5125
    %v5160 = vunpack.c.l.b16 %v5126
    %v5161 = vunpack.c.l.b16 %v5127
    %v5162 = vunpack.c.l.b16 %v5128
    %v5163 = vunpack.c.l.b16 %v5129
    %v5164 = vpack.c.b16 %v5149, %v5148
    %v5165 = vpack.c.b16 %v5151, %v5150
    %v5166 = vpack.c.b16 %v5153, %v5152
    %v5167 = vpack.c.b16 %v5155, %v5154
    %v5168 = vpack.c.b16 %v5157, %v5156
    %v5169 = vpack.c.b16 %v5159, %v5158
    %v5170 = vpack.c.b16 %v5161, %v5160
    %v5171 = vpack.c.b16 %v5163, %v5162
    %5180 = vmatpush.bf16.msra.mxu0 %v5171
    %5181 = vmatpush.bf16.msra.mxu0 %v5170
    %5182 = vmatpush.bf16.msra.mxu0 %v5169
    %5183 = vmatpush.bf16.msra.mxu0 %v5168
    %5184 = vmatpush.bf16.msra.mxu0 %v5167
    %5185 = vmatpush.bf16.msra.mxu0 %v5166
    %5186 = vmatpush.bf16.msra.mxu0 %v5165
    %5187 = vmatpush.bf16.msra.mxu0 %v5164
    %5188 = vmatmul.bf16.gmra.mxu0 %v5113
    %v5189 = vpop.f32.mrf.mxu0
    %v5190 = vadd.f32 %v5131, %v5189
    %v5191 = vpop.f32.mrf.mxu0
    %5192 = vdwg.mxu0
    %v5193 = vxor.u32 %v5190, 2147483648
    %v5194 = vmul.f32 %v5193, 1.442695
    %v5195 = vpow.pop %v5194
    %v5196 = vadd.f32 %v5195, 1.0
    %v5197 = vrcp.pop %v5196
    %v5198 = vmul.f32 %v5196, %v5197
    %v5199 = vsub.f32 1.0, %v5198
    %v5200 = vmul.f32 %v5197, %v5199
    %v5201 = vadd.f32 %v5197, %v5200
    %vm5202 = vweird.f32 %v5196
    %vm5203 = vweird.f32 %v5197
    %vm5204 = vmor %vm5202, %vm5203
    %v5205 = vsel %vm5204, %v5197, %v5201
    %v5206 = vand.u32 2147483647, %v5196
    %vm5207 = vcmp.eq.f32.partialorder %v5206, 8.507059e+37
    %v5208 = vand.u32 %v5196, 2147483648
    %v5209 = vor.u32 1.1754944e-38, %v5208
    %v5210 = vsel %vm5207, %v5209, %v5205
    %v5211 = vmul.f32 1.0, %v5210
    %5212 = vst [vmem:[#allocation2] sm:$0x1] %v5211
    // Predicated region
    $region58: #{graphsage3_forward.1} parent=1 // pred_check
      _
    $region59: #{graphsage3_forward.1} parent=1 // pred_check_branch
      %5214 = sbr.rel (0) target = $region61
    $region60: #{graphsage3_forward.1} parent=1 // pred_region
      %5216 = vsyncadd [#allocation3], 0
      %s5218 = sshll.u32 [#allocation2], 4
      %s5219 = int_to_ptr.vmem [resolvable:$true] %s5218
      %s5220 = sshll.u32 %s14, 4
      %s5221 = int_to_ptr.hbm [resolvable:$true] %s5220
      %5223 = dma.vmem_to_hbm [thread:$0]  %s5219, 16, %s5221, [#allocation3]
    $region61: #{graphsage3_forward.1} parent=1 // pred_fallthru
      _
    // Predicated region
    $region62: #{graphsage3_forward.1} parent=1 // pred_check
      _
    $region63: #{graphsage3_forward.1} parent=1 // pred_check_branch
      %5225 = sbr.rel (0) target = $region65
    $region64: #{graphsage3_forward.1} parent=1 // pred_region
      %5227 = dma.done [#allocation3], 16
    $region65: #{graphsage3_forward.1} parent=1 // pred_fallthru
      _
    %5228 = vsyncpa [#allocation3], 1

</llo_original>
